<compile_context>
chip_gen: v5e
topology: v5e:2x2
jax: 0.10.0
libtpu: 0.0.40
codegen_flags: <defaults>
</compile_context>

<pallas_src>
import math
from functools import partial

import jax
import jax.numpy as jnp
from jax.experimental import pallas as pl
from jax.experimental.pallas import tpu as pltpu

_COMPUTE_DTYPE = jnp.bfloat16  # MXU operand dtype (f32 accumulation everywhere)


# ---------------------------------------------------------------------------
# Kernel
# ---------------------------------------------------------------------------
def _layer_norm(x, w, b, eps=1e-5):
    # x: (L, D) f32 ; w, b: (1, D) f32
    mu = jnp.mean(x, axis=-1, keepdims=True)
    var = jnp.mean((x - mu) ** 2, axis=-1, keepdims=True)
    return (x - mu) * jax.lax.rsqrt(var + eps) * w + b


def residual_block_kernel(n_head, has_mask, *args):
    if has_mask:
        (x_ref, mask_ref, ln1w_ref, ln1b_ref, wqkv_ref, bqkv_ref,
         wo_ref, bo_ref, ln2w_ref, ln2b_ref,
         wfc_ref, bfc_ref, wpj_ref, bpj_ref,
         o_ref, attn_ref) = args
    else:
        (x_ref, ln1w_ref, ln1b_ref, wqkv_ref, bqkv_ref,
         wo_ref, bo_ref, ln2w_ref, ln2b_ref,
         wfc_ref, bfc_ref, wpj_ref, bpj_ref,
         o_ref, attn_ref) = args
        mask_ref = None

    cdt = _COMPUTE_DTYPE
    x = x_ref[0]                                   # (L, D)
    if x.dtype != jnp.float32:                     # skip redundant cast for f32 inputs
        x = x.astype(jnp.float32)
    L, D = x.shape
    dh = D // n_head
    scale = 1.0 / math.sqrt(dh)

    # ----- attention branch: LN1 -> fused QKV -> per-head softmax -> out proj -----
    xn = _layer_norm(x, ln1w_ref[...], ln1b_ref[...]).astype(cdt)
    qkv = jnp.dot(xn, wqkv_ref[...], preferred_element_type=jnp.float32) + bqkv_ref[...]
    q = qkv[:, 0:D] * scale                        # D-aligned slices of the fused result
    k = qkv[:, D:2 * D].astype(cdt)
    v = qkv[:, 2 * D:3 * D].astype(cdt)

    mask = mask_ref[...] if has_mask else None

    for h in range(n_head):                        # static unroll over heads
        sl = slice(h * dh, (h + 1) * dh)
        qh = q[:, sl].astype(cdt)
        # q @ k^T without materializing a transposed copy (NT dot_general).
        s = jnp.einsum("qd,kd->qk", qh, k[:, sl], preferred_element_type=jnp.float32)
        if has_mask:
            s = s + mask
        s = s - jnp.max(s, axis=-1, keepdims=True)
        p = jnp.exp(s)
        inv = pl.reciprocal(jnp.sum(p, axis=-1, keepdims=True), approx=True)
        ctx = jnp.dot((p * inv).astype(cdt), v[:, sl], preferred_element_type=jnp.float32)
        attn_ref[:, sl] = ctx.astype(cdt)          # write head output in place; no concat

    attn = jnp.dot(attn_ref[...], wo_ref[...], preferred_element_type=jnp.float32) + bo_ref[...]
    x = x + attn                                   # residual 1

    # ----- MLP branch: LN2 -> c_fc -> QuickGELU -> c_proj -----
    yn = _layer_norm(x, ln2w_ref[...], ln2b_ref[...]).astype(cdt)
    hdn = jnp.dot(yn, wfc_ref[...], preferred_element_type=jnp.float32) + bfc_ref[...]
    hdn = (hdn * jax.nn.sigmoid(1.702 * hdn)).astype(cdt)   # QuickGELU
    y = jnp.dot(hdn, wpj_ref[...], preferred_element_type=jnp.float32) + bpj_ref[...]
    x = x + y                                      # residual 2

    o_ref[0] = x.astype(o_ref.dtype)


# ---------------------------------------------------------------------------
# Wrapper (glue: transposes, weight pre-transposition/casts, BlockSpecs)
# ---------------------------------------------------------------------------
def residual_attention_block(x_lnd, params, n_head, attn_mask=None):
    L, N, D = x_lnd.shape
    assert D % n_head == 0, "d_model must be divisible by n_head"
    has_mask = attn_mask is not None

    x_nld = jnp.transpose(x_lnd, (1, 0, 2))        # (N, L, D)

    cdt = _COMPUTE_DTYPE
    row = lambda a: a[None, :].astype(jnp.float32)  # biases / LN params stay f32 rows

    # PyTorch linears are y = x @ W.T + b with W:(out, in); pre-transpose so the kernel
    # does x @ W directly, and ship the large weights as bf16 (MXU operand dtype).
    inputs = [x_nld]
    if has_mask:
        inputs.append(attn_mask.astype(jnp.float32))
    inputs += [
        row(params["ln1_w"]), row(params["ln1_b"]),
        params["in_proj_weight"].T.astype(cdt), row(params["in_proj_bias"]),   # fused QKV
        params["out_proj_w"].T.astype(cdt), row(params["out_proj_b"]),
        row(params["ln2_w"]), row(params["ln2_b"]),
        params["c_fc_w"].T.astype(cdt), row(params["c_fc_b"]),
        params["c_proj_w"].T.astype(cdt), row(params["c_proj_b"]),
    ]

    def run(weight_pipeline_mode):
        def const_spec(a):
            nd = a.ndim
            idx = lambda b, _nd=nd: (0,) * _nd
            if weight_pipeline_mode is None:
                return pl.BlockSpec(a.shape, idx)
            return pl.BlockSpec(a.shape, idx, pipeline_mode=weight_pipeline_mode)

        in_specs = [pl.BlockSpec((1, L, D), lambda b: (b, 0, 0))]
        in_specs += [const_spec(a) for a in inputs[1:]]

        # TODO(synk): for very large d_model on v7x (64 MiB VMEM), stream c_fc/c_proj
        # over a grid axis (or split attention/MLP into two pallas_calls) instead of
        # keeping all weights resident.
        return pl.pallas_call(
            partial(residual_block_kernel, n_head, has_mask),
            out_shape=jax.ShapeDtypeStruct((N, L, D), x_lnd.dtype),
            grid=(N,),
            in_specs=in_specs,
            out_specs=pl.BlockSpec((1, L, D), lambda b: (b, 0, 0)),
            scratch_shapes=[pltpu.VMEM((L, D), cdt)],   # per-head context assembly
            compiler_params=pltpu.CompilerParams(
                dimension_semantics=("parallel",),
                vmem_limit_bytes=64 * 1024 * 1024,
            ),
        )(*inputs)

    # Constant-index weights don't need double-buffering; request single buffering and
    # fall back cleanly if this JAX/Mosaic build rejects pipeline_mode / Buffered(1).
    buffered = getattr(pl, "Buffered", None)
    if buffered is not None:
        try:
            out = run(buffered(1))
        except Exception:
            out = run(None)
    else:
        out = run(None)

    return jnp.transpose(out, (1, 0, 2))           # back to (L, N, D)


# ---------------------------------------------------------------------------
# Pure-JAX f32 reference (mirrors PyTorch semantics) for correctness check
# ---------------------------------------------------------------------------
def reference_block(x_lnd, params, n_head, attn_mask=None):
    L, N, D = x_lnd.shape
    dh = D // n_head

    def ln(x, w, b, eps=1e-5):
        mu = x.mean(-1, keepdims=True)
        var = ((x - mu) ** 2).mean(-1, keepdims=True)
        return (x - mu) / jnp.sqrt(var + eps) * w + b

    x = x_lnd.astype(jnp.float32)
    xn = ln(x, params["ln1_w"], params["ln1_b"])
    qkv = xn @ params["in_proj_weight"].T + params["in_proj_bias"]
    q, k, v = jnp.split(qkv, 3, axis=-1)

    def split_heads(t):                             # (L,N,D) -> (N,H,L,dh)
        return jnp.transpose(t.reshape(L, N, n_head, dh), (1, 2, 0, 3))

    q, k, v = map(split_heads, (q, k, v))
    s = jnp.einsum("nhld,nhmd->nhlm", q, k) / math.sqrt(dh)
    if attn_mask is not None:
        s = s + attn_mask
    p = jax.nn.softmax(s, axis=-1)
    o = jnp.einsum("nhlm,nhmd->nhld", p, v)
    o = jnp.transpose(o, (2, 0, 1, 3)).reshape(L, N, D)
    o = o @ params["out_proj_w"].T + params["out_proj_b"]
    x = x + o
    yn = ln(x, params["ln2_w"], params["ln2_b"])
    h = yn @ params["c_fc_w"].T + params["c_fc_b"]
    h = h * jax.nn.sigmoid(1.702 * h)
    return x + (h @ params["c_proj_w"].T + params["c_proj_b"])


# ---------------------------------------------------------------------------
def init_params(key, d_model):
    ks = jax.random.split(key, 8)
    std = 0.02
    return {
        "ln1_w": jnp.ones((d_model,), jnp.float32),
        "ln1_b": jnp.zeros((d_model,), jnp.float32),
        "in_proj_weight": std * jax.random.normal(ks[0], (3 * d_model, d_model), jnp.float32),
        "in_proj_bias": std * jax.random.normal(ks[1], (3 * d_model,), jnp.float32),
        "out_proj_w": std * jax.random.normal(ks[2], (d_model, d_model), jnp.float32),
        "out_proj_b": std * jax.random.normal(ks[3], (d_model,), jnp.float32),
        "ln2_w": jnp.ones((d_model,), jnp.float32),
        "ln2_b": jnp.zeros((d_model,), jnp.float32),
        "c_fc_w": std * jax.random.normal(ks[4], (4 * d_model, d_model), jnp.float32),
        "c_fc_b": std * jax.random.normal(ks[5], (4 * d_model,), jnp.float32),
        "c_proj_w": std * jax.random.normal(ks[6], (d_model, 4 * d_model), jnp.float32),
        "c_proj_b": std * jax.random.normal(ks[7], (d_model,), jnp.float32),
    }


if __name__ == "__main__":
    # small but TPU-friendly shapes: seq=8, batch=2, d_model=128 (lane-aligned), 4 heads
    L, N, D, H = 8, 2, 128, 4
    key = jax.random.PRNGKey(0)
    kx, kp = jax.random.split(key)

    x = jax.random.normal(kx, (L, N, D), jnp.float32)    # (seq, batch, d_model)
    params = init_params(kp, D)

    # case 1: attn_mask=None (module default) — mask input/add is elided at trace time
    out = jax.block_until_ready(residual_attention_block(x, params, H, None))
    ref = reference_block(x, params, H, None)
    assert out.shape == (L, N, D)
    assert jnp.allclose(out, ref, atol=1e-2, rtol=1e-2), "mismatch vs reference (no mask)"

    # case 2: additive causal mask (exercises the has_mask branch)
    causal = jnp.where(jnp.arange(L)[None, :] <= jnp.arange(L)[:, None],
                       0.0, -jnp.inf).astype(jnp.float32)
    out_m = jax.block_until_ready(residual_attention_block(x, params, H, causal))
    ref_m = reference_block(x, params, H, causal)
    assert jnp.allclose(out_m, ref_m, atol=1e-2, rtol=1e-2), "mismatch vs reference (mask)"

    print("KERNEL_OK")
</pallas_src>

<mosaic_0001>
module attributes {stable_mosaic.version = 11 : i64} {
  func.func @residual_block_kernel(%arg0: i32, %arg1: memref<1x8x128xf32, #tpu.memory_space<vmem>>, %arg2: memref<1x128xf32, #tpu.memory_space<vmem>>, %arg3: memref<1x128xf32, #tpu.memory_space<vmem>>, %arg4: memref<128x384xbf16, #tpu.memory_space<vmem>>, %arg5: memref<1x384xf32, #tpu.memory_space<vmem>>, %arg6: memref<128x128xbf16, #tpu.memory_space<vmem>>, %arg7: memref<1x128xf32, #tpu.memory_space<vmem>>, %arg8: memref<1x128xf32, #tpu.memory_space<vmem>>, %arg9: memref<1x128xf32, #tpu.memory_space<vmem>>, %arg10: memref<128x512xbf16, #tpu.memory_space<vmem>>, %arg11: memref<1x512xf32, #tpu.memory_space<vmem>>, %arg12: memref<512x128xbf16, #tpu.memory_space<vmem>>, %arg13: memref<1x128xf32, #tpu.memory_space<vmem>>, %arg14: memref<1x8x128xf32, #tpu.memory_space<vmem>>, %arg15: memref<8x128xbf16, #tpu.memory_space<vmem>>) attributes {dimension_semantics = [#tpu.dimension_semantics<parallel>], iteration_bounds = array<i64: 2>, scalar_prefetch = 0 : i64, scratch_operands = 1 : i64, tpu.core_type = #tpu.core_type<tc>, window_params = [{transform_indices = @transform_0, window_bounds = array<i64: 1, 8, 128>}, {pipeline_mode = #tpu.pipeline_mode<synchronous>, transform_indices = @transform_1, window_bounds = array<i64: 1, 128>}, {pipeline_mode = #tpu.pipeline_mode<synchronous>, transform_indices = @transform_2, window_bounds = array<i64: 1, 128>}, {pipeline_mode = #tpu.pipeline_mode<synchronous>, transform_indices = @transform_3, window_bounds = array<i64: 128, 384>}, {pipeline_mode = #tpu.pipeline_mode<synchronous>, transform_indices = @transform_4, window_bounds = array<i64: 1, 384>}, {pipeline_mode = #tpu.pipeline_mode<synchronous>, transform_indices = @transform_5, window_bounds = array<i64: 128, 128>}, {pipeline_mode = #tpu.pipeline_mode<synchronous>, transform_indices = @transform_6, window_bounds = array<i64: 1, 128>}, {pipeline_mode = #tpu.pipeline_mode<synchronous>, transform_indices = @transform_7, window_bounds = array<i64: 1, 128>}, {pipeline_mode = #tpu.pipeline_mode<synchronous>, transform_indices = @transform_8, window_bounds = array<i64: 1, 128>}, {pipeline_mode = #tpu.pipeline_mode<synchronous>, transform_indices = @transform_9, window_bounds = array<i64: 128, 512>}, {pipeline_mode = #tpu.pipeline_mode<synchronous>, transform_indices = @transform_10, window_bounds = array<i64: 1, 512>}, {pipeline_mode = #tpu.pipeline_mode<synchronous>, transform_indices = @transform_11, window_bounds = array<i64: 512, 128>}, {pipeline_mode = #tpu.pipeline_mode<synchronous>, transform_indices = @transform_12, window_bounds = array<i64: 1, 128>}, {transform_indices = @transform_13, window_bounds = array<i64: 1, 8, 128>}]} {
    %c0 = arith.constant 0 : index
    %c0_0 = arith.constant 0 : index
    %c0_1 = arith.constant 0 : index
    %0 = vector.load %arg1[%c0, %c0_0, %c0_1] : memref<1x8x128xf32, #tpu.memory_space<vmem>>, vector<1x8x128xf32>
    %1 = vector.shape_cast %0 : vector<1x8x128xf32> to vector<8x128xf32>
    %c0_2 = arith.constant 0 : index
    %c0_3 = arith.constant 0 : index
    %2 = vector.load %arg2[%c0_2, %c0_3] : memref<1x128xf32, #tpu.memory_space<vmem>>, vector<1x128xf32>
    %c0_4 = arith.constant 0 : index
    %c0_5 = arith.constant 0 : index
    %3 = vector.load %arg3[%c0_4, %c0_5] : memref<1x128xf32, #tpu.memory_space<vmem>>, vector<1x128xf32>
    %cst = arith.constant dense<0.000000e+00> : vector<8xf32>
    %4 = vector.multi_reduction <add>, %1, %cst [1] : vector<8x128xf32> to vector<8xf32>
    %5 = vector.shape_cast %4 : vector<8xf32> to vector<8x1xf32>
    %cst_6 = arith.constant 1.280000e+02 : f32
    %6 = vector.broadcast %cst_6 : f32 to vector<8x1xf32>
    %7 = arith.divf %5, %6 : vector<8x1xf32>
    %8 = vector.broadcast %7 : vector<8x1xf32> to vector<8x128xf32>
    %9 = arith.subf %1, %8 : vector<8x128xf32>
    %10 = arith.mulf %9, %9 : vector<8x128xf32>
    %cst_7 = arith.constant dense<0.000000e+00> : vector<8xf32>
    %11 = vector.multi_reduction <add>, %10, %cst_7 [1] : vector<8x128xf32> to vector<8xf32>
    %12 = vector.shape_cast %11 : vector<8xf32> to vector<8x1xf32>
    %cst_8 = arith.constant 1.280000e+02 : f32
    %13 = vector.broadcast %cst_8 : f32 to vector<8x1xf32>
    %14 = arith.divf %12, %13 : vector<8x1xf32>
    %15 = vector.broadcast %7 : vector<8x1xf32> to vector<8x128xf32>
    %16 = arith.subf %1, %15 : vector<8x128xf32>
    %cst_9 = arith.constant 9.99999974E-6 : f32
    %17 = vector.broadcast %cst_9 : f32 to vector<8x1xf32>
    %18 = arith.addf %14, %17 : vector<8x1xf32>
    %19 = math.rsqrt %18 : vector<8x1xf32>
    %20 = vector.broadcast %19 : vector<8x1xf32> to vector<8x128xf32>
    %21 = arith.mulf %16, %20 : vector<8x128xf32>
    %22 = vector.broadcast %2 : vector<1x128xf32> to vector<8x128xf32>
    %23 = arith.mulf %21, %22 : vector<8x128xf32>
    %24 = vector.broadcast %3 : vector<1x128xf32> to vector<8x128xf32>
    %25 = arith.addf %23, %24 : vector<8x128xf32>
    %26 = arith.truncf %25 : vector<8x128xf32> to vector<8x128xbf16>
    %c0_10 = arith.constant 0 : index
    %c0_11 = arith.constant 0 : index
    %27 = vector.load %arg4[%c0_10, %c0_11] : memref<128x384xbf16, #tpu.memory_space<vmem>>, vector<128x384xbf16>
    %cst_12 = arith.constant dense<0.000000e+00> : vector<8x384xf32>
    %28 = tpu.matmul %26, %27, %cst_12 {dimension_numbers = #tpu.dot_dimension_numbers<[1], [0], [0], [1], [0, 0, 1, 1], [], []>} : vector<8x128xbf16>, vector<128x384xbf16>, vector<8x384xf32> -> vector<8x384xf32>
    %c0_13 = arith.constant 0 : index
    %c0_14 = arith.constant 0 : index
    %29 = vector.load %arg5[%c0_13, %c0_14] : memref<1x384xf32, #tpu.memory_space<vmem>>, vector<1x384xf32>
    %30 = vector.broadcast %29 : vector<1x384xf32> to vector<8x384xf32>
    %31 = arith.addf %28, %30 : vector<8x384xf32>
    %32 = vector.extract_strided_slice %31 {offsets = [0, 0], sizes = [8, 128], strides = [1, 1]} : vector<8x384xf32> to vector<8x128xf32>
    %cst_15 = arith.constant 0.176776692 : f32
    %33 = vector.broadcast %cst_15 : f32 to vector<8x128xf32>
    %34 = arith.mulf %32, %33 : vector<8x128xf32>
    %35 = vector.extract_strided_slice %31 {offsets = [0, 128], sizes = [8, 128], strides = [1, 1]} : vector<8x384xf32> to vector<8x128xf32>
    %36 = arith.truncf %35 : vector<8x128xf32> to vector<8x128xbf16>
    %37 = vector.extract_strided_slice %31 {offsets = [0, 256], sizes = [8, 128], strides = [1, 1]} : vector<8x384xf32> to vector<8x128xf32>
    %38 = arith.truncf %37 : vector<8x128xf32> to vector<8x128xbf16>
    %39 = vector.extract_strided_slice %34 {offsets = [0, 0], sizes = [8, 32], strides = [1, 1]} : vector<8x128xf32> to vector<8x32xf32>
    %40 = arith.truncf %39 : vector<8x32xf32> to vector<8x32xbf16>
    %41 = vector.extract_strided_slice %36 {offsets = [0, 0], sizes = [8, 32], strides = [1, 1]} : vector<8x128xbf16> to vector<8x32xbf16>
    "tpu.trace_start"() <{level = 10 : i32, message = "qd,kd->qk"}> : () -> ()
    %cst_16 = arith.constant dense<0.000000e+00> : vector<8x8xf32>
    %42 = tpu.matmul %40, %41, %cst_16 {dimension_numbers = #tpu.dot_dimension_numbers<[1], [1], [0], [0], [0, 0, 1, 0], [], []>} : vector<8x32xbf16>, vector<8x32xbf16>, vector<8x8xf32> -> vector<8x8xf32>
    "tpu.trace_stop"() : () -> ()
    %cst_17 = arith.constant dense<0xFF800000> : vector<8xf32>
    %43 = vector.multi_reduction <maximumf>, %42, %cst_17 [1] : vector<8x8xf32> to vector<8xf32>
    %44 = vector.shape_cast %43 : vector<8xf32> to vector<8x1xf32>
    %45 = vector.broadcast %44 : vector<8x1xf32> to vector<8x8xf32>
    %46 = arith.subf %42, %45 : vector<8x8xf32>
    %47 = math.exp %46 : vector<8x8xf32>
    %cst_18 = arith.constant dense<0.000000e+00> : vector<8xf32>
    %48 = vector.multi_reduction <add>, %47, %cst_18 [1] : vector<8x8xf32> to vector<8xf32>
    %49 = vector.shape_cast %48 : vector<8xf32> to vector<8x1xf32>
    %50 = tpu.reciprocal %49 {approx = true} : vector<8x1xf32> -> vector<8x1xf32>
    %51 = vector.broadcast %50 : vector<8x1xf32> to vector<8x8xf32>
    %52 = arith.mulf %47, %51 : vector<8x8xf32>
    %53 = arith.truncf %52 : vector<8x8xf32> to vector<8x8xbf16>
    %54 = vector.extract_strided_slice %38 {offsets = [0, 0], sizes = [8, 32], strides = [1, 1]} : vector<8x128xbf16> to vector<8x32xbf16>
    %cst_19 = arith.constant dense<0.000000e+00> : vector<8x32xf32>
    %55 = tpu.matmul %53, %54, %cst_19 {dimension_numbers = #tpu.dot_dimension_numbers<[1], [0], [0], [1], [0, 0, 1, 1], [], []>} : vector<8x8xbf16>, vector<8x32xbf16>, vector<8x32xf32> -> vector<8x32xf32>
    %56 = arith.truncf %55 : vector<8x32xf32> to vector<8x32xbf16>
    %c0_20 = arith.constant 0 : index
    %c0_21 = arith.constant 0 : index
    %57 = vector.load %arg15[%c0_20, %c0_21] : memref<8x128xbf16, #tpu.memory_space<vmem>>, vector<8x32xbf16>
    tpu.vector_store %arg15[%c0_20, %c0_21], %56 {strides = array<i32>} : memref<8x128xbf16, #tpu.memory_space<vmem>>, vector<8x32xbf16>,
    %58 = vector.extract_strided_slice %34 {offsets = [0, 32], sizes = [8, 32], strides = [1, 1]} : vector<8x128xf32> to vector<8x32xf32>
    %59 = arith.truncf %58 : vector<8x32xf32> to vector<8x32xbf16>
    %60 = vector.extract_strided_slice %36 {offsets = [0, 32], sizes = [8, 32], strides = [1, 1]} : vector<8x128xbf16> to vector<8x32xbf16>
    "tpu.trace_start"() <{level = 10 : i32, message = "qd,kd->qk"}> : () -> ()
    %cst_22 = arith.constant dense<0.000000e+00> : vector<8x8xf32>
    %61 = tpu.matmul %59, %60, %cst_22 {dimension_numbers = #tpu.dot_dimension_numbers<[1], [1], [0], [0], [0, 0, 1, 0], [], []>} : vector<8x32xbf16>, vector<8x32xbf16>, vector<8x8xf32> -> vector<8x8xf32>
    "tpu.trace_stop"() : () -> ()
    %cst_23 = arith.constant dense<0xFF800000> : vector<8xf32>
    %62 = vector.multi_reduction <maximumf>, %61, %cst_23 [1] : vector<8x8xf32> to vector<8xf32>
    %63 = vector.shape_cast %62 : vector<8xf32> to vector<8x1xf32>
    %64 = vector.broadcast %63 : vector<8x1xf32> to vector<8x8xf32>
    %65 = arith.subf %61, %64 : vector<8x8xf32>
    %66 = math.exp %65 : vector<8x8xf32>
    %cst_24 = arith.constant dense<0.000000e+00> : vector<8xf32>
    %67 = vector.multi_reduction <add>, %66, %cst_24 [1] : vector<8x8xf32> to vector<8xf32>
    %68 = vector.shape_cast %67 : vector<8xf32> to vector<8x1xf32>
    %69 = tpu.reciprocal %68 {approx = true} : vector<8x1xf32> -> vector<8x1xf32>
    %70 = vector.broadcast %69 : vector<8x1xf32> to vector<8x8xf32>
    %71 = arith.mulf %66, %70 : vector<8x8xf32>
    %72 = arith.truncf %71 : vector<8x8xf32> to vector<8x8xbf16>
    %73 = vector.extract_strided_slice %38 {offsets = [0, 32], sizes = [8, 32], strides = [1, 1]} : vector<8x128xbf16> to vector<8x32xbf16>
    %cst_25 = arith.constant dense<0.000000e+00> : vector<8x32xf32>
    %74 = tpu.matmul %72, %73, %cst_25 {dimension_numbers = #tpu.dot_dimension_numbers<[1], [0], [0], [1], [0, 0, 1, 1], [], []>} : vector<8x8xbf16>, vector<8x32xbf16>, vector<8x32xf32> -> vector<8x32xf32>
    %75 = arith.truncf %74 : vector<8x32xf32> to vector<8x32xbf16>
    %c0_26 = arith.constant 0 : index
    %c32 = arith.constant 32 : index
    %76 = vector.load %arg15[%c0_26, %c32] : memref<8x128xbf16, #tpu.memory_space<vmem>>, vector<8x32xbf16>
    tpu.vector_store %arg15[%c0_26, %c32], %75 {strides = array<i32>} : memref<8x128xbf16, #tpu.memory_space<vmem>>, vector<8x32xbf16>,
    %77 = vector.extract_strided_slice %34 {offsets = [0, 64], sizes = [8, 32], strides = [1, 1]} : vector<8x128xf32> to vector<8x32xf32>
    %78 = arith.truncf %77 : vector<8x32xf32> to vector<8x32xbf16>
    %79 = vector.extract_strided_slice %36 {offsets = [0, 64], sizes = [8, 32], strides = [1, 1]} : vector<8x128xbf16> to vector<8x32xbf16>
    "tpu.trace_start"() <{level = 10 : i32, message = "qd,kd->qk"}> : () -> ()
    %cst_27 = arith.constant dense<0.000000e+00> : vector<8x8xf32>
    %80 = tpu.matmul %78, %79, %cst_27 {dimension_numbers = #tpu.dot_dimension_numbers<[1], [1], [0], [0], [0, 0, 1, 0], [], []>} : vector<8x32xbf16>, vector<8x32xbf16>, vector<8x8xf32> -> vector<8x8xf32>
    "tpu.trace_stop"() : () -> ()
    %cst_28 = arith.constant dense<0xFF800000> : vector<8xf32>
    %81 = vector.multi_reduction <maximumf>, %80, %cst_28 [1] : vector<8x8xf32> to vector<8xf32>
    %82 = vector.shape_cast %81 : vector<8xf32> to vector<8x1xf32>
    %83 = vector.broadcast %82 : vector<8x1xf32> to vector<8x8xf32>
    %84 = arith.subf %80, %83 : vector<8x8xf32>
    %85 = math.exp %84 : vector<8x8xf32>
    %cst_29 = arith.constant dense<0.000000e+00> : vector<8xf32>
    %86 = vector.multi_reduction <add>, %85, %cst_29 [1] : vector<8x8xf32> to vector<8xf32>
    %87 = vector.shape_cast %86 : vector<8xf32> to vector<8x1xf32>
    %88 = tpu.reciprocal %87 {approx = true} : vector<8x1xf32> -> vector<8x1xf32>
    %89 = vector.broadcast %88 : vector<8x1xf32> to vector<8x8xf32>
    %90 = arith.mulf %85, %89 : vector<8x8xf32>
    %91 = arith.truncf %90 : vector<8x8xf32> to vector<8x8xbf16>
    %92 = vector.extract_strided_slice %38 {offsets = [0, 64], sizes = [8, 32], strides = [1, 1]} : vector<8x128xbf16> to vector<8x32xbf16>
    %cst_30 = arith.constant dense<0.000000e+00> : vector<8x32xf32>
    %93 = tpu.matmul %91, %92, %cst_30 {dimension_numbers = #tpu.dot_dimension_numbers<[1], [0], [0], [1], [0, 0, 1, 1], [], []>} : vector<8x8xbf16>, vector<8x32xbf16>, vector<8x32xf32> -> vector<8x32xf32>
    %94 = arith.truncf %93 : vector<8x32xf32> to vector<8x32xbf16>
    %c0_31 = arith.constant 0 : index
    %c64 = arith.constant 64 : index
    %95 = vector.load %arg15[%c0_31, %c64] : memref<8x128xbf16, #tpu.memory_space<vmem>>, vector<8x32xbf16>
    tpu.vector_store %arg15[%c0_31, %c64], %94 {strides = array<i32>} : memref<8x128xbf16, #tpu.memory_space<vmem>>, vector<8x32xbf16>,
    %96 = vector.extract_strided_slice %34 {offsets = [0, 96], sizes = [8, 32], strides = [1, 1]} : vector<8x128xf32> to vector<8x32xf32>
    %97 = arith.truncf %96 : vector<8x32xf32> to vector<8x32xbf16>
    %98 = vector.extract_strided_slice %36 {offsets = [0, 96], sizes = [8, 32], strides = [1, 1]} : vector<8x128xbf16> to vector<8x32xbf16>
    "tpu.trace_start"() <{level = 10 : i32, message = "qd,kd->qk"}> : () -> ()
    %cst_32 = arith.constant dense<0.000000e+00> : vector<8x8xf32>
    %99 = tpu.matmul %97, %98, %cst_32 {dimension_numbers = #tpu.dot_dimension_numbers<[1], [1], [0], [0], [0, 0, 1, 0], [], []>} : vector<8x32xbf16>, vector<8x32xbf16>, vector<8x8xf32> -> vector<8x8xf32>
    "tpu.trace_stop"() : () -> ()
    %cst_33 = arith.constant dense<0xFF800000> : vector<8xf32>
    %100 = vector.multi_reduction <maximumf>, %99, %cst_33 [1] : vector<8x8xf32> to vector<8xf32>
    %101 = vector.shape_cast %100 : vector<8xf32> to vector<8x1xf32>
    %102 = vector.broadcast %101 : vector<8x1xf32> to vector<8x8xf32>
    %103 = arith.subf %99, %102 : vector<8x8xf32>
    %104 = math.exp %103 : vector<8x8xf32>
    %cst_34 = arith.constant dense<0.000000e+00> : vector<8xf32>
    %105 = vector.multi_reduction <add>, %104, %cst_34 [1] : vector<8x8xf32> to vector<8xf32>
    %106 = vector.shape_cast %105 : vector<8xf32> to vector<8x1xf32>
    %107 = tpu.reciprocal %106 {approx = true} : vector<8x1xf32> -> vector<8x1xf32>
    %108 = vector.broadcast %107 : vector<8x1xf32> to vector<8x8xf32>
    %109 = arith.mulf %104, %108 : vector<8x8xf32>
    %110 = arith.truncf %109 : vector<8x8xf32> to vector<8x8xbf16>
    %111 = vector.extract_strided_slice %38 {offsets = [0, 96], sizes = [8, 32], strides = [1, 1]} : vector<8x128xbf16> to vector<8x32xbf16>
    %cst_35 = arith.constant dense<0.000000e+00> : vector<8x32xf32>
    %112 = tpu.matmul %110, %111, %cst_35 {dimension_numbers = #tpu.dot_dimension_numbers<[1], [0], [0], [1], [0, 0, 1, 1], [], []>} : vector<8x8xbf16>, vector<8x32xbf16>, vector<8x32xf32> -> vector<8x32xf32>
    %113 = arith.truncf %112 : vector<8x32xf32> to vector<8x32xbf16>
    %c0_36 = arith.constant 0 : index
    %c96 = arith.constant 96 : index
    %114 = vector.load %arg15[%c0_36, %c96] : memref<8x128xbf16, #tpu.memory_space<vmem>>, vector<8x32xbf16>
    tpu.vector_store %arg15[%c0_36, %c96], %113 {strides = array<i32>} : memref<8x128xbf16, #tpu.memory_space<vmem>>, vector<8x32xbf16>,
    %c0_37 = arith.constant 0 : index
    %c0_38 = arith.constant 0 : index
    %115 = vector.load %arg15[%c0_37, %c0_38] : memref<8x128xbf16, #tpu.memory_space<vmem>>, vector<8x128xbf16>
    %c0_39 = arith.constant 0 : index
    %c0_40 = arith.constant 0 : index
    %116 = vector.load %arg6[%c0_39, %c0_40] : memref<128x128xbf16, #tpu.memory_space<vmem>>, vector<128x128xbf16>
    %cst_41 = arith.constant dense<0.000000e+00> : vector<8x128xf32>
    %117 = tpu.matmul %115, %116, %cst_41 {dimension_numbers = #tpu.dot_dimension_numbers<[1], [0], [0], [1], [0, 0, 1, 1], [], []>} : vector<8x128xbf16>, vector<128x128xbf16>, vector<8x128xf32> -> vector<8x128xf32>
    %c0_42 = arith.constant 0 : index
    %c0_43 = arith.constant 0 : index
    %118 = vector.load %arg7[%c0_42, %c0_43] : memref<1x128xf32, #tpu.memory_space<vmem>>, vector<1x128xf32>
    %119 = vector.broadcast %118 : vector<1x128xf32> to vector<8x128xf32>
    %120 = arith.addf %117, %119 : vector<8x128xf32>
    %121 = arith.addf %1, %120 : vector<8x128xf32>
    %c0_44 = arith.constant 0 : index
    %c0_45 = arith.constant 0 : index
    %122 = vector.load %arg8[%c0_44, %c0_45] : memref<1x128xf32, #tpu.memory_space<vmem>>, vector<1x128xf32>
    %c0_46 = arith.constant 0 : index
    %c0_47 = arith.constant 0 : index
    %123 = vector.load %arg9[%c0_46, %c0_47] : memref<1x128xf32, #tpu.memory_space<vmem>>, vector<1x128xf32>
    %cst_48 = arith.constant dense<0.000000e+00> : vector<8xf32>
    %124 = vector.multi_reduction <add>, %121, %cst_48 [1] : vector<8x128xf32> to vector<8xf32>
    %125 = vector.shape_cast %124 : vector<8xf32> to vector<8x1xf32>
    %cst_49 = arith.constant 1.280000e+02 : f32
    %126 = vector.broadcast %cst_49 : f32 to vector<8x1xf32>
    %127 = arith.divf %125, %126 : vector<8x1xf32>
    %128 = vector.broadcast %127 : vector<8x1xf32> to vector<8x128xf32>
    %129 = arith.subf %121, %128 : vector<8x128xf32>
    %130 = arith.mulf %129, %129 : vector<8x128xf32>
    %cst_50 = arith.constant dense<0.000000e+00> : vector<8xf32>
    %131 = vector.multi_reduction <add>, %130, %cst_50 [1] : vector<8x128xf32> to vector<8xf32>
    %132 = vector.shape_cast %131 : vector<8xf32> to vector<8x1xf32>
    %cst_51 = arith.constant 1.280000e+02 : f32
    %133 = vector.broadcast %cst_51 : f32 to vector<8x1xf32>
    %134 = arith.divf %132, %133 : vector<8x1xf32>
    %135 = vector.broadcast %127 : vector<8x1xf32> to vector<8x128xf32>
    %136 = arith.subf %121, %135 : vector<8x128xf32>
    %cst_52 = arith.constant 9.99999974E-6 : f32
    %137 = vector.broadcast %cst_52 : f32 to vector<8x1xf32>
    %138 = arith.addf %134, %137 : vector<8x1xf32>
    %139 = math.rsqrt %138 : vector<8x1xf32>
    %140 = vector.broadcast %139 : vector<8x1xf32> to vector<8x128xf32>
    %141 = arith.mulf %136, %140 : vector<8x128xf32>
    %142 = vector.broadcast %122 : vector<1x128xf32> to vector<8x128xf32>
    %143 = arith.mulf %141, %142 : vector<8x128xf32>
    %144 = vector.broadcast %123 : vector<1x128xf32> to vector<8x128xf32>
    %145 = arith.addf %143, %144 : vector<8x128xf32>
    %146 = arith.truncf %145 : vector<8x128xf32> to vector<8x128xbf16>
    %c0_53 = arith.constant 0 : index
    %c0_54 = arith.constant 0 : index
    %147 = vector.load %arg10[%c0_53, %c0_54] : memref<128x512xbf16, #tpu.memory_space<vmem>>, vector<128x512xbf16>
    %cst_55 = arith.constant dense<0.000000e+00> : vector<8x512xf32>
    %148 = tpu.matmul %146, %147, %cst_55 {dimension_numbers = #tpu.dot_dimension_numbers<[1], [0], [0], [1], [0, 0, 1, 1], [], []>} : vector<8x128xbf16>, vector<128x512xbf16>, vector<8x512xf32> -> vector<8x512xf32>
    %c0_56 = arith.constant 0 : index
    %c0_57 = arith.constant 0 : index
    %149 = vector.load %arg11[%c0_56, %c0_57] : memref<1x512xf32, #tpu.memory_space<vmem>>, vector<1x512xf32>
    %150 = vector.broadcast %149 : vector<1x512xf32> to vector<8x512xf32>
    %151 = arith.addf %148, %150 : vector<8x512xf32>
    %cst_58 = arith.constant 1.702000e+00 : f32
    %152 = vector.broadcast %cst_58 : f32 to vector<8x512xf32>
    %153 = arith.mulf %152, %151 : vector<8x512xf32>
    %154 = arith.negf %153 : vector<8x512xf32>
    %155 = math.exp %154 : vector<8x512xf32>
    %cst_59 = arith.constant 1.000000e+00 : f32
    %156 = vector.broadcast %cst_59 : f32 to vector<8x512xf32>
    %157 = arith.addf %156, %155 : vector<8x512xf32>
    %158 = arith.divf %156, %157 : vector<8x512xf32>
    %159 = arith.mulf %151, %158 : vector<8x512xf32>
    %160 = arith.truncf %159 : vector<8x512xf32> to vector<8x512xbf16>
    %c0_60 = arith.constant 0 : index
    %c0_61 = arith.constant 0 : index
    %161 = vector.load %arg12[%c0_60, %c0_61] : memref<512x128xbf16, #tpu.memory_space<vmem>>, vector<512x128xbf16>
    %cst_62 = arith.constant dense<0.000000e+00> : vector<8x128xf32>
    %162 = tpu.matmul %160, %161, %cst_62 {dimension_numbers = #tpu.dot_dimension_numbers<[1], [0], [0], [1], [0, 0, 1, 1], [], []>} : vector<8x512xbf16>, vector<512x128xbf16>, vector<8x128xf32> -> vector<8x128xf32>
    %c0_63 = arith.constant 0 : index
    %c0_64 = arith.constant 0 : index
    %163 = vector.load %arg13[%c0_63, %c0_64] : memref<1x128xf32, #tpu.memory_space<vmem>>, vector<1x128xf32>
    %164 = vector.broadcast %163 : vector<1x128xf32> to vector<8x128xf32>
    %165 = arith.addf %162, %164 : vector<8x128xf32>
    %166 = arith.addf %121, %165 : vector<8x128xf32>
    %c0_65 = arith.constant 0 : index
    %c0_66 = arith.constant 0 : index
    %c0_67 = arith.constant 0 : index
    %167 = vector.load %arg14[%c0_65, %c0_66, %c0_67] : memref<1x8x128xf32, #tpu.memory_space<vmem>>, vector<1x8x128xf32>
    %168 = vector.shape_cast %167 : vector<1x8x128xf32> to vector<8x128xf32>
    %169 = vector.shape_cast %166 : vector<8x128xf32> to vector<1x8x128xf32>
    tpu.vector_store %arg14[%c0_65, %c0_66, %c0_67], %169 {strides = array<i32>} : memref<1x8x128xf32, #tpu.memory_space<vmem>>, vector<1x8x128xf32>,
    return
  }
  func.func @transform_0(%arg0: i32) -> (i32, i32, i32) {
    %c0_i32 = arith.constant 0 : i32
    %c0_i32_0 = arith.constant 0 : i32
    %c0_i32_1 = arith.constant 0 : i32
    return %arg0, %c0_i32, %c0_i32_0 : i32, i32, i32
  }
  func.func @transform_1(%arg0: i32) -> (i32, i32) {
    %c0_i32 = arith.constant 0 : i32
    %c0_i32_0 = arith.constant 0 : i32
    %c0_i32_1 = arith.constant 0 : i32
    return %c0_i32, %c0_i32_0 : i32, i32
  }
  func.func @transform_2(%arg0: i32) -> (i32, i32) {
    %c0_i32 = arith.constant 0 : i32
    %c0_i32_0 = arith.constant 0 : i32
    %c0_i32_1 = arith.constant 0 : i32
    return %c0_i32, %c0_i32_0 : i32, i32
  }
  func.func @transform_3(%arg0: i32) -> (i32, i32) {
    %c0_i32 = arith.constant 0 : i32
    %c0_i32_0 = arith.constant 0 : i32
    %c0_i32_1 = arith.constant 0 : i32
    return %c0_i32, %c0_i32_0 : i32, i32
  }
  func.func @transform_4(%arg0: i32) -> (i32, i32) {
    %c0_i32 = arith.constant 0 : i32
    %c0_i32_0 = arith.constant 0 : i32
    %c0_i32_1 = arith.constant 0 : i32
    return %c0_i32, %c0_i32_0 : i32, i32
  }
  func.func @transform_5(%arg0: i32) -> (i32, i32) {
    %c0_i32 = arith.constant 0 : i32
    %c0_i32_0 = arith.constant 0 : i32
    %c0_i32_1 = arith.constant 0 : i32
    return %c0_i32, %c0_i32_0 : i32, i32
  }
  func.func @transform_6(%arg0: i32) -> (i32, i32) {
    %c0_i32 = arith.constant 0 : i32
    %c0_i32_0 = arith.constant 0 : i32
    %c0_i32_1 = arith.constant 0 : i32
    return %c0_i32, %c0_i32_0 : i32, i32
  }
  func.func @transform_7(%arg0: i32) -> (i32, i32) {
    %c0_i32 = arith.constant 0 : i32
    %c0_i32_0 = arith.constant 0 : i32
    %c0_i32_1 = arith.constant 0 : i32
    return %c0_i32, %c0_i32_0 : i32, i32
  }
  func.func @transform_8(%arg0: i32) -> (i32, i32) {
    %c0_i32 = arith.constant 0 : i32
    %c0_i32_0 = arith.constant 0 : i32
    %c0_i32_1 = arith.constant 0 : i32
    return %c0_i32, %c0_i32_0 : i32, i32
  }
  func.func @transform_9(%arg0: i32) -> (i32, i32) {
    %c0_i32 = arith.constant 0 : i32
    %c0_i32_0 = arith.constant 0 : i32
    %c0_i32_1 = arith.constant 0 : i32
    return %c0_i32, %c0_i32_0 : i32, i32
  }
  func.func @transform_10(%arg0: i32) -> (i32, i32) {
    %c0_i32 = arith.constant 0 : i32
    %c0_i32_0 = arith.constant 0 : i32
    %c0_i32_1 = arith.constant 0 : i32
    return %c0_i32, %c0_i32_0 : i32, i32
  }
  func.func @transform_11(%arg0: i32) -> (i32, i32) {
    %c0_i32 = arith.constant 0 : i32
    %c0_i32_0 = arith.constant 0 : i32
    %c0_i32_1 = arith.constant 0 : i32
    return %c0_i32, %c0_i32_0 : i32, i32
  }
  func.func @transform_12(%arg0: i32) -> (i32, i32) {
    %c0_i32 = arith.constant 0 : i32
    %c0_i32_0 = arith.constant 0 : i32
    %c0_i32_1 = arith.constant 0 : i32
    return %c0_i32, %c0_i32_0 : i32, i32
  }
  func.func @transform_13(%arg0: i32) -> (i32, i32, i32) {
    %c0_i32 = arith.constant 0 : i32
    %c0_i32_0 = arith.constant 0 : i32
    %c0_i32_1 = arith.constant 0 : i32
    return %arg0, %c0_i32, %c0_i32_0 : i32, i32, i32
  }
}

module attributes {stable_mosaic.version = 11 : i64} {
  func.func @residual_block_kernel(%arg0: i32, %arg1: memref<1x8x128xf32, #tpu.memory_space<vmem>>, %arg2: memref<1x128xf32, #tpu.memory_space<vmem>>, %arg3: memref<1x128xf32, #tpu.memory_space<vmem>>, %arg4: memref<128x384xbf16, #tpu.memory_space<vmem>>, %arg5: memref<1x384xf32, #tpu.memory_space<vmem>>, %arg6: memref<128x128xbf16, #tpu.memory_space<vmem>>, %arg7: memref<1x128xf32, #tpu.memory_space<vmem>>, %arg8: memref<1x128xf32, #tpu.memory_space<vmem>>, %arg9: memref<1x128xf32, #tpu.memory_space<vmem>>, %arg10: memref<128x512xbf16, #tpu.memory_space<vmem>>, %arg11: memref<1x512xf32, #tpu.memory_space<vmem>>, %arg12: memref<512x128xbf16, #tpu.memory_space<vmem>>, %arg13: memref<1x128xf32, #tpu.memory_space<vmem>>, %arg14: memref<1x8x128xf32, #tpu.memory_space<vmem>>, %arg15: memref<8x128xbf16, #tpu.memory_space<vmem>>) attributes {dimension_semantics = [#tpu.dimension_semantics<parallel>], iteration_bounds = array<i64: 2>, scalar_prefetch = 0 : i64, scratch_operands = 1 : i64, tpu.core_type = #tpu.core_type<tc>, window_params = [{transform_indices = @transform_0, window_bounds = array<i64: 1, 8, 128>}, {pipeline_mode = #tpu.pipeline_mode<synchronous>, transform_indices = @transform_1, window_bounds = array<i64: 1, 128>}, {pipeline_mode = #tpu.pipeline_mode<synchronous>, transform_indices = @transform_2, window_bounds = array<i64: 1, 128>}, {pipeline_mode = #tpu.pipeline_mode<synchronous>, transform_indices = @transform_3, window_bounds = array<i64: 128, 384>}, {pipeline_mode = #tpu.pipeline_mode<synchronous>, transform_indices = @transform_4, window_bounds = array<i64: 1, 384>}, {pipeline_mode = #tpu.pipeline_mode<synchronous>, transform_indices = @transform_5, window_bounds = array<i64: 128, 128>}, {pipeline_mode = #tpu.pipeline_mode<synchronous>, transform_indices = @transform_6, window_bounds = array<i64: 1, 128>}, {pipeline_mode = #tpu.pipeline_mode<synchronous>, transform_indices = @transform_7, window_bounds = array<i64: 1, 128>}, {pipeline_mode = #tpu.pipeline_mode<synchronous>, transform_indices = @transform_8, window_bounds = array<i64: 1, 128>}, {pipeline_mode = #tpu.pipeline_mode<synchronous>, transform_indices = @transform_9, window_bounds = array<i64: 128, 512>}, {pipeline_mode = #tpu.pipeline_mode<synchronous>, transform_indices = @transform_10, window_bounds = array<i64: 1, 512>}, {pipeline_mode = #tpu.pipeline_mode<synchronous>, transform_indices = @transform_11, window_bounds = array<i64: 512, 128>}, {pipeline_mode = #tpu.pipeline_mode<synchronous>, transform_indices = @transform_12, window_bounds = array<i64: 1, 128>}, {transform_indices = @transform_13, window_bounds = array<i64: 1, 8, 128>}]} {
    %c0 = arith.constant 0 : index
    %c0_0 = arith.constant 0 : index
    %c0_1 = arith.constant 0 : index
    %0 = vector.load %arg1[%c0, %c0_0, %c0_1] : memref<1x8x128xf32, #tpu.memory_space<vmem>>, vector<1x8x128xf32>
    %1 = vector.shape_cast %0 : vector<1x8x128xf32> to vector<8x128xf32>
    %c0_2 = arith.constant 0 : index
    %c0_3 = arith.constant 0 : index
    %2 = vector.load %arg2[%c0_2, %c0_3] : memref<1x128xf32, #tpu.memory_space<vmem>>, vector<1x128xf32>
    %c0_4 = arith.constant 0 : index
    %c0_5 = arith.constant 0 : index
    %3 = vector.load %arg3[%c0_4, %c0_5] : memref<1x128xf32, #tpu.memory_space<vmem>>, vector<1x128xf32>
    %cst = arith.constant dense<0.000000e+00> : vector<8xf32>
    %4 = vector.multi_reduction <add>, %1, %cst [1] : vector<8x128xf32> to vector<8xf32>
    %5 = vector.shape_cast %4 : vector<8xf32> to vector<8x1xf32>
    %cst_6 = arith.constant 1.280000e+02 : f32
    %6 = vector.broadcast %cst_6 : f32 to vector<8x1xf32>
    %7 = arith.divf %5, %6 : vector<8x1xf32>
    %8 = vector.broadcast %7 : vector<8x1xf32> to vector<8x128xf32>
    %9 = arith.subf %1, %8 : vector<8x128xf32>
    %10 = arith.mulf %9, %9 : vector<8x128xf32>
    %cst_7 = arith.constant dense<0.000000e+00> : vector<8xf32>
    %11 = vector.multi_reduction <add>, %10, %cst_7 [1] : vector<8x128xf32> to vector<8xf32>
    %12 = vector.shape_cast %11 : vector<8xf32> to vector<8x1xf32>
    %cst_8 = arith.constant 1.280000e+02 : f32
    %13 = vector.broadcast %cst_8 : f32 to vector<8x1xf32>
    %14 = arith.divf %12, %13 : vector<8x1xf32>
    %15 = vector.broadcast %7 : vector<8x1xf32> to vector<8x128xf32>
    %16 = arith.subf %1, %15 : vector<8x128xf32>
    %cst_9 = arith.constant 9.99999974E-6 : f32
    %17 = vector.broadcast %cst_9 : f32 to vector<8x1xf32>
    %18 = arith.addf %14, %17 : vector<8x1xf32>
    %19 = math.rsqrt %18 : vector<8x1xf32>
    %20 = vector.broadcast %19 : vector<8x1xf32> to vector<8x128xf32>
    %21 = arith.mulf %16, %20 : vector<8x128xf32>
    %22 = vector.broadcast %2 : vector<1x128xf32> to vector<8x128xf32>
    %23 = arith.mulf %21, %22 : vector<8x128xf32>
    %24 = vector.broadcast %3 : vector<1x128xf32> to vector<8x128xf32>
    %25 = arith.addf %23, %24 : vector<8x128xf32>
    %26 = arith.truncf %25 : vector<8x128xf32> to vector<8x128xbf16>
    %c0_10 = arith.constant 0 : index
    %c0_11 = arith.constant 0 : index
    %27 = vector.load %arg4[%c0_10, %c0_11] : memref<128x384xbf16, #tpu.memory_space<vmem>>, vector<128x384xbf16>
    %cst_12 = arith.constant dense<0.000000e+00> : vector<8x384xf32>
    %28 = tpu.matmul %26, %27, %cst_12 {dimension_numbers = #tpu.dot_dimension_numbers<[1], [0], [0], [1], [0, 0, 1, 1], [], []>} : vector<8x128xbf16>, vector<128x384xbf16>, vector<8x384xf32> -> vector<8x384xf32>
    %c0_13 = arith.constant 0 : index
    %c0_14 = arith.constant 0 : index
    %29 = vector.load %arg5[%c0_13, %c0_14] : memref<1x384xf32, #tpu.memory_space<vmem>>, vector<1x384xf32>
    %30 = vector.broadcast %29 : vector<1x384xf32> to vector<8x384xf32>
    %31 = arith.addf %28, %30 : vector<8x384xf32>
    %32 = vector.extract_strided_slice %31 {offsets = [0, 0], sizes = [8, 128], strides = [1, 1]} : vector<8x384xf32> to vector<8x128xf32>
    %cst_15 = arith.constant 0.176776692 : f32
    %33 = vector.broadcast %cst_15 : f32 to vector<8x128xf32>
    %34 = arith.mulf %32, %33 : vector<8x128xf32>
    %35 = vector.extract_strided_slice %31 {offsets = [0, 128], sizes = [8, 128], strides = [1, 1]} : vector<8x384xf32> to vector<8x128xf32>
    %36 = arith.truncf %35 : vector<8x128xf32> to vector<8x128xbf16>
    %37 = vector.extract_strided_slice %31 {offsets = [0, 256], sizes = [8, 128], strides = [1, 1]} : vector<8x384xf32> to vector<8x128xf32>
    %38 = arith.truncf %37 : vector<8x128xf32> to vector<8x128xbf16>
    %39 = vector.extract_strided_slice %34 {offsets = [0, 0], sizes = [8, 32], strides = [1, 1]} : vector<8x128xf32> to vector<8x32xf32>
    %40 = arith.truncf %39 : vector<8x32xf32> to vector<8x32xbf16>
    %41 = vector.extract_strided_slice %36 {offsets = [0, 0], sizes = [8, 32], strides = [1, 1]} : vector<8x128xbf16> to vector<8x32xbf16>
    "tpu.trace_start"() <{level = 10 : i32, message = "qd,kd->qk"}> : () -> ()
    %cst_16 = arith.constant dense<0.000000e+00> : vector<8x8xf32>
    %42 = tpu.matmul %40, %41, %cst_16 {dimension_numbers = #tpu.dot_dimension_numbers<[1], [1], [0], [0], [0, 0, 1, 0], [], []>} : vector<8x32xbf16>, vector<8x32xbf16>, vector<8x8xf32> -> vector<8x8xf32>
    "tpu.trace_stop"() : () -> ()
    %cst_17 = arith.constant dense<0xFF800000> : vector<8xf32>
    %43 = vector.multi_reduction <maximumf>, %42, %cst_17 [1] : vector<8x8xf32> to vector<8xf32>
    %44 = vector.shape_cast %43 : vector<8xf32> to vector<8x1xf32>
    %45 = vector.broadcast %44 : vector<8x1xf32> to vector<8x8xf32>
    %46 = arith.subf %42, %45 : vector<8x8xf32>
    %47 = math.exp %46 : vector<8x8xf32>
    %cst_18 = arith.constant dense<0.000000e+00> : vector<8xf32>
    %48 = vector.multi_reduction <add>, %47, %cst_18 [1] : vector<8x8xf32> to vector<8xf32>
    %49 = vector.shape_cast %48 : vector<8xf32> to vector<8x1xf32>
    %50 = tpu.reciprocal %49 {approx = true} : vector<8x1xf32> -> vector<8x1xf32>
    %51 = vector.broadcast %50 : vector<8x1xf32> to vector<8x8xf32>
    %52 = arith.mulf %47, %51 : vector<8x8xf32>
    %53 = arith.truncf %52 : vector<8x8xf32> to vector<8x8xbf16>
    %54 = vector.extract_strided_slice %38 {offsets = [0, 0], sizes = [8, 32], strides = [1, 1]} : vector<8x128xbf16> to vector<8x32xbf16>
    %cst_19 = arith.constant dense<0.000000e+00> : vector<8x32xf32>
    %55 = tpu.matmul %53, %54, %cst_19 {dimension_numbers = #tpu.dot_dimension_numbers<[1], [0], [0], [1], [0, 0, 1, 1], [], []>} : vector<8x8xbf16>, vector<8x32xbf16>, vector<8x32xf32> -> vector<8x32xf32>
    %56 = arith.truncf %55 : vector<8x32xf32> to vector<8x32xbf16>
    %c0_20 = arith.constant 0 : index
    %c0_21 = arith.constant 0 : index
    %57 = vector.load %arg15[%c0_20, %c0_21] : memref<8x128xbf16, #tpu.memory_space<vmem>>, vector<8x32xbf16>
    tpu.vector_store %arg15[%c0_20, %c0_21], %56 {strides = array<i32>} : memref<8x128xbf16, #tpu.memory_space<vmem>>, vector<8x32xbf16>,
    %58 = vector.extract_strided_slice %34 {offsets = [0, 32], sizes = [8, 32], strides = [1, 1]} : vector<8x128xf32> to vector<8x32xf32>
    %59 = arith.truncf %58 : vector<8x32xf32> to vector<8x32xbf16>
    %60 = vector.extract_strided_slice %36 {offsets = [0, 32], sizes = [8, 32], strides = [1, 1]} : vector<8x128xbf16> to vector<8x32xbf16>
    "tpu.trace_start"() <{level = 10 : i32, message = "qd,kd->qk"}> : () -> ()
    %cst_22 = arith.constant dense<0.000000e+00> : vector<8x8xf32>
    %61 = tpu.matmul %59, %60, %cst_22 {dimension_numbers = #tpu.dot_dimension_numbers<[1], [1], [0], [0], [0, 0, 1, 0], [], []>} : vector<8x32xbf16>, vector<8x32xbf16>, vector<8x8xf32> -> vector<8x8xf32>
    "tpu.trace_stop"() : () -> ()
    %cst_23 = arith.constant dense<0xFF800000> : vector<8xf32>
    %62 = vector.multi_reduction <maximumf>, %61, %cst_23 [1] : vector<8x8xf32> to vector<8xf32>
    %63 = vector.shape_cast %62 : vector<8xf32> to vector<8x1xf32>
    %64 = vector.broadcast %63 : vector<8x1xf32> to vector<8x8xf32>
    %65 = arith.subf %61, %64 : vector<8x8xf32>
    %66 = math.exp %65 : vector<8x8xf32>
    %cst_24 = arith.constant dense<0.000000e+00> : vector<8xf32>
    %67 = vector.multi_reduction <add>, %66, %cst_24 [1] : vector<8x8xf32> to vector<8xf32>
    %68 = vector.shape_cast %67 : vector<8xf32> to vector<8x1xf32>
    %69 = tpu.reciprocal %68 {approx = true} : vector<8x1xf32> -> vector<8x1xf32>
    %70 = vector.broadcast %69 : vector<8x1xf32> to vector<8x8xf32>
    %71 = arith.mulf %66, %70 : vector<8x8xf32>
    %72 = arith.truncf %71 : vector<8x8xf32> to vector<8x8xbf16>
    %73 = vector.extract_strided_slice %38 {offsets = [0, 32], sizes = [8, 32], strides = [1, 1]} : vector<8x128xbf16> to vector<8x32xbf16>
    %cst_25 = arith.constant dense<0.000000e+00> : vector<8x32xf32>
    %74 = tpu.matmul %72, %73, %cst_25 {dimension_numbers = #tpu.dot_dimension_numbers<[1], [0], [0], [1], [0, 0, 1, 1], [], []>} : vector<8x8xbf16>, vector<8x32xbf16>, vector<8x32xf32> -> vector<8x32xf32>
    %75 = arith.truncf %74 : vector<8x32xf32> to vector<8x32xbf16>
    %c0_26 = arith.constant 0 : index
    %c32 = arith.constant 32 : index
    %76 = vector.load %arg15[%c0_26, %c32] : memref<8x128xbf16, #tpu.memory_space<vmem>>, vector<8x32xbf16>
    tpu.vector_store %arg15[%c0_26, %c32], %75 {strides = array<i32>} : memref<8x128xbf16, #tpu.memory_space<vmem>>, vector<8x32xbf16>,
    %77 = vector.extract_strided_slice %34 {offsets = [0, 64], sizes = [8, 32], strides = [1, 1]} : vector<8x128xf32> to vector<8x32xf32>
    %78 = arith.truncf %77 : vector<8x32xf32> to vector<8x32xbf16>
    %79 = vector.extract_strided_slice %36 {offsets = [0, 64], sizes = [8, 32], strides = [1, 1]} : vector<8x128xbf16> to vector<8x32xbf16>
    "tpu.trace_start"() <{level = 10 : i32, message = "qd,kd->qk"}> : () -> ()
    %cst_27 = arith.constant dense<0.000000e+00> : vector<8x8xf32>
    %80 = tpu.matmul %78, %79, %cst_27 {dimension_numbers = #tpu.dot_dimension_numbers<[1], [1], [0], [0], [0, 0, 1, 0], [], []>} : vector<8x32xbf16>, vector<8x32xbf16>, vector<8x8xf32> -> vector<8x8xf32>
    "tpu.trace_stop"() : () -> ()
    %cst_28 = arith.constant dense<0xFF800000> : vector<8xf32>
    %81 = vector.multi_reduction <maximumf>, %80, %cst_28 [1] : vector<8x8xf32> to vector<8xf32>
    %82 = vector.shape_cast %81 : vector<8xf32> to vector<8x1xf32>
    %83 = vector.broadcast %82 : vector<8x1xf32> to vector<8x8xf32>
    %84 = arith.subf %80, %83 : vector<8x8xf32>
    %85 = math.exp %84 : vector<8x8xf32>
    %cst_29 = arith.constant dense<0.000000e+00> : vector<8xf32>
    %86 = vector.multi_reduction <add>, %85, %cst_29 [1] : vector<8x8xf32> to vector<8xf32>
    %87 = vector.shape_cast %86 : vector<8xf32> to vector<8x1xf32>
    %88 = tpu.reciprocal %87 {approx = true} : vector<8x1xf32> -> vector<8x1xf32>
    %89 = vector.broadcast %88 : vector<8x1xf32> to vector<8x8xf32>
    %90 = arith.mulf %85, %89 : vector<8x8xf32>
    %91 = arith.truncf %90 : vector<8x8xf32> to vector<8x8xbf16>
    %92 = vector.extract_strided_slice %38 {offsets = [0, 64], sizes = [8, 32], strides = [1, 1]} : vector<8x128xbf16> to vector<8x32xbf16>
    %cst_30 = arith.constant dense<0.000000e+00> : vector<8x32xf32>
    %93 = tpu.matmul %91, %92, %cst_30 {dimension_numbers = #tpu.dot_dimension_numbers<[1], [0], [0], [1], [0, 0, 1, 1], [], []>} : vector<8x8xbf16>, vector<8x32xbf16>, vector<8x32xf32> -> vector<8x32xf32>
    %94 = arith.truncf %93 : vector<8x32xf32> to vector<8x32xbf16>
    %c0_31 = arith.constant 0 : index
    %c64 = arith.constant 64 : index
    %95 = vector.load %arg15[%c0_31, %c64] : memref<8x128xbf16, #tpu.memory_space<vmem>>, vector<8x32xbf16>
    tpu.vector_store %arg15[%c0_31, %c64], %94 {strides = array<i32>} : memref<8x128xbf16, #tpu.memory_space<vmem>>, vector<8x32xbf16>,
    %96 = vector.extract_strided_slice %34 {offsets = [0, 96], sizes = [8, 32], strides = [1, 1]} : vector<8x128xf32> to vector<8x32xf32>
    %97 = arith.truncf %96 : vector<8x32xf32> to vector<8x32xbf16>
    %98 = vector.extract_strided_slice %36 {offsets = [0, 96], sizes = [8, 32], strides = [1, 1]} : vector<8x128xbf16> to vector<8x32xbf16>
    "tpu.trace_start"() <{level = 10 : i32, message = "qd,kd->qk"}> : () -> ()
    %cst_32 = arith.constant dense<0.000000e+00> : vector<8x8xf32>
    %99 = tpu.matmul %97, %98, %cst_32 {dimension_numbers = #tpu.dot_dimension_numbers<[1], [1], [0], [0], [0, 0, 1, 0], [], []>} : vector<8x32xbf16>, vector<8x32xbf16>, vector<8x8xf32> -> vector<8x8xf32>
    "tpu.trace_stop"() : () -> ()
    %cst_33 = arith.constant dense<0xFF800000> : vector<8xf32>
    %100 = vector.multi_reduction <maximumf>, %99, %cst_33 [1] : vector<8x8xf32> to vector<8xf32>
    %101 = vector.shape_cast %100 : vector<8xf32> to vector<8x1xf32>
    %102 = vector.broadcast %101 : vector<8x1xf32> to vector<8x8xf32>
    %103 = arith.subf %99, %102 : vector<8x8xf32>
    %104 = math.exp %103 : vector<8x8xf32>
    %cst_34 = arith.constant dense<0.000000e+00> : vector<8xf32>
    %105 = vector.multi_reduction <add>, %104, %cst_34 [1] : vector<8x8xf32> to vector<8xf32>
    %106 = vector.shape_cast %105 : vector<8xf32> to vector<8x1xf32>
    %107 = tpu.reciprocal %106 {approx = true} : vector<8x1xf32> -> vector<8x1xf32>
    %108 = vector.broadcast %107 : vector<8x1xf32> to vector<8x8xf32>
    %109 = arith.mulf %104, %108 : vector<8x8xf32>
    %110 = arith.truncf %109 : vector<8x8xf32> to vector<8x8xbf16>
    %111 = vector.extract_strided_slice %38 {offsets = [0, 96], sizes = [8, 32], strides = [1, 1]} : vector<8x128xbf16> to vector<8x32xbf16>
    %cst_35 = arith.constant dense<0.000000e+00> : vector<8x32xf32>
    %112 = tpu.matmul %110, %111, %cst_35 {dimension_numbers = #tpu.dot_dimension_numbers<[1], [0], [0], [1], [0, 0, 1, 1], [], []>} : vector<8x8xbf16>, vector<8x32xbf16>, vector<8x32xf32> -> vector<8x32xf32>
    %113 = arith.truncf %112 : vector<8x32xf32> to vector<8x32xbf16>
    %c0_36 = arith.constant 0 : index
    %c96 = arith.constant 96 : index
    %114 = vector.load %arg15[%c0_36, %c96] : memref<8x128xbf16, #tpu.memory_space<vmem>>, vector<8x32xbf16>
    tpu.vector_store %arg15[%c0_36, %c96], %113 {strides = array<i32>} : memref<8x128xbf16, #tpu.memory_space<vmem>>, vector<8x32xbf16>,
    %c0_37 = arith.constant 0 : index
    %c0_38 = arith.constant 0 : index
    %115 = vector.load %arg15[%c0_37, %c0_38] : memref<8x128xbf16, #tpu.memory_space<vmem>>, vector<8x128xbf16>
    %c0_39 = arith.constant 0 : index
    %c0_40 = arith.constant 0 : index
    %116 = vector.load %arg6[%c0_39, %c0_40] : memref<128x128xbf16, #tpu.memory_space<vmem>>, vector<128x128xbf16>
    %cst_41 = arith.constant dense<0.000000e+00> : vector<8x128xf32>
    %117 = tpu.matmul %115, %116, %cst_41 {dimension_numbers = #tpu.dot_dimension_numbers<[1], [0], [0], [1], [0, 0, 1, 1], [], []>} : vector<8x128xbf16>, vector<128x128xbf16>, vector<8x128xf32> -> vector<8x128xf32>
    %c0_42 = arith.constant 0 : index
    %c0_43 = arith.constant 0 : index
    %118 = vector.load %arg7[%c0_42, %c0_43] : memref<1x128xf32, #tpu.memory_space<vmem>>, vector<1x128xf32>
    %119 = vector.broadcast %118 : vector<1x128xf32> to vector<8x128xf32>
    %120 = arith.addf %117, %119 : vector<8x128xf32>
    %121 = arith.addf %1, %120 : vector<8x128xf32>
    %c0_44 = arith.constant 0 : index
    %c0_45 = arith.constant 0 : index
    %122 = vector.load %arg8[%c0_44, %c0_45] : memref<1x128xf32, #tpu.memory_space<vmem>>, vector<1x128xf32>
    %c0_46 = arith.constant 0 : index
    %c0_47 = arith.constant 0 : index
    %123 = vector.load %arg9[%c0_46, %c0_47] : memref<1x128xf32, #tpu.memory_space<vmem>>, vector<1x128xf32>
    %cst_48 = arith.constant dense<0.000000e+00> : vector<8xf32>
    %124 = vector.multi_reduction <add>, %121, %cst_48 [1] : vector<8x128xf32> to vector<8xf32>
    %125 = vector.shape_cast %124 : vector<8xf32> to vector<8x1xf32>
    %cst_49 = arith.constant 1.280000e+02 : f32
    %126 = vector.broadcast %cst_49 : f32 to vector<8x1xf32>
    %127 = arith.divf %125, %126 : vector<8x1xf32>
    %128 = vector.broadcast %127 : vector<8x1xf32> to vector<8x128xf32>
    %129 = arith.subf %121, %128 : vector<8x128xf32>
    %130 = arith.mulf %129, %129 : vector<8x128xf32>
    %cst_50 = arith.constant dense<0.000000e+00> : vector<8xf32>
    %131 = vector.multi_reduction <add>, %130, %cst_50 [1] : vector<8x128xf32> to vector<8xf32>
    %132 = vector.shape_cast %131 : vector<8xf32> to vector<8x1xf32>
    %cst_51 = arith.constant 1.280000e+02 : f32
    %133 = vector.broadcast %cst_51 : f32 to vector<8x1xf32>
    %134 = arith.divf %132, %133 : vector<8x1xf32>
    %135 = vector.broadcast %127 : vector<8x1xf32> to vector<8x128xf32>
    %136 = arith.subf %121, %135 : vector<8x128xf32>
    %cst_52 = arith.constant 9.99999974E-6 : f32
    %137 = vector.broadcast %cst_52 : f32 to vector<8x1xf32>
    %138 = arith.addf %134, %137 : vector<8x1xf32>
    %139 = math.rsqrt %138 : vector<8x1xf32>
    %140 = vector.broadcast %139 : vector<8x1xf32> to vector<8x128xf32>
    %141 = arith.mulf %136, %140 : vector<8x128xf32>
    %142 = vector.broadcast %122 : vector<1x128xf32> to vector<8x128xf32>
    %143 = arith.mulf %141, %142 : vector<8x128xf32>
    %144 = vector.broadcast %123 : vector<1x128xf32> to vector<8x128xf32>
    %145 = arith.addf %143, %144 : vector<8x128xf32>
    %146 = arith.truncf %145 : vector<8x128xf32> to vector<8x128xbf16>
    %c0_53 = arith.constant 0 : index
    %c0_54 = arith.constant 0 : index
    %147 = vector.load %arg10[%c0_53, %c0_54] : memref<128x512xbf16, #tpu.memory_space<vmem>>, vector<128x512xbf16>
    %cst_55 = arith.constant dense<0.000000e+00> : vector<8x512xf32>
    %148 = tpu.matmul %146, %147, %cst_55 {dimension_numbers = #tpu.dot_dimension_numbers<[1], [0], [0], [1], [0, 0, 1, 1], [], []>} : vector<8x128xbf16>, vector<128x512xbf16>, vector<8x512xf32> -> vector<8x512xf32>
    %c0_56 = arith.constant 0 : index
    %c0_57 = arith.constant 0 : index
    %149 = vector.load %arg11[%c0_56, %c0_57] : memref<1x512xf32, #tpu.memory_space<vmem>>, vector<1x512xf32>
    %150 = vector.broadcast %149 : vector<1x512xf32> to vector<8x512xf32>
    %151 = arith.addf %148, %150 : vector<8x512xf32>
    %cst_58 = arith.constant 1.702000e+00 : f32
    %152 = vector.broadcast %cst_58 : f32 to vector<8x512xf32>
    %153 = arith.mulf %152, %151 : vector<8x512xf32>
    %154 = arith.negf %153 : vector<8x512xf32>
    %155 = math.exp %154 : vector<8x512xf32>
    %cst_59 = arith.constant 1.000000e+00 : f32
    %156 = vector.broadcast %cst_59 : f32 to vector<8x512xf32>
    %157 = arith.addf %156, %155 : vector<8x512xf32>
    %158 = arith.divf %156, %157 : vector<8x512xf32>
    %159 = arith.mulf %151, %158 : vector<8x512xf32>
    %160 = arith.truncf %159 : vector<8x512xf32> to vector<8x512xbf16>
    %c0_60 = arith.constant 0 : index
    %c0_61 = arith.constant 0 : index
    %161 = vector.load %arg12[%c0_60, %c0_61] : memref<512x128xbf16, #tpu.memory_space<vmem>>, vector<512x128xbf16>
    %cst_62 = arith.constant dense<0.000000e+00> : vector<8x128xf32>
    %162 = tpu.matmul %160, %161, %cst_62 {dimension_numbers = #tpu.dot_dimension_numbers<[1], [0], [0], [1], [0, 0, 1, 1], [], []>} : vector<8x512xbf16>, vector<512x128xbf16>, vector<8x128xf32> -> vector<8x128xf32>
    %c0_63 = arith.constant 0 : index
    %c0_64 = arith.constant 0 : index
    %163 = vector.load %arg13[%c0_63, %c0_64] : memref<1x128xf32, #tpu.memory_space<vmem>>, vector<1x128xf32>
    %164 = vector.broadcast %163 : vector<1x128xf32> to vector<8x128xf32>
    %165 = arith.addf %162, %164 : vector<8x128xf32>
    %166 = arith.addf %121, %165 : vector<8x128xf32>
    %c0_65 = arith.constant 0 : index
    %c0_66 = arith.constant 0 : index
    %c0_67 = arith.constant 0 : index
    %167 = vector.load %arg14[%c0_65, %c0_66, %c0_67] : memref<1x8x128xf32, #tpu.memory_space<vmem>>, vector<1x8x128xf32>
    %168 = vector.shape_cast %167 : vector<1x8x128xf32> to vector<8x128xf32>
    %169 = vector.shape_cast %166 : vector<8x128xf32> to vector<1x8x128xf32>
    tpu.vector_store %arg14[%c0_65, %c0_66, %c0_67], %169 {strides = array<i32>} : memref<1x8x128xf32, #tpu.memory_space<vmem>>, vector<1x8x128xf32>,
    return
  }
  func.func @transform_0(%arg0: i32) -> (i32, i32, i32) {
    %c0_i32 = arith.constant 0 : i32
    %c0_i32_0 = arith.constant 0 : i32
    %c0_i32_1 = arith.constant 0 : i32
    return %arg0, %c0_i32, %c0_i32_0 : i32, i32, i32
  }
  func.func @transform_1(%arg0: i32) -> (i32, i32) {
    %c0_i32 = arith.constant 0 : i32
    %c0_i32_0 = arith.constant 0 : i32
    %c0_i32_1 = arith.constant 0 : i32
    return %c0_i32, %c0_i32_0 : i32, i32
  }
  func.func @transform_2(%arg0: i32) -> (i32, i32) {
    %c0_i32 = arith.constant 0 : i32
    %c0_i32_0 = arith.constant 0 : i32
    %c0_i32_1 = arith.constant 0 : i32
    return %c0_i32, %c0_i32_0 : i32, i32
  }
  func.func @transform_3(%arg0: i32) -> (i32, i32) {
    %c0_i32 = arith.constant 0 : i32
    %c0_i32_0 = arith.constant 0 : i32
    %c0_i32_1 = arith.constant 0 : i32
    return %c0_i32, %c0_i32_0 : i32, i32
  }
  func.func @transform_4(%arg0: i32) -> (i32, i32) {
    %c0_i32 = arith.constant 0 : i32
    %c0_i32_0 = arith.constant 0 : i32
    %c0_i32_1 = arith.constant 0 : i32
    return %c0_i32, %c0_i32_0 : i32, i32
  }
  func.func @transform_5(%arg0: i32) -> (i32, i32) {
    %c0_i32 = arith.constant 0 : i32
    %c0_i32_0 = arith.constant 0 : i32
    %c0_i32_1 = arith.constant 0 : i32
    return %c0_i32, %c0_i32_0 : i32, i32
  }
  func.func @transform_6(%arg0: i32) -> (i32, i32) {
    %c0_i32 = arith.constant 0 : i32
    %c0_i32_0 = arith.constant 0 : i32
    %c0_i32_1 = arith.constant 0 : i32
    return %c0_i32, %c0_i32_0 : i32, i32
  }
  func.func @transform_7(%arg0: i32) -> (i32, i32) {
    %c0_i32 = arith.constant 0 : i32
    %c0_i32_0 = arith.constant 0 : i32
    %c0_i32_1 = arith.constant 0 : i32
    return %c0_i32, %c0_i32_0 : i32, i32
  }
  func.func @transform_8(%arg0: i32) -> (i32, i32) {
    %c0_i32 = arith.constant 0 : i32
    %c0_i32_0 = arith.constant 0 : i32
    %c0_i32_1 = arith.constant 0 : i32
    return %c0_i32, %c0_i32_0 : i32, i32
  }
  func.func @transform_9(%arg0: i32) -> (i32, i32) {
    %c0_i32 = arith.constant 0 : i32
    %c0_i32_0 = arith.constant 0 : i32
    %c0_i32_1 = arith.constant 0 : i32
    return %c0_i32, %c0_i32_0 : i32, i32
  }
  func.func @transform_10(%arg0: i32) -> (i32, i32) {
    %c0_i32 = arith.constant 0 : i32
    %c0_i32_0 = arith.constant 0 : i32
    %c0_i32_1 = arith.constant 0 : i32
    return %c0_i32, %c0_i32_0 : i32, i32
  }
  func.func @transform_11(%arg0: i32) -> (i32, i32) {
    %c0_i32 = arith.constant 0 : i32
    %c0_i32_0 = arith.constant 0 : i32
    %c0_i32_1 = arith.constant 0 : i32
    return %c0_i32, %c0_i32_0 : i32, i32
  }
  func.func @transform_12(%arg0: i32) -> (i32, i32) {
    %c0_i32 = arith.constant 0 : i32
    %c0_i32_0 = arith.constant 0 : i32
    %c0_i32_1 = arith.constant 0 : i32
    return %c0_i32, %c0_i32_0 : i32, i32
  }
  func.func @transform_13(%arg0: i32) -> (i32, i32, i32) {
    %c0_i32 = arith.constant 0 : i32
    %c0_i32_0 = arith.constant 0 : i32
    %c0_i32_1 = arith.constant 0 : i32
    return %arg0, %c0_i32, %c0_i32_0 : i32, i32, i32
  }
}

</mosaic_0001>

<llo_original>
// kernel: tpu_custom_call.1
$region0: #{tpu_custom_call.1}
  #allocation0 [shape = 'u32[]', space=smem, size = 0x4, offset = 0x4, fixed_abs, tag = 'smem constant byte address 0x4 - core index']
  #allocation1 [shape = 'u32[72,128]{1,0:T(1,128)}', space=vmem, size = 0x9000, scoped, tag = 'internal scratch']
  #allocation2 [shape = 'bf16[8,128]{1,0:T(8,128)(2,1)}', space=vmem, size = 0x800, scoped, tag = 'scratch operand']
  %s0 = inlined_call_operand.hbm [shape: f32[2,8,128], index: 0, kind: input, shape index: {}]
  %s1 = inlined_call_operand.hbm [shape: f32[1,128], index: 1, kind: input, shape index: {}]
  %s2 = inlined_call_operand.hbm [shape: f32[1,128], index: 2, kind: input, shape index: {}]
  %s3 = inlined_call_operand.hbm [shape: bf16[128,384], index: 3, kind: input, shape index: {}]
  %s4 = inlined_call_operand.vmem [shape: f32[1,384], index: 4, kind: input, shape index: {}]
  %s5 = inlined_call_operand.hbm [shape: bf16[128,128], index: 5, kind: input, shape index: {}]
  %s6 = inlined_call_operand.hbm [shape: f32[1,128], index: 6, kind: input, shape index: {}]
  %s7 = inlined_call_operand.hbm [shape: f32[1,128], index: 7, kind: input, shape index: {}]
  %s8 = inlined_call_operand.hbm [shape: f32[1,128], index: 8, kind: input, shape index: {}]
  %s9 = inlined_call_operand.hbm [shape: bf16[128,512], index: 9, kind: input, shape index: {}]
  %s10 = inlined_call_operand.vmem [shape: f32[1,512], index: 10, kind: input, shape index: {}]
  %s11 = inlined_call_operand.hbm [shape: bf16[512,128], index: 11, kind: input, shape index: {}]
  %s12 = inlined_call_operand.vmem [shape: f32[1,128], index: 12, kind: input, shape index: {}]
  %s13 = inlined_call_operand.hbm [shape: f32[2,8,128], index: 13, kind: output, shape index: {}]
  %s14 = sld [smem:[#allocation0]]
  $region125: #{tpu_custom_call.1} parent=0
    _
  %s16 = ssub.s32 1, %s14
  %s17 = scalar_select 0, %s16, %s14
  $region1: #{tpu_custom_call.1} parent=0
    #allocation3 [shape = 'u8[8192]{0}', space=vmem, size = 0x2000, scoped, tag = 'input window, operand 0']
    #allocation4 [shape = 's32[2]{0}', space=sflag, size = 0x8, scoped, tag = 'scoped memory for tpu_custom_call.1']
    #allocation5 [shape = 's32[2]{0}', space=sflag, size = 0x8, scoped, tag = 'scoped memory for tpu_custom_call.1']
    #allocation6 [shape = 'u8[512]{0}', space=vmem, size = 0x400, scoped, tag = 'input window, operand 1, single buffered']
    #allocation7 [shape = 's32[1]{0}', space=sflag, size = 0x4, scoped, tag = 'scoped memory for tpu_custom_call.1']
    #allocation8 [shape = 'u8[512]{0}', space=vmem, size = 0x400, scoped, tag = 'input window, operand 2, single buffered']
    #allocation9 [shape = 'u8[98304]{0}', space=vmem, size = 0x18000, scoped, tag = 'input window, operand 3, single buffered']
    #allocation10 [shape = 's32[1]{0}', space=sflag, size = 0x4, scoped, tag = 'scoped memory for tpu_custom_call.1']
    #allocation11 [shape = 'u8[32768]{0}', space=vmem, size = 0x8000, scoped, tag = 'input window, operand 5, single buffered']
    #allocation12 [shape = 'u8[512]{0}', space=vmem, size = 0x400, scoped, tag = 'input window, operand 6, single buffered']
    #allocation13 [shape = 's32[1]{0}', space=sflag, size = 0x4, scoped, tag = 'scoped memory for tpu_custom_call.1']
    #allocation14 [shape = 'u8[512]{0}', space=vmem, size = 0x400, scoped, tag = 'input window, operand 7, single buffered']
    #allocation15 [shape = 'u8[512]{0}', space=vmem, size = 0x400, scoped, tag = 'input window, operand 8, single buffered']
    #allocation16 [shape = 's32[1]{0}', space=sflag, size = 0x4, scoped, tag = 'scoped memory for tpu_custom_call.1']
    #allocation17 [shape = 'u8[131072]{0}', space=vmem, size = 0x20000, scoped, tag = 'input window, operand 9, single buffered']
    #allocation18 [shape = 'u8[131072]{0}', space=vmem, size = 0x20000, scoped, tag = 'input window, operand 11, single buffered']
    #allocation19 [shape = 's32[1]{0}', space=sflag, size = 0x4, scoped, tag = 'scoped memory for tpu_custom_call.1']
    #allocation20 [shape = 'u8[8192]{0}', space=vmem, size = 0x2000, scoped, tag = 'output window, operand 0']
    %18 = vsyncpa [#allocation4], 0
    %s19 = scalar_lea.sflag [#allocation4], 1
    %20 = vsyncpa %s19, 0
    %21 = vsyncpa [#allocation7], 0
    %22 = vsyncpa [#allocation10], 0
    %23 = vsyncpa [#allocation13], 0
    %24 = vsyncpa [#allocation16], 0
    %25 = vsyncpa [#allocation19], 0
    %26 = vsyncpa [#allocation5], 0
    %s27 = scalar_lea.sflag [#allocation5], 1
    %28 = vsyncpa %s27, 0
    loop: start=0, step=1, limit=4
    $region2: #{tpu_custom_call.1} parent=1 // loop_pre_header
      _
    $region3: #{tpu_custom_call.1} parent=1 // loop_header
      %s30 = sphi 0, %s34
      %p31 = scmp.ge.s32.totalorder %s30, 4
      %s40 = sphi 0, %s42
      %s43 = sphi 0, %s40
      %s44 = sphi 0, %s43
      %s60 = sphi 0, %s44
      %s64 = sphi 0, %s64
      %s66 = sphi 0, %s64
      %s67 = sphi 0, %s66
      %s81 = sphi 0, %s67
      %s85 = sphi 0, %s85
      %s87 = sphi 0, %s85
      %s88 = sphi 0, %s87
      %s102 = sphi 0, %s88
      %s106 = sphi 0, %s106
      %s108 = sphi 0, %s106
      %s109 = sphi 0, %s108
      %s123 = sphi 0, %s109
      %s127 = sphi 0, %s127
      %s129 = sphi 0, %s127
      %s130 = sphi 0, %s129
      %s144 = sphi 0, %s130
      %s148 = sphi 0, %s148
      %s150 = sphi 0, %s148
      %s151 = sphi 0, %s150
      %s165 = sphi 0, %s151
      %s169 = sphi 0, %s169
      %s171 = sphi 0, %s169
      %s172 = sphi 0, %s171
      %s186 = sphi 0, %s172
      %s190 = sphi 0, %s190
      %s192 = sphi 0, %s190
      %s193 = sphi 0, %s192
      %s207 = sphi 0, %s193
      %s211 = sphi 0, %s211
      %s213 = sphi 0, %s211
      %s214 = sphi 0, %s213
      %s228 = sphi 0, %s214
      %s232 = sphi 0, %s232
      %s234 = sphi 0, %s232
      %s235 = sphi 0, %s234
      %s249 = sphi 0, %s235
      %s253 = sphi 0, %s253
      %s255 = sphi 0, %s253
      %s256 = sphi 0, %s255
      %s270 = sphi 0, %s256
      %s274 = sphi 0, %s274
      %s276 = sphi 0, %s274
      %s277 = sphi 0, %s276
      %s291 = sphi 0, %s277
      %s295 = sphi 0, %s295
      %s297 = sphi 0, %s295
      %s298 = sphi 0, %s297
      %s312 = sphi 0, %s298
      %s318 = sphi 0, %s320
      %s321 = sphi 0, %s318
      %s322 = sphi 0, %s321
      %s338 = sphi 0, %s322
    $region4: #{tpu_custom_call.1} parent=1 // loop_header_branch
      %33 = sbr.rel (%p31) target = $region8
    $region5: #{tpu_custom_call.1} parent=1 // loop_body
      %s35 = ssub.s32 %s30, 1
      %s36 = ssub.s32 %s30, 2
      %s37 = sadd.s32 %s30, 1
      %s38 = ssub.s32 %s30, %s37
      %p39 = scmp.eq.s32.totalorder %s38, 0
      %s41 = sadd.s32 %s40, 1
      %s42 = scalar_select %p39, %s40, %s41
      %p45 = pneg %p39
      %p46 = scmp.eq.s32.totalorder %s30, 1
      %p47 = por %p45, %p46
      %p48 = scmp.ne.s32.totalorder %s40, %s43
      %p49 = scmp.eq.s32.totalorder %s30, 0
      %p50 = por %p48, %p49
      %p51 = scmp.ne.s32.totalorder %s40, %s43
      %p52 = scmp.eq.s32.totalorder %s35, 1
      %p53 = por %p51, %p52
      %p54 = scmp.ne.s32.totalorder %s43, %s44
      %p55 = scmp.eq.s32.totalorder %s35, 0
      %p56 = por %p54, %p55
      %p57 = scmp.ne.s32.totalorder %s43, %s44
      %p58 = scmp.eq.s32.totalorder %s36, 1
      %p59 = por %p57, %p58
      %p61 = scmp.ne.s32.totalorder %s44, %s60
      %p62 = scmp.eq.s32.totalorder %s36, 0
      %p63 = por %p61, %p62
      %s65 = sadd.s32 %s64, 1
      %p68 = scmp.eq.s32.totalorder %s30, 1
      %p69 = scmp.ne.s32.totalorder %s64, %s66
      %p70 = scmp.eq.s32.totalorder %s30, 0
      %p71 = por %p69, %p70
      %p72 = scmp.ne.s32.totalorder %s64, %s66
      %p73 = scmp.eq.s32.totalorder %s35, 1
      %p74 = por %p72, %p73
      %p75 = scmp.ne.s32.totalorder %s66, %s67
      %p76 = scmp.eq.s32.totalorder %s35, 0
      %p77 = por %p75, %p76
      %p78 = scmp.ne.s32.totalorder %s66, %s67
      %p79 = scmp.eq.s32.totalorder %s36, 1
      %p80 = por %p78, %p79
      %p82 = scmp.ne.s32.totalorder %s67, %s81
      %p83 = scmp.eq.s32.totalorder %s36, 0
      %p84 = por %p82, %p83
      %s86 = sadd.s32 %s85, 1
      %p89 = scmp.eq.s32.totalorder %s30, 1
      %p90 = scmp.ne.s32.totalorder %s85, %s87
      %p91 = scmp.eq.s32.totalorder %s30, 0
      %p92 = por %p90, %p91
      %p93 = scmp.ne.s32.totalorder %s85, %s87
      %p94 = scmp.eq.s32.totalorder %s35, 1
      %p95 = por %p93, %p94
      %p96 = scmp.ne.s32.totalorder %s87, %s88
      %p97 = scmp.eq.s32.totalorder %s35, 0
      %p98 = por %p96, %p97
      %p99 = scmp.ne.s32.totalorder %s87, %s88
      %p100 = scmp.eq.s32.totalorder %s36, 1
      %p101 = por %p99, %p100
      %p103 = scmp.ne.s32.totalorder %s88, %s102
      %p104 = scmp.eq.s32.totalorder %s36, 0
      %p105 = por %p103, %p104
      %s107 = sadd.s32 %s106, 1
      %p110 = scmp.eq.s32.totalorder %s30, 1
      %p111 = scmp.ne.s32.totalorder %s106, %s108
      %p112 = scmp.eq.s32.totalorder %s30, 0
      %p113 = por %p111, %p112
      %p114 = scmp.ne.s32.totalorder %s106, %s108
      %p115 = scmp.eq.s32.totalorder %s35, 1
      %p116 = por %p114, %p115
      %p117 = scmp.ne.s32.totalorder %s108, %s109
      %p118 = scmp.eq.s32.totalorder %s35, 0
      %p119 = por %p117, %p118
      %p120 = scmp.ne.s32.totalorder %s108, %s109
      %p121 = scmp.eq.s32.totalorder %s36, 1
      %p122 = por %p120, %p121
      %p124 = scmp.ne.s32.totalorder %s109, %s123
      %p125 = scmp.eq.s32.totalorder %s36, 0
      %p126 = por %p124, %p125
      %s128 = sadd.s32 %s127, 1
      %p131 = scmp.eq.s32.totalorder %s30, 1
      %p132 = scmp.ne.s32.totalorder %s127, %s129
      %p133 = scmp.eq.s32.totalorder %s30, 0
      %p134 = por %p132, %p133
      %p135 = scmp.ne.s32.totalorder %s127, %s129
      %p136 = scmp.eq.s32.totalorder %s35, 1
      %p137 = por %p135, %p136
      %p138 = scmp.ne.s32.totalorder %s129, %s130
      %p139 = scmp.eq.s32.totalorder %s35, 0
      %p140 = por %p138, %p139
      %p141 = scmp.ne.s32.totalorder %s129, %s130
      %p142 = scmp.eq.s32.totalorder %s36, 1
      %p143 = por %p141, %p142
      %p145 = scmp.ne.s32.totalorder %s130, %s144
      %p146 = scmp.eq.s32.totalorder %s36, 0
      %p147 = por %p145, %p146
      %s149 = sadd.s32 %s148, 1
      %p152 = scmp.eq.s32.totalorder %s30, 1
      %p153 = scmp.ne.s32.totalorder %s148, %s150
      %p154 = scmp.eq.s32.totalorder %s30, 0
      %p155 = por %p153, %p154
      %p156 = scmp.ne.s32.totalorder %s148, %s150
      %p157 = scmp.eq.s32.totalorder %s35, 1
      %p158 = por %p156, %p157
      %p159 = scmp.ne.s32.totalorder %s150, %s151
      %p160 = scmp.eq.s32.totalorder %s35, 0
      %p161 = por %p159, %p160
      %p162 = scmp.ne.s32.totalorder %s150, %s151
      %p163 = scmp.eq.s32.totalorder %s36, 1
      %p164 = por %p162, %p163
      %p166 = scmp.ne.s32.totalorder %s151, %s165
      %p167 = scmp.eq.s32.totalorder %s36, 0
      %p168 = por %p166, %p167
      %s170 = sadd.s32 %s169, 1
      %p173 = scmp.eq.s32.totalorder %s30, 1
      %p174 = scmp.ne.s32.totalorder %s169, %s171
      %p175 = scmp.eq.s32.totalorder %s30, 0
      %p176 = por %p174, %p175
      %p177 = scmp.ne.s32.totalorder %s169, %s171
      %p178 = scmp.eq.s32.totalorder %s35, 1
      %p179 = por %p177, %p178
      %p180 = scmp.ne.s32.totalorder %s171, %s172
      %p181 = scmp.eq.s32.totalorder %s35, 0
      %p182 = por %p180, %p181
      %p183 = scmp.ne.s32.totalorder %s171, %s172
      %p184 = scmp.eq.s32.totalorder %s36, 1
      %p185 = por %p183, %p184
      %p187 = scmp.ne.s32.totalorder %s172, %s186
      %p188 = scmp.eq.s32.totalorder %s36, 0
      %p189 = por %p187, %p188
      %s191 = sadd.s32 %s190, 1
      %p194 = scmp.eq.s32.totalorder %s30, 1
      %p195 = scmp.ne.s32.totalorder %s190, %s192
      %p196 = scmp.eq.s32.totalorder %s30, 0
      %p197 = por %p195, %p196
      %p198 = scmp.ne.s32.totalorder %s190, %s192
      %p199 = scmp.eq.s32.totalorder %s35, 1
      %p200 = por %p198, %p199
      %p201 = scmp.ne.s32.totalorder %s192, %s193
      %p202 = scmp.eq.s32.totalorder %s35, 0
      %p203 = por %p201, %p202
      %p204 = scmp.ne.s32.totalorder %s192, %s193
      %p205 = scmp.eq.s32.totalorder %s36, 1
      %p206 = por %p204, %p205
      %p208 = scmp.ne.s32.totalorder %s193, %s207
      %p209 = scmp.eq.s32.totalorder %s36, 0
      %p210 = por %p208, %p209
      %s212 = sadd.s32 %s211, 1
      %p215 = scmp.eq.s32.totalorder %s30, 1
      %p216 = scmp.ne.s32.totalorder %s211, %s213
      %p217 = scmp.eq.s32.totalorder %s30, 0
      %p218 = por %p216, %p217
      %p219 = scmp.ne.s32.totalorder %s211, %s213
      %p220 = scmp.eq.s32.totalorder %s35, 1
      %p221 = por %p219, %p220
      %p222 = scmp.ne.s32.totalorder %s213, %s214
      %p223 = scmp.eq.s32.totalorder %s35, 0
      %p224 = por %p222, %p223
      %p225 = scmp.ne.s32.totalorder %s213, %s214
      %p226 = scmp.eq.s32.totalorder %s36, 1
      %p227 = por %p225, %p226
      %p229 = scmp.ne.s32.totalorder %s214, %s228
      %p230 = scmp.eq.s32.totalorder %s36, 0
      %p231 = por %p229, %p230
      %s233 = sadd.s32 %s232, 1
      %p236 = scmp.eq.s32.totalorder %s30, 1
      %p237 = scmp.ne.s32.totalorder %s232, %s234
      %p238 = scmp.eq.s32.totalorder %s30, 0
      %p239 = por %p237, %p238
      %p240 = scmp.ne.s32.totalorder %s232, %s234
      %p241 = scmp.eq.s32.totalorder %s35, 1
      %p242 = por %p240, %p241
      %p243 = scmp.ne.s32.totalorder %s234, %s235
      %p244 = scmp.eq.s32.totalorder %s35, 0
      %p245 = por %p243, %p244
      %p246 = scmp.ne.s32.totalorder %s234, %s235
      %p247 = scmp.eq.s32.totalorder %s36, 1
      %p248 = por %p246, %p247
      %p250 = scmp.ne.s32.totalorder %s235, %s249
      %p251 = scmp.eq.s32.totalorder %s36, 0
      %p252 = por %p250, %p251
      %s254 = sadd.s32 %s253, 1
      %p257 = scmp.eq.s32.totalorder %s30, 1
      %p258 = scmp.ne.s32.totalorder %s253, %s255
      %p259 = scmp.eq.s32.totalorder %s30, 0
      %p260 = por %p258, %p259
      %p261 = scmp.ne.s32.totalorder %s253, %s255
      %p262 = scmp.eq.s32.totalorder %s35, 1
      %p263 = por %p261, %p262
      %p264 = scmp.ne.s32.totalorder %s255, %s256
      %p265 = scmp.eq.s32.totalorder %s35, 0
      %p266 = por %p264, %p265
      %p267 = scmp.ne.s32.totalorder %s255, %s256
      %p268 = scmp.eq.s32.totalorder %s36, 1
      %p269 = por %p267, %p268
      %p271 = scmp.ne.s32.totalorder %s256, %s270
      %p272 = scmp.eq.s32.totalorder %s36, 0
      %p273 = por %p271, %p272
      %s275 = sadd.s32 %s274, 1
      %p278 = scmp.eq.s32.totalorder %s30, 1
      %p279 = scmp.ne.s32.totalorder %s274, %s276
      %p280 = scmp.eq.s32.totalorder %s30, 0
      %p281 = por %p279, %p280
      %p282 = scmp.ne.s32.totalorder %s274, %s276
      %p283 = scmp.eq.s32.totalorder %s35, 1
      %p284 = por %p282, %p283
      %p285 = scmp.ne.s32.totalorder %s276, %s277
      %p286 = scmp.eq.s32.totalorder %s35, 0
      %p287 = por %p285, %p286
      %p288 = scmp.ne.s32.totalorder %s276, %s277
      %p289 = scmp.eq.s32.totalorder %s36, 1
      %p290 = por %p288, %p289
      %p292 = scmp.ne.s32.totalorder %s277, %s291
      %p293 = scmp.eq.s32.totalorder %s36, 0
      %p294 = por %p292, %p293
      %s296 = sadd.s32 %s295, 1
      %p299 = scmp.eq.s32.totalorder %s30, 1
      %p300 = scmp.ne.s32.totalorder %s295, %s297
      %p301 = scmp.eq.s32.totalorder %s30, 0
      %p302 = por %p300, %p301
      %p303 = scmp.ne.s32.totalorder %s295, %s297
      %p304 = scmp.eq.s32.totalorder %s35, 1
      %p305 = por %p303, %p304
      %p306 = scmp.ne.s32.totalorder %s297, %s298
      %p307 = scmp.eq.s32.totalorder %s35, 0
      %p308 = por %p306, %p307
      %p309 = scmp.ne.s32.totalorder %s297, %s298
      %p310 = scmp.eq.s32.totalorder %s36, 1
      %p311 = por %p309, %p310
      %p313 = scmp.ne.s32.totalorder %s298, %s312
      %p314 = scmp.eq.s32.totalorder %s36, 0
      %p315 = por %p313, %p314
      %s316 = ssub.s32 %s30, %s37
      %p317 = scmp.eq.s32.totalorder %s316, 0
      %s319 = sadd.s32 %s318, 1
      %s320 = scalar_select %p317, %s318, %s319
      %p323 = pneg %p317
      %p324 = scmp.eq.s32.totalorder %s30, 1
      %p325 = por %p323, %p324
      %p326 = scmp.ne.s32.totalorder %s318, %s321
      %p327 = scmp.eq.s32.totalorder %s30, 0
      %p328 = por %p326, %p327
      %p329 = scmp.ne.s32.totalorder %s318, %s321
      %p330 = scmp.eq.s32.totalorder %s35, 1
      %p331 = por %p329, %p330
      %p332 = scmp.ne.s32.totalorder %s321, %s322
      %p333 = scmp.eq.s32.totalorder %s35, 0
      %p334 = por %p332, %p333
      %p335 = scmp.ne.s32.totalorder %s321, %s322
      %p336 = scmp.eq.s32.totalorder %s36, 1
      %p337 = por %p335, %p336
      %p339 = scmp.ne.s32.totalorder %s322, %s338
      %p340 = scmp.eq.s32.totalorder %s36, 0
      %p341 = por %p339, %p340
      %p342 = scmp.le.s32.totalorder 1, %s30
      %p343 = scmp.lt.s32.totalorder %s30, 3
      %p344 = pnand %p342, %p343
      %p345 = pneg %p344
      // Predicated region
      $region9: #{tpu_custom_call.1} parent=5 // pred_check
        _
      $region10: #{tpu_custom_call.1} parent=5 // pred_check_branch
        %347 = sbr.rel (%p344) target = $region12
      $region11: #{tpu_custom_call.1} parent=5 // pred_region
        %s348 = ssub.s32 %s30, 1
        // Predicated region
        $region13: #{tpu_custom_call.1} parent=11 // pred_check
          %p349 = pneg %p77
        $region14: #{tpu_custom_call.1} parent=11 // pred_check_branch
          %351 = sbr.rel (%p349) target = $region16
        $region15: #{tpu_custom_call.1} parent=11 // pred_region
          %353 = vsyncadd [#allocation7], 0
          %s355 = sshll.u32 %s1, 4
          %s356 = int_to_ptr.hbm [resolvable:$true] %s355
          %s357 = sshll.u32 [#allocation6], 4
          %s358 = int_to_ptr.vmem [resolvable:$true] %s357
          %360 = dma.hbm_to_vmem [thread:$0]  %s356, 16, %s358, [#allocation7]
        $region16: #{tpu_custom_call.1} parent=11 // pred_fallthru
          _
        // Predicated region
        $region17: #{tpu_custom_call.1} parent=11 // pred_check
          %p361 = pneg %p98
        $region18: #{tpu_custom_call.1} parent=11 // pred_check_branch
          %363 = sbr.rel (%p361) target = $region20
        $region19: #{tpu_custom_call.1} parent=11 // pred_region
          %365 = vsyncadd [#allocation7], 0
          %s367 = sshll.u32 %s2, 4
          %s368 = int_to_ptr.hbm [resolvable:$true] %s367
          %s369 = sshll.u32 [#allocation8], 4
          %s370 = int_to_ptr.vmem [resolvable:$true] %s369
          %372 = dma.hbm_to_vmem [thread:$0]  %s368, 16, %s370, [#allocation7]
        $region20: #{tpu_custom_call.1} parent=11 // pred_fallthru
          _
        // Predicated region
        $region21: #{tpu_custom_call.1} parent=11 // pred_check
          %p373 = pneg %p119
        $region22: #{tpu_custom_call.1} parent=11 // pred_check_branch
          %375 = sbr.rel (%p373) target = $region24
        $region23: #{tpu_custom_call.1} parent=11 // pred_region
          %377 = vsyncadd [#allocation10], 0
          %s378 = sshll.u32 %s3, 4
          %s379 = int_to_ptr.hbm [resolvable:$true] %s378
          %s380 = sshll.u32 [#allocation9], 4
          %s381 = int_to_ptr.vmem [resolvable:$true] %s380
          %386 = dma.hbm_to_vmem [thread:$0]  %s379, 3072, %s381, [#allocation10], 192, 192, 12
        $region24: #{tpu_custom_call.1} parent=11 // pred_fallthru
          _
        // Predicated region
        $region25: #{tpu_custom_call.1} parent=11 // pred_check
          %p387 = pneg %p140
        $region26: #{tpu_custom_call.1} parent=11 // pred_check_branch
          %389 = sbr.rel (%p387) target = $region28
        $region27: #{tpu_custom_call.1} parent=11 // pred_region
          _
        $region28: #{tpu_custom_call.1} parent=11 // pred_fallthru
          _
        // Predicated region
        $region29: #{tpu_custom_call.1} parent=11 // pred_check
          %p390 = pneg %p161
        $region30: #{tpu_custom_call.1} parent=11 // pred_check_branch
          %392 = sbr.rel (%p390) target = $region32
        $region31: #{tpu_custom_call.1} parent=11 // pred_region
          %394 = vsyncadd [#allocation10], 0
          %s395 = sshll.u32 %s5, 4
          %s396 = int_to_ptr.hbm [resolvable:$true] %s395
          %s397 = sshll.u32 [#allocation11], 4
          %s398 = int_to_ptr.vmem [resolvable:$true] %s397
          %403 = dma.hbm_to_vmem [thread:$0]  %s396, 1024, %s398, [#allocation10], 64, 64, 4
        $region32: #{tpu_custom_call.1} parent=11 // pred_fallthru
          _
        // Predicated region
        $region33: #{tpu_custom_call.1} parent=11 // pred_check
          %p404 = pneg %p182
        $region34: #{tpu_custom_call.1} parent=11 // pred_check_branch
          %406 = sbr.rel (%p404) target = $region36
        $region35: #{tpu_custom_call.1} parent=11 // pred_region
          %408 = vsyncadd [#allocation13], 0
          %s410 = sshll.u32 %s6, 4
          %s411 = int_to_ptr.hbm [resolvable:$true] %s410
          %s412 = sshll.u32 [#allocation12], 4
          %s413 = int_to_ptr.vmem [resolvable:$true] %s412
          %415 = dma.hbm_to_vmem [thread:$0]  %s411, 16, %s413, [#allocation13]
        $region36: #{tpu_custom_call.1} parent=11 // pred_fallthru
          _
        // Predicated region
        $region37: #{tpu_custom_call.1} parent=11 // pred_check
          %p416 = pneg %p203
        $region38: #{tpu_custom_call.1} parent=11 // pred_check_branch
          %418 = sbr.rel (%p416) target = $region40
        $region39: #{tpu_custom_call.1} parent=11 // pred_region
          %420 = vsyncadd [#allocation13], 0
          %s422 = sshll.u32 %s7, 4
          %s423 = int_to_ptr.hbm [resolvable:$true] %s422
          %s424 = sshll.u32 [#allocation14], 4
          %s425 = int_to_ptr.vmem [resolvable:$true] %s424
          %427 = dma.hbm_to_vmem [thread:$0]  %s423, 16, %s425, [#allocation13]
        $region40: #{tpu_custom_call.1} parent=11 // pred_fallthru
          _
        // Predicated region
        $region41: #{tpu_custom_call.1} parent=11 // pred_check
          %p428 = pneg %p224
        $region42: #{tpu_custom_call.1} parent=11 // pred_check_branch
          %430 = sbr.rel (%p428) target = $region44
        $region43: #{tpu_custom_call.1} parent=11 // pred_region
          %432 = vsyncadd [#allocation16], 0
          %s434 = sshll.u32 %s8, 4
          %s435 = int_to_ptr.hbm [resolvable:$true] %s434
          %s436 = sshll.u32 [#allocation15], 4
          %s437 = int_to_ptr.vmem [resolvable:$true] %s436
          %439 = dma.hbm_to_vmem [thread:$0]  %s435, 16, %s437, [#allocation16]
        $region44: #{tpu_custom_call.1} parent=11 // pred_fallthru
          _
        // Predicated region
        $region45: #{tpu_custom_call.1} parent=11 // pred_check
          %p440 = pneg %p245
        $region46: #{tpu_custom_call.1} parent=11 // pred_check_branch
          %442 = sbr.rel (%p440) target = $region48
        $region47: #{tpu_custom_call.1} parent=11 // pred_region
          %444 = vsyncadd [#allocation16], 0
          %s445 = sshll.u32 %s9, 4
          %s446 = int_to_ptr.hbm [resolvable:$true] %s445
          %s447 = sshll.u32 [#allocation17], 4
          %s448 = int_to_ptr.vmem [resolvable:$true] %s447
          %453 = dma.hbm_to_vmem [thread:$0]  %s446, 4096, %s448, [#allocation16], 256, 256, 16
        $region48: #{tpu_custom_call.1} parent=11 // pred_fallthru
          _
        // Predicated region
        $region49: #{tpu_custom_call.1} parent=11 // pred_check
          %p454 = pneg %p266
        $region50: #{tpu_custom_call.1} parent=11 // pred_check_branch
          %456 = sbr.rel (%p454) target = $region52
        $region51: #{tpu_custom_call.1} parent=11 // pred_region
          _
        $region52: #{tpu_custom_call.1} parent=11 // pred_fallthru
          _
        // Predicated region
        $region53: #{tpu_custom_call.1} parent=11 // pred_check
          %p457 = pneg %p287
        $region54: #{tpu_custom_call.1} parent=11 // pred_check_branch
          %459 = sbr.rel (%p457) target = $region56
        $region55: #{tpu_custom_call.1} parent=11 // pred_region
          %461 = vsyncadd [#allocation19], 0
          %s462 = sshll.u32 %s11, 4
          %s463 = int_to_ptr.hbm [resolvable:$true] %s462
          %s464 = sshll.u32 [#allocation18], 4
          %s465 = int_to_ptr.vmem [resolvable:$true] %s464
          %470 = dma.hbm_to_vmem [thread:$0]  %s463, 4096, %s465, [#allocation19], 64, 64, 4
        $region56: #{tpu_custom_call.1} parent=11 // pred_fallthru
          _
        // Predicated region
        $region57: #{tpu_custom_call.1} parent=11 // pred_check
          %p471 = pneg %p308
        $region58: #{tpu_custom_call.1} parent=11 // pred_check_branch
          %473 = sbr.rel (%p471) target = $region60
        $region59: #{tpu_custom_call.1} parent=11 // pred_region
          _
        $region60: #{tpu_custom_call.1} parent=11 // pred_fallthru
          _
      $region12: #{tpu_custom_call.1} parent=5 // pred_fallthru
        _
      %p474 = scmp.lt.s32.totalorder %s30, 2
      // Predicated region
      $region61: #{tpu_custom_call.1} parent=5 // pred_check
        %p475 = pneg %p474
      $region62: #{tpu_custom_call.1} parent=5 // pred_check_branch
        %477 = sbr.rel (%p475) target = $region64
      $region63: #{tpu_custom_call.1} parent=5 // pred_region
        // Predicated region
        $region65: #{tpu_custom_call.1} parent=63 // pred_check
          %p478 = pneg %p50
        $region66: #{tpu_custom_call.1} parent=63 // pred_check_branch
          %480 = sbr.rel (%p478) target = $region68
        $region67: #{tpu_custom_call.1} parent=63 // pred_region
          %s481 = sand.u32 %s40, 1
          %s482 = scalar_lea.sflag [#allocation4], %s481
          %s483 = sand.u32 %s40, 1
          %s484 = smul.addr %s483, 8
          %s485 = scalar_lea.vmem [#allocation3], %s484
          %487 = vsyncadd %s482, 0
          %s488 = smul.addr %s30, 8
          %s489 = scalar_lea.hbm %s0, %s488
          %s491 = sshll.u32 %s489, 4
          %s492 = int_to_ptr.hbm [resolvable:$true] %s491
          %s493 = sshll.u32 %s485, 4
          %s494 = int_to_ptr.vmem [resolvable:$true] %s493
          %496 = dma.hbm_to_vmem [thread:$0]  %s492, 128, %s494, %s482
        $region68: #{tpu_custom_call.1} parent=63 // pred_fallthru
          _
      $region64: #{tpu_custom_call.1} parent=5 // pred_fallthru
        _
      %p497 = scmp.le.s32.totalorder 1, %s30
      %p498 = scmp.lt.s32.totalorder %s30, 3
      %p499 = pnand %p497, %p498
      %p500 = pneg %p499
      // Predicated region
      $region69: #{tpu_custom_call.1} parent=5 // pred_check
        _
      $region70: #{tpu_custom_call.1} parent=5 // pred_check_branch
        %502 = sbr.rel (%p499) target = $region72
      $region71: #{tpu_custom_call.1} parent=5 // pred_region
        %s503 = ssub.s32 %s30, 1
        %s504 = sand.u32 %s43, 1
        %s505 = scalar_lea.sflag [#allocation4], %s504
        %s506 = sand.u32 %s43, 1
        %s507 = smul.addr %s506, 8
        %s508 = scalar_lea.vmem [#allocation3], %s507
        // Predicated region
        $region73: #{tpu_custom_call.1} parent=71 // pred_check
          %p509 = pneg %p56
        $region74: #{tpu_custom_call.1} parent=71 // pred_check_branch
          %511 = sbr.rel (%p509) target = $region76
        $region75: #{tpu_custom_call.1} parent=71 // pred_region
          %513 = dma.done %s505, 128
        $region76: #{tpu_custom_call.1} parent=71 // pred_fallthru
          _
        // Predicated region
        $region77: #{tpu_custom_call.1} parent=71 // pred_check
          %p514 = pneg %p77
        $region78: #{tpu_custom_call.1} parent=71 // pred_check_branch
          %516 = sbr.rel (%p514) target = $region80
        $region79: #{tpu_custom_call.1} parent=71 // pred_region
          %518 = dma.done [#allocation7], 16
        $region80: #{tpu_custom_call.1} parent=71 // pred_fallthru
          _
        // Predicated region
        $region81: #{tpu_custom_call.1} parent=71 // pred_check
          %p519 = pneg %p98
        $region82: #{tpu_custom_call.1} parent=71 // pred_check_branch
          %521 = sbr.rel (%p519) target = $region84
        $region83: #{tpu_custom_call.1} parent=71 // pred_region
          %523 = dma.done [#allocation7], 16
        $region84: #{tpu_custom_call.1} parent=71 // pred_fallthru
          _
        // Predicated region
        $region85: #{tpu_custom_call.1} parent=71 // pred_check
          %p524 = pneg %p119
        $region86: #{tpu_custom_call.1} parent=71 // pred_check_branch
          %526 = sbr.rel (%p524) target = $region88
        $region87: #{tpu_custom_call.1} parent=71 // pred_region
          %528 = dma.done [#allocation10], 3072
        $region88: #{tpu_custom_call.1} parent=71 // pred_fallthru
          _
        // Predicated region
        $region89: #{tpu_custom_call.1} parent=71 // pred_check
          %p529 = pneg %p161
        $region90: #{tpu_custom_call.1} parent=71 // pred_check_branch
          %531 = sbr.rel (%p529) target = $region92
        $region91: #{tpu_custom_call.1} parent=71 // pred_region
          %533 = dma.done [#allocation10], 1024
        $region92: #{tpu_custom_call.1} parent=71 // pred_fallthru
          _
        // Predicated region
        $region93: #{tpu_custom_call.1} parent=71 // pred_check
          %p534 = pneg %p182
        $region94: #{tpu_custom_call.1} parent=71 // pred_check_branch
          %536 = sbr.rel (%p534) target = $region96
        $region95: #{tpu_custom_call.1} parent=71 // pred_region
          %538 = dma.done [#allocation13], 16
        $region96: #{tpu_custom_call.1} parent=71 // pred_fallthru
          _
        // Predicated region
        $region97: #{tpu_custom_call.1} parent=71 // pred_check
          %p539 = pneg %p203
        $region98: #{tpu_custom_call.1} parent=71 // pred_check_branch
          %541 = sbr.rel (%p539) target = $region100
        $region99: #{tpu_custom_call.1} parent=71 // pred_region
          %543 = dma.done [#allocation13], 16
        $region100: #{tpu_custom_call.1} parent=71 // pred_fallthru
          _
        // Predicated region
        $region101: #{tpu_custom_call.1} parent=71 // pred_check
          %p544 = pneg %p224
        $region102: #{tpu_custom_call.1} parent=71 // pred_check_branch
          %546 = sbr.rel (%p544) target = $region104
        $region103: #{tpu_custom_call.1} parent=71 // pred_region
          %548 = dma.done [#allocation16], 16
        $region104: #{tpu_custom_call.1} parent=71 // pred_fallthru
          _
        // Predicated region
        $region105: #{tpu_custom_call.1} parent=71 // pred_check
          %p549 = pneg %p245
        $region106: #{tpu_custom_call.1} parent=71 // pred_check_branch
          %551 = sbr.rel (%p549) target = $region108
        $region107: #{tpu_custom_call.1} parent=71 // pred_region
          %553 = dma.done [#allocation16], 4096
        $region108: #{tpu_custom_call.1} parent=71 // pred_fallthru
          _
        // Predicated region
        $region109: #{tpu_custom_call.1} parent=71 // pred_check
          %p554 = pneg %p287
        $region110: #{tpu_custom_call.1} parent=71 // pred_check_branch
          %556 = sbr.rel (%p554) target = $region112
        $region111: #{tpu_custom_call.1} parent=71 // pred_region
          %558 = dma.done [#allocation19], 4096
        $region112: #{tpu_custom_call.1} parent=71 // pred_fallthru
          _
        %s559 = sand.u32 %s43, 1
        %s560 = scalar_lea.sflag [#allocation4], %s559
        %s561 = sand.u32 %s43, 1
        %s562 = smul.addr %s561, 8
        %s563 = scalar_lea.vmem [#allocation3], %s562
        %p564 = pneg %p56
        %p565 = pneg %p53
        %p566 = pneg %p77
        %p567 = pneg %p74
        %p568 = pneg %p98
        %p569 = pneg %p95
        %p570 = pneg %p119
        %p571 = pneg %p116
        %p572 = pneg %p140
        %p573 = pneg %p137
        %p574 = pneg %p161
        %p575 = pneg %p158
        %p576 = pneg %p182
        %p577 = pneg %p179
        %p578 = pneg %p203
        %p579 = pneg %p200
        %p580 = pneg %p224
        %p581 = pneg %p221
        %p582 = pneg %p245
        %p583 = pneg %p242
        %p584 = pneg %p266
        %p585 = pneg %p263
        %p586 = pneg %p287
        %p587 = pneg %p284
        %p588 = pneg %p308
        %p589 = pneg %p305
        %p590 = pneg %p334
        %p591 = pneg %p331
        %s592 = sand.u32 %s321, 1
        %s593 = scalar_lea.sflag [#allocation5], %s592
        %s594 = sand.u32 %s321, 1
        %s595 = smul.addr %s594, 8
        %s596 = scalar_lea.vmem [#allocation20], %s595
        %v598 = vld [vmem:[%s508] sm:$0xff]
        %v599 = vld [vmem:[#allocation6] sm:$0x1]
        %v600 = vld [vmem:[#allocation8] sm:$0x1]
        %601 = vadd.xlane.f32.xlu0 %v598
        %v602 = vpop.xlane.xlu0 %601
        %v603 = vrcp.pop 128.0
        %v604 = vmul.f32 128.0, %v603
        %v605 = vsub.f32 1.0, %v604
        %v606 = vmul.f32 %v603, %v605
        %v607 = vadd.f32 %v603, %v606
        %vm608 = vweird.f32 %v603
        %v609 = vsel %vm608, %v603, %v607
        %v610 = vmul.f32 %v602, %v609
        %v611 = vsub.f32 %v598, %v610
        %v612 = vmul.f32 %v611, %v611
        %613 = vadd.xlane.f32.xlu0 %v612
        %v614 = vpop.xlane.xlu0 %613
        %v615 = vmul.f32 %v614, %v609
        %v616 = vadd.f32 %v615, 1e-05
        %v617 = vrsqrt.pop %v616
        %v618 = vmul.f32 %v617, %v616
        %v619 = vmul.f32 %v618, %v617
        %v620 = vmul.f32 0.5, %v619
        %v621 = vsub.f32 1.5, %v620
        %v622 = vmul.f32 %v617, %v621
        %vm623 = vweird.f32 %v616
        %vm624 = vweird.f32 %v617
        %vm625 = vmor %vm623, %vm624
        %v626 = vsel %vm625, %v617, %v622
        %v627 = vmul.f32 %v611, %v626
        %v629 = vperm.slane %v599, 0
        %v631 = vmul.f32 %v627, %v629
        %v633 = vperm.slane %v600, 0
        %v635 = vadd.f32 %v631, %v633
        %v636 = vpack.c.bf16 %v635, %v635
        %v637 = vld [vmem:[#allocation9] sm:$0xff]
        %v638 = vld [vmem:[#allocation9 + $0x8] sm:$0xf]
        %v639 = vld [vmem:[#allocation9 + $0xc] sm:$0xff]
        %v640 = vld [vmem:[#allocation9 + $0x14] sm:$0xf]
        %v641 = vld [vmem:[#allocation9 + $0x18] sm:$0xff]
        %v642 = vld [vmem:[#allocation9 + $0x20] sm:$0xf]
        %v643 = vld [vmem:[#allocation9 + $0x24] sm:$0xff]
        %v644 = vld [vmem:[#allocation9 + $0x2c] sm:$0xf]
        %v645 = vld [vmem:[#allocation9 + $0x30] sm:$0xff]
        %v646 = vld [vmem:[#allocation9 + $0x38] sm:$0xf]
        %v647 = vld [vmem:[#allocation9 + $0x3c] sm:$0xff]
        %v648 = vld [vmem:[#allocation9 + $0x44] sm:$0xf]
        %v649 = vld [vmem:[#allocation9 + $0x48] sm:$0xff]
        %v650 = vld [vmem:[#allocation9 + $0x50] sm:$0xf]
        %v651 = vld [vmem:[#allocation9 + $0x54] sm:$0xff]
        %v652 = vld [vmem:[#allocation9 + $0x5c] sm:$0xf]
        %v653 = vld [vmem:[#allocation9 + $0x60] sm:$0xff]
        %v654 = vld [vmem:[#allocation9 + $0x68] sm:$0xf]
        %v655 = vld [vmem:[#allocation9 + $0x6c] sm:$0xff]
        %v656 = vld [vmem:[#allocation9 + $0x74] sm:$0xf]
        %v657 = vld [vmem:[#allocation9 + $0x78] sm:$0xff]
        %v658 = vld [vmem:[#allocation9 + $0x80] sm:$0xf]
        %v659 = vld [vmem:[#allocation9 + $0x84] sm:$0xff]
        %v660 = vld [vmem:[#allocation9 + $0x8c] sm:$0xf]
        %v661 = vld [vmem:[#allocation9 + $0x90] sm:$0xff]
        %v662 = vld [vmem:[#allocation9 + $0x98] sm:$0xf]
        %v663 = vld [vmem:[#allocation9 + $0x9c] sm:$0xff]
        %v664 = vld [vmem:[#allocation9 + $0xa4] sm:$0xf]
        %v665 = vld [vmem:[#allocation9 + $0xa8] sm:$0xff]
        %v666 = vld [vmem:[#allocation9 + $0xb0] sm:$0xf]
        %v667 = vld [vmem:[#allocation9 + $0xb4] sm:$0xff]
        %v668 = vld [vmem:[#allocation9 + $0xbc] sm:$0xf]
        %v669 = vld [vmem:[%s4] sm:$0x7]
        %v671 = vperm.slane %v669, 0
        %v672 = vperm.slane %v669, 1
        %v673 = vperm.slane %v669, 2
        %v709 = vunpack.c.l.b16 %v637
        %v710 = vunpack.c.h.b16 %v637
        %v711 = vunpack.c.l.b16 %v638
        %v712 = vunpack.c.l.b16 %v639
        %v713 = vunpack.c.h.b16 %v639
        %v714 = vunpack.c.l.b16 %v640
        %v715 = vunpack.c.l.b16 %v641
        %v716 = vunpack.c.h.b16 %v641
        %v717 = vunpack.c.l.b16 %v642
        %v718 = vunpack.c.l.b16 %v643
        %v719 = vunpack.c.h.b16 %v643
        %v720 = vunpack.c.l.b16 %v644
        %v721 = vunpack.c.l.b16 %v645
        %v722 = vunpack.c.h.b16 %v645
        %v723 = vunpack.c.l.b16 %v646
        %v724 = vunpack.c.l.b16 %v647
        %v725 = vunpack.c.h.b16 %v647
        %v726 = vunpack.c.l.b16 %v648
        %v727 = vunpack.c.l.b16 %v649
        %v728 = vunpack.c.h.b16 %v649
        %v729 = vunpack.c.l.b16 %v650
        %v730 = vunpack.c.l.b16 %v651
        %v731 = vunpack.c.h.b16 %v651
        %v732 = vunpack.c.l.b16 %v652
        %v733 = vunpack.c.l.b16 %v653
        %v734 = vunpack.c.h.b16 %v653
        %v735 = vunpack.c.l.b16 %v654
        %v736 = vunpack.c.l.b16 %v655
        %v737 = vunpack.c.h.b16 %v655
        %v738 = vunpack.c.l.b16 %v656
        %v739 = vunpack.c.l.b16 %v657
        %v740 = vunpack.c.h.b16 %v657
        %v741 = vunpack.c.l.b16 %v658
        %v742 = vunpack.c.l.b16 %v659
        %v743 = vunpack.c.h.b16 %v659
        %v744 = vunpack.c.l.b16 %v660
        %v745 = vunpack.c.l.b16 %v661
        %v746 = vunpack.c.h.b16 %v661
        %v747 = vunpack.c.l.b16 %v662
        %v748 = vunpack.c.l.b16 %v663
        %v749 = vunpack.c.h.b16 %v663
        %v750 = vunpack.c.l.b16 %v664
        %v751 = vunpack.c.l.b16 %v665
        %v752 = vunpack.c.h.b16 %v665
        %v753 = vunpack.c.l.b16 %v666
        %v754 = vunpack.c.l.b16 %v667
        %v755 = vunpack.c.h.b16 %v667
        %v756 = vunpack.c.l.b16 %v668
        %v757 = vpack.c.b16 %v712, %v709
        %v758 = vpack.c.b16 %v713, %v710
        %v759 = vpack.c.b16 %v714, %v711
        %v760 = vpack.c.b16 %v718, %v715
        %v761 = vpack.c.b16 %v719, %v716
        %v762 = vpack.c.b16 %v720, %v717
        %v763 = vpack.c.b16 %v724, %v721
        %v764 = vpack.c.b16 %v725, %v722
        %v765 = vpack.c.b16 %v726, %v723
        %v766 = vpack.c.b16 %v730, %v727
        %v767 = vpack.c.b16 %v731, %v728
        %v768 = vpack.c.b16 %v732, %v729
        %v769 = vpack.c.b16 %v736, %v733
        %v770 = vpack.c.b16 %v737, %v734
        %v771 = vpack.c.b16 %v738, %v735
        %v772 = vpack.c.b16 %v742, %v739
        %v773 = vpack.c.b16 %v743, %v740
        %v774 = vpack.c.b16 %v744, %v741
        %v775 = vpack.c.b16 %v748, %v745
        %v776 = vpack.c.b16 %v749, %v746
        %v777 = vpack.c.b16 %v750, %v747
        %v778 = vpack.c.b16 %v754, %v751
        %v779 = vpack.c.b16 %v755, %v752
        %v780 = vpack.c.b16 %v756, %v753
        %805 = vmatpush.bf16.msra.mxu0 %v778
        %806 = vmatpush.bf16.msra.mxu0 %v775
        %807 = vmatpush.bf16.msra.mxu0 %v772
        %808 = vmatpush.bf16.msra.mxu0 %v769
        %809 = vmatpush.bf16.msra.mxu0 %v766
        %810 = vmatpush.bf16.msra.mxu0 %v763
        %811 = vmatpush.bf16.msra.mxu0 %v760
        %812 = vmatpush.bf16.msra.mxu0 %v757
        %813 = vmatmul.bf16.gmra.mxu0 %v636
        %v814 = vpop.f32.mrf.mxu0
        %v815 = vadd.f32 %v671, %v814
        %v816 = vpop.f32.mrf.mxu0
        %817 = vdwg.mxu0
        %818 = vmatpush.bf16.msra.mxu0 %v779
        %819 = vmatpush.bf16.msra.mxu0 %v776
        %820 = vmatpush.bf16.msra.mxu0 %v773
        %821 = vmatpush.bf16.msra.mxu0 %v770
        %822 = vmatpush.bf16.msra.mxu0 %v767
        %823 = vmatpush.bf16.msra.mxu0 %v764
        %824 = vmatpush.bf16.msra.mxu0 %v761
        %825 = vmatpush.bf16.msra.mxu0 %v758
        %826 = vmatmul.bf16.gmra.mxu0 %v636
        %v827 = vpop.f32.mrf.mxu0
        %v828 = vadd.f32 %v672, %v827
        %v829 = vpop.f32.mrf.mxu0
        %830 = vdwg.mxu0
        %831 = vmatpush.bf16.msra.mxu0 %v780
        %832 = vmatpush.bf16.msra.mxu0 %v777
        %833 = vmatpush.bf16.msra.mxu0 %v774
        %834 = vmatpush.bf16.msra.mxu0 %v771
        %835 = vmatpush.bf16.msra.mxu0 %v768
        %836 = vmatpush.bf16.msra.mxu0 %v765
        %837 = vmatpush.bf16.msra.mxu0 %v762
        %838 = vmatpush.bf16.msra.mxu0 %v759
        %839 = vmatmul.bf16.gmra.mxu0 %v636
        %v840 = vpop.f32.mrf.mxu0
        %v841 = vadd.f32 %v673, %v840
        %v842 = vpop.f32.mrf.mxu0
        %843 = vdwg.mxu0
        %v844 = vmul.f32 %v815, 0.17677669
        %v845 = vpack.c.bf16 %v828, %v828
        %v846 = vpack.c.bf16 %v841, %v841
        %v847 = vpack.c.bf16 %v844, %v844
        %vm848 = vcmask 261120
        %v850 = vsel %vm848, %v847, 0
        %v853 = vsel %vm848, %v845, 0
        %855 = vmatpush.bf16.xpose.msra.mxu0 0
        %856 = vmatpush.bf16.xpose.msra.mxu0 0
        %857 = vmatpush.bf16.xpose.msra.mxu0 0
        %858 = vmatpush.bf16.xpose.msra.mxu0 0
        %859 = vmatpush.bf16.xpose.msra.mxu0 0
        %860 = vmatpush.bf16.xpose.msra.mxu0 0
        %861 = vmatpush.bf16.xpose.msra.mxu0 0
        %862 = vmatpush.bf16.xpose.msra.mxu0 %v853
        %863 = vmatmul.bf16.gmra.mxu0 %v850
        %v864 = vpop.f32.mrf.mxu0
        %v865 = vadd.f32 0.0, %v864
        %v866 = vpop.f32.mrf.mxu0
        %867 = vdwg.mxu0
        %vm868 = vcmask 64512
        %v869 = vsel %vm868, %v865, -inf
        %870 = vmax.xlane.f32.xlu0 %v869
        %v871 = vpop.xlane.xlu0 %870
        %v872 = vsub.f32 %v865, %v871
        %v873 = vmul.f32 %v872, 1.442695
        %v874 = vpow.pop %v873
        %v875 = vsel %vm868, %v874, 0.0
        %876 = vadd.xlane.f32.xlu0 %v875
        %v877 = vpop.xlane.xlu0 %876
        %v878 = vrcp.pop %v877
        %v879 = vmul.f32 %v874, %v878
        %v880 = vpack.c.bf16 %v879, %v879
        %v882 = vsel %vm868, %v880, 0
        %vm884 = vcmask 1043456
        %v886 = vsel %vm884, %v846, 0
        %888 = vmatpush.bf16.msra.mxu0 0
        %889 = vmatpush.bf16.msra.mxu0 0
        %890 = vmatpush.bf16.msra.mxu0 0
        %891 = vmatpush.bf16.msra.mxu0 0
        %892 = vmatpush.bf16.msra.mxu0 0
        %893 = vmatpush.bf16.msra.mxu0 0
        %894 = vmatpush.bf16.msra.mxu0 0
        %895 = vmatpush.bf16.msra.mxu0 %v886
        %896 = vmatmul.bf16.gmra.mxu0 %v882
        %v897 = vpop.f32.mrf.mxu0
        %v898 = vadd.f32 0.0, %v897
        %v899 = vpop.f32.mrf.mxu0
        %900 = vdwg.mxu0
        %v901 = vpack.c.bf16 %v898, %v898
        %vm902 = vcmask 257024
        %903 = vst.msk [vmem:[#allocation2] sm:$0xf] %vm902, %v901
        %905 = vrot.lane.b32.xlu0 %v847, 96
        %v906 = vpop.permute.xlu0 %905
        %v908 = vunpack.c.l.b16 %v845
        %v909 = vpack.c.b16 %v908, %v908
        %910 = vrot.lane.b32.xlu0 %v909, 96
        %v911 = vpop.permute.xlu0 %910
        %v913 = vsel %vm848, %v906, 0
        %v916 = vsel %vm848, %v911, 0
        %918 = vmatpush.bf16.xpose.msra.mxu0 0
        %919 = vmatpush.bf16.xpose.msra.mxu0 0
        %920 = vmatpush.bf16.xpose.msra.mxu0 0
        %921 = vmatpush.bf16.xpose.msra.mxu0 0
        %922 = vmatpush.bf16.xpose.msra.mxu0 0
        %923 = vmatpush.bf16.xpose.msra.mxu0 0
        %924 = vmatpush.bf16.xpose.msra.mxu0 0
        %925 = vmatpush.bf16.xpose.msra.mxu0 %v916
        %926 = vmatmul.bf16.gmra.mxu0 %v913
        %v927 = vpop.f32.mrf.mxu0
        %v928 = vadd.f32 0.0, %v927
        %v929 = vpop.f32.mrf.mxu0
        %930 = vdwg.mxu0
        %v931 = vsel %vm868, %v928, -inf
        %932 = vmax.xlane.f32.xlu0 %v931
        %v933 = vpop.xlane.xlu0 %932
        %v934 = vsub.f32 %v928, %v933
        %v935 = vmul.f32 %v934, 1.442695
        %v936 = vpow.pop %v935
        %v937 = vsel %vm868, %v936, 0.0
        %938 = vadd.xlane.f32.xlu0 %v937
        %v939 = vpop.xlane.xlu0 %938
        %v940 = vrcp.pop %v939
        %v941 = vmul.f32 %v936, %v940
        %v942 = vpack.c.bf16 %v941, %v941
        %v944 = vunpack.c.l.b16 %v846
        %v945 = vpack.c.b16 %v944, %v944
        %946 = vrot.lane.b32.xlu0 %v945, 96
        %v947 = vpop.permute.xlu0 %946
        %v949 = vsel %vm868, %v942, 0
        %v952 = vsel %vm884, %v947, 0
        %954 = vmatpush.bf16.msra.mxu0 0
        %955 = vmatpush.bf16.msra.mxu0 0
        %956 = vmatpush.bf16.msra.mxu0 0
        %957 = vmatpush.bf16.msra.mxu0 0
        %958 = vmatpush.bf16.msra.mxu0 0
        %959 = vmatpush.bf16.msra.mxu0 0
        %960 = vmatpush.bf16.msra.mxu0 0
        %961 = vmatpush.bf16.msra.mxu0 %v952
        %962 = vmatmul.bf16.gmra.mxu0 %v949
        %v963 = vpop.f32.mrf.mxu0
        %v964 = vadd.f32 0.0, %v963
        %v965 = vpop.f32.mrf.mxu0
        %966 = vdwg.mxu0
        %v967 = vpack.c.bf16 %v964, %v964
        %969 = vrot.lane.b32.xlu0 %v967, 32
        %v970 = vpop.permute.xlu0 %969
        %vm972 = vcmask 519424
        %973 = vst.msk [vmem:[#allocation2] sm:$0xf] %vm972, %v970
        %974 = vrot.lane.b32.xlu0 %v847, 64
        %v975 = vpop.permute.xlu0 %974
        %976 = vrot.lane.b32.xlu0 %v909, 64
        %v977 = vpop.permute.xlu0 %976
        %v979 = vsel %vm848, %v975, 0
        %v982 = vsel %vm848, %v977, 0
        %984 = vmatpush.bf16.xpose.msra.mxu0 0
        %985 = vmatpush.bf16.xpose.msra.mxu0 0
        %986 = vmatpush.bf16.xpose.msra.mxu0 0
        %987 = vmatpush.bf16.xpose.msra.mxu0 0
        %988 = vmatpush.bf16.xpose.msra.mxu0 0
        %989 = vmatpush.bf16.xpose.msra.mxu0 0
        %990 = vmatpush.bf16.xpose.msra.mxu0 0
        %991 = vmatpush.bf16.xpose.msra.mxu0 %v982
        %992 = vmatmul.bf16.gmra.mxu0 %v979
        %v993 = vpop.f32.mrf.mxu0
        %v994 = vadd.f32 0.0, %v993
        %v995 = vpop.f32.mrf.mxu0
        %996 = vdwg.mxu0
        %v997 = vsel %vm868, %v994, -inf
        %998 = vmax.xlane.f32.xlu0 %v997
        %v999 = vpop.xlane.xlu0 %998
        %v1000 = vsub.f32 %v994, %v999
        %v1001 = vmul.f32 %v1000, 1.442695
        %v1002 = vpow.pop %v1001
        %v1003 = vsel %vm868, %v1002, 0.0
        %1004 = vadd.xlane.f32.xlu0 %v1003
        %v1005 = vpop.xlane.xlu0 %1004
        %v1006 = vrcp.pop %v1005
        %v1007 = vmul.f32 %v1002, %v1006
        %v1008 = vpack.c.bf16 %v1007, %v1007
        %1009 = vrot.lane.b32.xlu0 %v945, 64
        %v1010 = vpop.permute.xlu0 %1009
        %v1012 = vsel %vm868, %v1008, 0
        %v1015 = vsel %vm884, %v1010, 0
        %1017 = vmatpush.bf16.msra.mxu0 0
        %1018 = vmatpush.bf16.msra.mxu0 0
        %1019 = vmatpush.bf16.msra.mxu0 0
        %1020 = vmatpush.bf16.msra.mxu0 0
        %1021 = vmatpush.bf16.msra.mxu0 0
        %1022 = vmatpush.bf16.msra.mxu0 0
        %1023 = vmatpush.bf16.msra.mxu0 0
        %1024 = vmatpush.bf16.msra.mxu0 %v1015
        %1025 = vmatmul.bf16.gmra.mxu0 %v1012
        %v1026 = vpop.f32.mrf.mxu0
        %v1027 = vadd.f32 0.0, %v1026
        %v1028 = vpop.f32.mrf.mxu0
        %1029 = vdwg.mxu0
        %v1030 = vpack.c.bf16 %v1027, %v1027
        %1032 = vrot.lane.b32.xlu0 %v1030, 64
        %v1033 = vpop.permute.xlu0 %1032
        %vm1035 = vcmask 781824
        %1036 = vst.msk [vmem:[#allocation2] sm:$0xf] %vm1035, %v1033
        %1037 = vrot.lane.b32.xlu0 %v847, 32
        %v1038 = vpop.permute.xlu0 %1037
        %1039 = vrot.lane.b32.xlu0 %v909, 32
        %v1040 = vpop.permute.xlu0 %1039
        %v1042 = vsel %vm848, %v1038, 0
        %v1045 = vsel %vm848, %v1040, 0
        %1047 = vmatpush.bf16.xpose.msra.mxu0 0
        %1048 = vmatpush.bf16.xpose.msra.mxu0 0
        %1049 = vmatpush.bf16.xpose.msra.mxu0 0
        %1050 = vmatpush.bf16.xpose.msra.mxu0 0
        %1051 = vmatpush.bf16.xpose.msra.mxu0 0
        %1052 = vmatpush.bf16.xpose.msra.mxu0 0
        %1053 = vmatpush.bf16.xpose.msra.mxu0 0
        %1054 = vmatpush.bf16.xpose.msra.mxu0 %v1045
        %1055 = vmatmul.bf16.gmra.mxu0 %v1042
        %v1056 = vpop.f32.mrf.mxu0
        %v1057 = vadd.f32 0.0, %v1056
        %v1058 = vpop.f32.mrf.mxu0
        %1059 = vdwg.mxu0
        %v1060 = vsel %vm868, %v1057, -inf
        %1061 = vmax.xlane.f32.xlu0 %v1060
        %v1062 = vpop.xlane.xlu0 %1061
        %v1063 = vsub.f32 %v1057, %v1062
        %v1064 = vmul.f32 %v1063, 1.442695
        %v1065 = vpow.pop %v1064
        %v1066 = vsel %vm868, %v1065, 0.0
        %1067 = vadd.xlane.f32.xlu0 %v1066
        %v1068 = vpop.xlane.xlu0 %1067
        %v1069 = vrcp.pop %v1068
        %v1070 = vmul.f32 %v1065, %v1069
        %v1071 = vpack.c.bf16 %v1070, %v1070
        %1072 = vrot.lane.b32.xlu0 %v945, 32
        %v1073 = vpop.permute.xlu0 %1072
        %v1075 = vsel %vm868, %v1071, 0
        %v1078 = vsel %vm884, %v1073, 0
        %1080 = vmatpush.bf16.msra.mxu0 0
        %1081 = vmatpush.bf16.msra.mxu0 0
        %1082 = vmatpush.bf16.msra.mxu0 0
        %1083 = vmatpush.bf16.msra.mxu0 0
        %1084 = vmatpush.bf16.msra.mxu0 0
        %1085 = vmatpush.bf16.msra.mxu0 0
        %1086 = vmatpush.bf16.msra.mxu0 0
        %1087 = vmatpush.bf16.msra.mxu0 %v1078
        %1088 = vmatmul.bf16.gmra.mxu0 %v1075
        %v1089 = vpop.f32.mrf.mxu0
        %v1090 = vadd.f32 0.0, %v1089
        %v1091 = vpop.f32.mrf.mxu0
        %1092 = vdwg.mxu0
        %v1093 = vpack.c.bf16 %v1090, %v1090
        %1095 = vrot.lane.b32.xlu0 %v1093, 96
        %v1096 = vpop.permute.xlu0 %1095
        %vm1098 = vcmask 1044224
        %1099 = vst.msk [vmem:[#allocation2] sm:$0xf] %vm1098, %v1096
        %v1100 = vld [vmem:[#allocation2] sm:$0xf]
        %v1101 = vld [vmem:[#allocation11] sm:$0xf]
        %v1102 = vld [vmem:[#allocation11 + $0x4] sm:$0xf]
        %v1103 = vld [vmem:[#allocation11 + $0x8] sm:$0xf]
        %v1104 = vld [vmem:[#allocation11 + $0xc] sm:$0xf]
        %v1105 = vld [vmem:[#allocation11 + $0x10] sm:$0xf]
        %v1106 = vld [vmem:[#allocation11 + $0x14] sm:$0xf]
        %v1107 = vld [vmem:[#allocation11 + $0x18] sm:$0xf]
        %v1108 = vld [vmem:[#allocation11 + $0x1c] sm:$0xf]
        %v1109 = vld [vmem:[#allocation11 + $0x20] sm:$0xf]
        %v1110 = vld [vmem:[#allocation11 + $0x24] sm:$0xf]
        %v1111 = vld [vmem:[#allocation11 + $0x28] sm:$0xf]
        %v1112 = vld [vmem:[#allocation11 + $0x2c] sm:$0xf]
        %v1113 = vld [vmem:[#allocation11 + $0x30] sm:$0xf]
        %v1114 = vld [vmem:[#allocation11 + $0x34] sm:$0xf]
        %v1115 = vld [vmem:[#allocation11 + $0x38] sm:$0xf]
        %v1116 = vld [vmem:[#allocation11 + $0x3c] sm:$0xf]
        %v1117 = vld [vmem:[#allocation12] sm:$0x1]
        %v1119 = vperm.slane %v1117, 0
        %v1137 = vunpack.c.l.b16 %v1101
        %v1138 = vunpack.c.l.b16 %v1102
        %v1139 = vunpack.c.l.b16 %v1103
        %v1140 = vunpack.c.l.b16 %v1104
        %v1141 = vunpack.c.l.b16 %v1105
        %v1142 = vunpack.c.l.b16 %v1106
        %v1143 = vunpack.c.l.b16 %v1107
        %v1144 = vunpack.c.l.b16 %v1108
        %v1145 = vunpack.c.l.b16 %v1109
        %v1146 = vunpack.c.l.b16 %v1110
        %v1147 = vunpack.c.l.b16 %v1111
        %v1148 = vunpack.c.l.b16 %v1112
        %v1149 = vunpack.c.l.b16 %v1113
        %v1150 = vunpack.c.l.b16 %v1114
        %v1151 = vunpack.c.l.b16 %v1115
        %v1152 = vunpack.c.l.b16 %v1116
        %v1153 = vpack.c.b16 %v1138, %v1137
        %v1154 = vpack.c.b16 %v1140, %v1139
        %v1155 = vpack.c.b16 %v1142, %v1141
        %v1156 = vpack.c.b16 %v1144, %v1143
        %v1157 = vpack.c.b16 %v1146, %v1145
        %v1158 = vpack.c.b16 %v1148, %v1147
        %v1159 = vpack.c.b16 %v1150, %v1149
        %v1160 = vpack.c.b16 %v1152, %v1151
        %1169 = vmatpush.bf16.msra.mxu0 %v1160
        %1170 = vmatpush.bf16.msra.mxu0 %v1159
        %1171 = vmatpush.bf16.msra.mxu0 %v1158
        %1172 = vmatpush.bf16.msra.mxu0 %v1157
        %1173 = vmatpush.bf16.msra.mxu0 %v1156
        %1174 = vmatpush.bf16.msra.mxu0 %v1155
        %1175 = vmatpush.bf16.msra.mxu0 %v1154
        %1176 = vmatpush.bf16.msra.mxu0 %v1153
        %1177 = vmatmul.bf16.gmra.mxu0 %v1100
        %v1178 = vpop.f32.mrf.mxu0
        %v1179 = vadd.f32 %v1119, %v1178
        %v1180 = vpop.f32.mrf.mxu0
        %1181 = vdwg.mxu0
        %v1182 = vadd.f32 %v598, %v1179
        %v1183 = vld [vmem:[#allocation14] sm:$0x1]
        %v1184 = vld [vmem:[#allocation15] sm:$0x1]
        %1185 = vadd.xlane.f32.xlu0 %v1182
        %v1186 = vpop.xlane.xlu0 %1185
        %v1187 = vmul.f32 %v1186, %v609
        %v1188 = vsub.f32 %v1182, %v1187
        %v1189 = vmul.f32 %v1188, %v1188
        %1190 = vadd.xlane.f32.xlu0 %v1189
        %v1191 = vpop.xlane.xlu0 %1190
        %v1192 = vmul.f32 %v1191, %v609
        %v1193 = vadd.f32 %v1192, 1e-05
        %v1194 = vrsqrt.pop %v1193
        %v1195 = vmul.f32 %v1194, %v1193
        %v1196 = vmul.f32 %v1195, %v1194
        %v1197 = vmul.f32 0.5, %v1196
        %v1198 = vsub.f32 1.5, %v1197
        %v1199 = vmul.f32 %v1194, %v1198
        %vm1200 = vweird.f32 %v1193
        %vm1201 = vweird.f32 %v1194
        %vm1202 = vmor %vm1200, %vm1201
        %v1203 = vsel %vm1202, %v1194, %v1199
        %v1204 = vmul.f32 %v1188, %v1203
        %v1206 = vperm.slane %v1183, 0
        %v1208 = vmul.f32 %v1204, %v1206
        %v1210 = vperm.slane %v1184, 0
        %v1212 = vadd.f32 %v1208, %v1210
        %v1213 = vpack.c.bf16 %v1212, %v1212
        %v1214 = vld [vmem:[#allocation17] sm:$0xff]
        %v1215 = vld [vmem:[#allocation17 + $0x8] sm:$0xff]
        %v1216 = vld [vmem:[#allocation17 + $0x10] sm:$0xff]
        %v1217 = vld [vmem:[#allocation17 + $0x18] sm:$0xff]
        %v1218 = vld [vmem:[#allocation17 + $0x20] sm:$0xff]
        %v1219 = vld [vmem:[#allocation17 + $0x28] sm:$0xff]
        %v1220 = vld [vmem:[#allocation17 + $0x30] sm:$0xff]
        %v1221 = vld [vmem:[#allocation17 + $0x38] sm:$0xff]
        %v1222 = vld [vmem:[#allocation17 + $0x40] sm:$0xff]
        %v1223 = vld [vmem:[#allocation17 + $0x48] sm:$0xff]
        %v1224 = vld [vmem:[#allocation17 + $0x50] sm:$0xff]
        %v1225 = vld [vmem:[#allocation17 + $0x58] sm:$0xff]
        %v1226 = vld [vmem:[#allocation17 + $0x60] sm:$0xff]
        %v1227 = vld [vmem:[#allocation17 + $0x68] sm:$0xff]
        %v1228 = vld [vmem:[#allocation17 + $0x70] sm:$0xff]
        %v1229 = vld [vmem:[#allocation17 + $0x78] sm:$0xff]
        %v1230 = vld [vmem:[#allocation17 + $0x80] sm:$0xff]
        %v1231 = vld [vmem:[#allocation17 + $0x88] sm:$0xff]
        %v1232 = vld [vmem:[#allocation17 + $0x90] sm:$0xff]
        %v1233 = vld [vmem:[#allocation17 + $0x98] sm:$0xff]
        %v1234 = vld [vmem:[#allocation17 + $0xa0] sm:$0xff]
        %v1235 = vld [vmem:[#allocation17 + $0xa8] sm:$0xff]
        %v1236 = vld [vmem:[#allocation17 + $0xb0] sm:$0xff]
        %v1237 = vld [vmem:[#allocation17 + $0xb8] sm:$0xff]
        %v1238 = vld [vmem:[#allocation17 + $0xc0] sm:$0xff]
        %v1239 = vld [vmem:[#allocation17 + $0xc8] sm:$0xff]
        %v1240 = vld [vmem:[#allocation17 + $0xd0] sm:$0xff]
        %v1241 = vld [vmem:[#allocation17 + $0xd8] sm:$0xff]
        %v1242 = vld [vmem:[#allocation17 + $0xe0] sm:$0xff]
        %v1243 = vld [vmem:[#allocation17 + $0xe8] sm:$0xff]
        %v1244 = vld [vmem:[#allocation17 + $0xf0] sm:$0xff]
        %v1245 = vld [vmem:[#allocation17 + $0xf8] sm:$0xff]
        %v1246 = vld [vmem:[%s10] sm:$0xf]
        %v1248 = vperm.slane %v1246, 0
        %v1249 = vperm.slane %v1246, 1
        %v1250 = vperm.slane %v1246, 2
        %v1251 = vperm.slane %v1246, 3
        %v1288 = vunpack.c.l.b16 %v1214
        %v1289 = vunpack.c.h.b16 %v1214
        %v1290 = vunpack.c.l.b16 %v1215
        %v1291 = vunpack.c.h.b16 %v1215
        %v1292 = vunpack.c.l.b16 %v1216
        %v1293 = vunpack.c.h.b16 %v1216
        %v1294 = vunpack.c.l.b16 %v1217
        %v1295 = vunpack.c.h.b16 %v1217
        %v1296 = vunpack.c.l.b16 %v1218
        %v1297 = vunpack.c.h.b16 %v1218
        %v1298 = vunpack.c.l.b16 %v1219
        %v1299 = vunpack.c.h.b16 %v1219
        %v1300 = vunpack.c.l.b16 %v1220
        %v1301 = vunpack.c.h.b16 %v1220
        %v1302 = vunpack.c.l.b16 %v1221
        %v1303 = vunpack.c.h.b16 %v1221
        %v1304 = vunpack.c.l.b16 %v1222
        %v1305 = vunpack.c.h.b16 %v1222
        %v1306 = vunpack.c.l.b16 %v1223
        %v1307 = vunpack.c.h.b16 %v1223
        %v1308 = vunpack.c.l.b16 %v1224
        %v1309 = vunpack.c.h.b16 %v1224
        %v1310 = vunpack.c.l.b16 %v1225
        %v1311 = vunpack.c.h.b16 %v1225
        %v1312 = vunpack.c.l.b16 %v1226
        %v1313 = vunpack.c.h.b16 %v1226
        %v1314 = vunpack.c.l.b16 %v1227
        %v1315 = vunpack.c.h.b16 %v1227
        %v1316 = vunpack.c.l.b16 %v1228
        %v1317 = vunpack.c.h.b16 %v1228
        %v1318 = vunpack.c.l.b16 %v1229
        %v1319 = vunpack.c.h.b16 %v1229
        %v1320 = vunpack.c.l.b16 %v1230
        %v1321 = vunpack.c.h.b16 %v1230
        %v1322 = vunpack.c.l.b16 %v1231
        %v1323 = vunpack.c.h.b16 %v1231
        %v1324 = vunpack.c.l.b16 %v1232
        %v1325 = vunpack.c.h.b16 %v1232
        %v1326 = vunpack.c.l.b16 %v1233
        %v1327 = vunpack.c.h.b16 %v1233
        %v1328 = vunpack.c.l.b16 %v1234
        %v1329 = vunpack.c.h.b16 %v1234
        %v1330 = vunpack.c.l.b16 %v1235
        %v1331 = vunpack.c.h.b16 %v1235
        %v1332 = vunpack.c.l.b16 %v1236
        %v1333 = vunpack.c.h.b16 %v1236
        %v1334 = vunpack.c.l.b16 %v1237
        %v1335 = vunpack.c.h.b16 %v1237
        %v1336 = vunpack.c.l.b16 %v1238
        %v1337 = vunpack.c.h.b16 %v1238
        %v1338 = vunpack.c.l.b16 %v1239
        %v1339 = vunpack.c.h.b16 %v1239
        %v1340 = vunpack.c.l.b16 %v1240
        %v1341 = vunpack.c.h.b16 %v1240
        %v1342 = vunpack.c.l.b16 %v1241
        %v1343 = vunpack.c.h.b16 %v1241
        %v1344 = vunpack.c.l.b16 %v1242
        %v1345 = vunpack.c.h.b16 %v1242
        %v1346 = vunpack.c.l.b16 %v1243
        %v1347 = vunpack.c.h.b16 %v1243
        %v1348 = vunpack.c.l.b16 %v1244
        %v1349 = vunpack.c.h.b16 %v1244
        %v1350 = vunpack.c.l.b16 %v1245
        %v1351 = vunpack.c.h.b16 %v1245
        %v1352 = vpack.c.b16 %v1292, %v1288
        %v1353 = vpack.c.b16 %v1293, %v1289
        %v1354 = vpack.c.b16 %v1294, %v1290
        %v1355 = vpack.c.b16 %v1295, %v1291
        %v1356 = vpack.c.b16 %v1300, %v1296
        %v1357 = vpack.c.b16 %v1301, %v1297
        %v1358 = vpack.c.b16 %v1302, %v1298
        %v1359 = vpack.c.b16 %v1303, %v1299
        %v1360 = vpack.c.b16 %v1308, %v1304
        %v1361 = vpack.c.b16 %v1309, %v1305
        %v1362 = vpack.c.b16 %v1310, %v1306
        %v1363 = vpack.c.b16 %v1311, %v1307
        %v1364 = vpack.c.b16 %v1316, %v1312
        %v1365 = vpack.c.b16 %v1317, %v1313
        %v1366 = vpack.c.b16 %v1318, %v1314
        %v1367 = vpack.c.b16 %v1319, %v1315
        %v1368 = vpack.c.b16 %v1324, %v1320
        %v1369 = vpack.c.b16 %v1325, %v1321
        %v1370 = vpack.c.b16 %v1326, %v1322
        %v1371 = vpack.c.b16 %v1327, %v1323
        %v1372 = vpack.c.b16 %v1332, %v1328
        %v1373 = vpack.c.b16 %v1333, %v1329
        %v1374 = vpack.c.b16 %v1334, %v1330
        %v1375 = vpack.c.b16 %v1335, %v1331
        %v1376 = vpack.c.b16 %v1340, %v1336
        %v1377 = vpack.c.b16 %v1341, %v1337
        %v1378 = vpack.c.b16 %v1342, %v1338
        %v1379 = vpack.c.b16 %v1343, %v1339
        %v1380 = vpack.c.b16 %v1348, %v1344
        %v1381 = vpack.c.b16 %v1349, %v1345
        %v1382 = vpack.c.b16 %v1350, %v1346
        %v1383 = vpack.c.b16 %v1351, %v1347
        %1416 = vmatpush.bf16.msra.mxu0 %v1380
        %1417 = vmatpush.bf16.msra.mxu0 %v1376
        %1418 = vmatpush.bf16.msra.mxu0 %v1372
        %1419 = vmatpush.bf16.msra.mxu0 %v1368
        %1420 = vmatpush.bf16.msra.mxu0 %v1364
        %1421 = vmatpush.bf16.msra.mxu0 %v1360
        %1422 = vmatpush.bf16.msra.mxu0 %v1356
        %1423 = vmatpush.bf16.msra.mxu0 %v1352
        %1424 = vmatmul.bf16.gmra.mxu0 %v1213
        %v1425 = vpop.f32.mrf.mxu0
        %v1426 = vadd.f32 %v1248, %v1425
        %v1427 = vpop.f32.mrf.mxu0
        %1428 = vdwg.mxu0
        %1429 = vmatpush.bf16.msra.mxu0 %v1381
        %1430 = vmatpush.bf16.msra.mxu0 %v1377
        %1431 = vmatpush.bf16.msra.mxu0 %v1373
        %1432 = vmatpush.bf16.msra.mxu0 %v1369
        %1433 = vmatpush.bf16.msra.mxu0 %v1365
        %1434 = vmatpush.bf16.msra.mxu0 %v1361
        %1435 = vmatpush.bf16.msra.mxu0 %v1357
        %1436 = vmatpush.bf16.msra.mxu0 %v1353
        %1437 = vmatmul.bf16.gmra.mxu0 %v1213
        %v1438 = vpop.f32.mrf.mxu0
        %v1439 = vadd.f32 %v1249, %v1438
        %v1440 = vpop.f32.mrf.mxu0
        %1441 = vdwg.mxu0
        %1442 = vmatpush.bf16.msra.mxu0 %v1382
        %1443 = vmatpush.bf16.msra.mxu0 %v1378
        %1444 = vmatpush.bf16.msra.mxu0 %v1374
        %1445 = vmatpush.bf16.msra.mxu0 %v1370
        %1446 = vmatpush.bf16.msra.mxu0 %v1366
        %1447 = vmatpush.bf16.msra.mxu0 %v1362
        %1448 = vmatpush.bf16.msra.mxu0 %v1358
        %1449 = vmatpush.bf16.msra.mxu0 %v1354
        %1450 = vmatmul.bf16.gmra.mxu0 %v1213
        %v1451 = vpop.f32.mrf.mxu0
        %v1452 = vadd.f32 %v1250, %v1451
        %v1453 = vpop.f32.mrf.mxu0
        %1454 = vdwg.mxu0
        %1455 = vmatpush.bf16.msra.mxu0 %v1383
        %1456 = vmatpush.bf16.msra.mxu0 %v1379
        %1457 = vmatpush.bf16.msra.mxu0 %v1375
        %1458 = vmatpush.bf16.msra.mxu0 %v1371
        %1459 = vmatpush.bf16.msra.mxu0 %v1367
        %1460 = vmatpush.bf16.msra.mxu0 %v1363
        %1461 = vmatpush.bf16.msra.mxu0 %v1359
        %1462 = vmatpush.bf16.msra.mxu0 %v1355
        %1463 = vmatmul.bf16.gmra.mxu0 %v1213
        %v1464 = vpop.f32.mrf.mxu0
        %v1465 = vadd.f32 %v1251, %v1464
        %v1466 = vpop.f32.mrf.mxu0
        %1467 = vdwg.mxu0
        %v1468 = vmul.f32 %v1426, 1.702
        %v1469 = vmul.f32 %v1439, 1.702
        %v1470 = vmul.f32 %v1452, 1.702
        %v1471 = vmul.f32 %v1465, 1.702
        %v1472 = vxor.u32 %v1468, 2147483648
        %v1473 = vxor.u32 %v1469, 2147483648
        %v1474 = vxor.u32 %v1470, 2147483648
        %v1475 = vxor.u32 %v1471, 2147483648
        %v1476 = vmul.f32 %v1472, 1.442695
        %v1477 = vpow.pop %v1476
        %v1478 = vmul.f32 %v1473, 1.442695
        %v1479 = vpow.pop %v1478
        %v1480 = vmul.f32 %v1474, 1.442695
        %v1481 = vpow.pop %v1480
        %v1482 = vmul.f32 %v1475, 1.442695
        %v1483 = vpow.pop %v1482
        %v1484 = vadd.f32 %v1477, 1.0
        %v1485 = vadd.f32 %v1479, 1.0
        %v1486 = vadd.f32 %v1481, 1.0
        %v1487 = vadd.f32 %v1483, 1.0
        %v1488 = vrcp.pop %v1484
        %v1489 = vmul.f32 %v1484, %v1488
        %v1490 = vsub.f32 1.0, %v1489
        %v1491 = vmul.f32 %v1488, %v1490
        %v1492 = vadd.f32 %v1488, %v1491
        %vm1493 = vweird.f32 %v1484
        %vm1494 = vweird.f32 %v1488
        %vm1495 = vmor %vm1493, %vm1494
        %v1496 = vsel %vm1495, %v1488, %v1492
        %v1497 = vand.u32 2147483647, %v1484
        %vm1498 = vcmp.eq.f32.partialorder %v1497, 8.507059e+37
        %v1499 = vand.u32 %v1484, 2147483648
        %v1500 = vor.u32 1.1754944e-38, %v1499
        %v1501 = vsel %vm1498, %v1500, %v1496
        %v1502 = vmul.f32 1.0, %v1501
        %v1503 = vrcp.pop %v1485
        %v1504 = vmul.f32 %v1485, %v1503
        %v1505 = vsub.f32 1.0, %v1504
        %v1506 = vmul.f32 %v1503, %v1505
        %v1507 = vadd.f32 %v1503, %v1506
        %vm1508 = vweird.f32 %v1485
        %vm1509 = vweird.f32 %v1503
        %vm1510 = vmor %vm1508, %vm1509
        %v1511 = vsel %vm1510, %v1503, %v1507
        %v1512 = vand.u32 2147483647, %v1485
        %vm1513 = vcmp.eq.f32.partialorder %v1512, 8.507059e+37
        %v1514 = vand.u32 %v1485, 2147483648
        %v1515 = vor.u32 1.1754944e-38, %v1514
        %v1516 = vsel %vm1513, %v1515, %v1511
        %v1517 = vmul.f32 1.0, %v1516
        %v1518 = vrcp.pop %v1486
        %v1519 = vmul.f32 %v1486, %v1518
        %v1520 = vsub.f32 1.0, %v1519
        %v1521 = vmul.f32 %v1518, %v1520
        %v1522 = vadd.f32 %v1518, %v1521
        %vm1523 = vweird.f32 %v1486
        %vm1524 = vweird.f32 %v1518
        %vm1525 = vmor %vm1523, %vm1524
        %v1526 = vsel %vm1525, %v1518, %v1522
        %v1527 = vand.u32 2147483647, %v1486
        %vm1528 = vcmp.eq.f32.partialorder %v1527, 8.507059e+37
        %v1529 = vand.u32 %v1486, 2147483648
        %v1530 = vor.u32 1.1754944e-38, %v1529
        %v1531 = vsel %vm1528, %v1530, %v1526
        %v1532 = vmul.f32 1.0, %v1531
        %v1533 = vrcp.pop %v1487
        %v1534 = vmul.f32 %v1487, %v1533
        %v1535 = vsub.f32 1.0, %v1534
        %v1536 = vmul.f32 %v1533, %v1535
        %v1537 = vadd.f32 %v1533, %v1536
        %vm1538 = vweird.f32 %v1487
        %vm1539 = vweird.f32 %v1533
        %vm1540 = vmor %vm1538, %vm1539
        %v1541 = vsel %vm1540, %v1533, %v1537
        %v1542 = vand.u32 2147483647, %v1487
        %vm1543 = vcmp.eq.f32.partialorder %v1542, 8.507059e+37
        %v1544 = vand.u32 %v1487, 2147483648
        %v1545 = vor.u32 1.1754944e-38, %v1544
        %v1546 = vsel %vm1543, %v1545, %v1541
        %v1547 = vmul.f32 1.0, %v1546
        %v1548 = vmul.f32 %v1426, %v1502
        %v1549 = vmul.f32 %v1439, %v1517
        %v1550 = vmul.f32 %v1452, %v1532
        %v1551 = vmul.f32 %v1465, %v1547
        %v1552 = vpack.c.bf16 %v1548, %v1548
        %v1553 = vpack.c.bf16 %v1549, %v1549
        %v1554 = vpack.c.bf16 %v1550, %v1550
        %v1555 = vpack.c.bf16 %v1551, %v1551
        %v1556 = vld [vmem:[#allocation18] sm:$0xf]
        %v1557 = vld [vmem:[#allocation18 + $0x4] sm:$0xf]
        %v1558 = vld [vmem:[#allocation18 + $0x8] sm:$0xf]
        %v1559 = vld [vmem:[#allocation18 + $0xc] sm:$0xf]
        %v1560 = vld [vmem:[#allocation18 + $0x10] sm:$0xf]
        %v1561 = vld [vmem:[#allocation18 + $0x14] sm:$0xf]
        %v1562 = vld [vmem:[#allocation18 + $0x18] sm:$0xf]
        %v1563 = vld [vmem:[#allocation18 + $0x1c] sm:$0xf]
        %v1564 = vld [vmem:[#allocation18 + $0x20] sm:$0xf]
        %v1565 = vld [vmem:[#allocation18 + $0x24] sm:$0xf]
        %v1566 = vld [vmem:[#allocation18 + $0x28] sm:$0xf]
        %v1567 = vld [vmem:[#allocation18 + $0x2c] sm:$0xf]
        %v1568 = vld [vmem:[#allocation18 + $0x30] sm:$0xf]
        %v1569 = vld [vmem:[#allocation18 + $0x34] sm:$0xf]
        %v1570 = vld [vmem:[#allocation18 + $0x38] sm:$0xf]
        %v1571 = vld [vmem:[#allocation18 + $0x3c] sm:$0xf]
        %v1572 = vld [vmem:[#allocation18 + $0x40] sm:$0xf]
        %v1573 = vld [vmem:[#allocation18 + $0x44] sm:$0xf]
        %v1574 = vld [vmem:[#allocation18 + $0x48] sm:$0xf]
        %v1575 = vld [vmem:[#allocation18 + $0x4c] sm:$0xf]
        %v1576 = vld [vmem:[#allocation18 + $0x50] sm:$0xf]
        %v1577 = vld [vmem:[#allocation18 + $0x54] sm:$0xf]
        %v1578 = vld [vmem:[#allocation18 + $0x58] sm:$0xf]
        %v1579 = vld [vmem:[#allocation18 + $0x5c] sm:$0xf]
        %v1580 = vld [vmem:[#allocation18 + $0x60] sm:$0xf]
        %v1581 = vld [vmem:[#allocation18 + $0x64] sm:$0xf]
        %v1582 = vld [vmem:[#allocation18 + $0x68] sm:$0xf]
        %v1583 = vld [vmem:[#allocation18 + $0x6c] sm:$0xf]
        %v1584 = vld [vmem:[#allocation18 + $0x70] sm:$0xf]
        %v1585 = vld [vmem:[#allocation18 + $0x74] sm:$0xf]
        %v1586 = vld [vmem:[#allocation18 + $0x78] sm:$0xf]
        %v1587 = vld [vmem:[#allocation18 + $0x7c] sm:$0xf]
        %v1588 = vld [vmem:[#allocation18 + $0x80] sm:$0xf]
        %v1589 = vld [vmem:[#allocation18 + $0x84] sm:$0xf]
        %v1590 = vld [vmem:[#allocation18 + $0x88] sm:$0xf]
        %v1591 = vld [vmem:[#allocation18 + $0x8c] sm:$0xf]
        %v1592 = vld [vmem:[#allocation18 + $0x90] sm:$0xf]
        %v1593 = vld [vmem:[#allocation18 + $0x94] sm:$0xf]
        %v1594 = vld [vmem:[#allocation18 + $0x98] sm:$0xf]
        %v1595 = vld [vmem:[#allocation18 + $0x9c] sm:$0xf]
        %v1596 = vld [vmem:[#allocation18 + $0xa0] sm:$0xf]
        %v1597 = vld [vmem:[#allocation18 + $0xa4] sm:$0xf]
        %v1598 = vld [vmem:[#allocation18 + $0xa8] sm:$0xf]
        %v1599 = vld [vmem:[#allocation18 + $0xac] sm:$0xf]
        %v1600 = vld [vmem:[#allocation18 + $0xb0] sm:$0xf]
        %v1601 = vld [vmem:[#allocation18 + $0xb4] sm:$0xf]
        %v1602 = vld [vmem:[#allocation18 + $0xb8] sm:$0xf]
        %v1603 = vld [vmem:[#allocation18 + $0xbc] sm:$0xf]
        %v1604 = vld [vmem:[#allocation18 + $0xc0] sm:$0xf]
        %v1605 = vld [vmem:[#allocation18 + $0xc4] sm:$0xf]
        %v1606 = vld [vmem:[#allocation18 + $0xc8] sm:$0xf]
        %v1607 = vld [vmem:[#allocation18 + $0xcc] sm:$0xf]
        %v1608 = vld [vmem:[#allocation18 + $0xd0] sm:$0xf]
        %v1609 = vld [vmem:[#allocation18 + $0xd4] sm:$0xf]
        %v1610 = vld [vmem:[#allocation18 + $0xd8] sm:$0xf]
        %v1611 = vld [vmem:[#allocation18 + $0xdc] sm:$0xf]
        %v1612 = vld [vmem:[#allocation18 + $0xe0] sm:$0xf]
        %v1613 = vld [vmem:[#allocation18 + $0xe4] sm:$0xf]
        %v1614 = vld [vmem:[#allocation18 + $0xe8] sm:$0xf]
        %v1615 = vld [vmem:[#allocation18 + $0xec] sm:$0xf]
        %v1616 = vld [vmem:[#allocation18 + $0xf0] sm:$0xf]
        %v1617 = vld [vmem:[#allocation18 + $0xf4] sm:$0xf]
        %v1618 = vld [vmem:[#allocation18 + $0xf8] sm:$0xf]
        %v1619 = vld [vmem:[#allocation18 + $0xfc] sm:$0xf]
        %v1620 = vld [vmem:[%s12] sm:$0x1]
        %v1622 = vperm.slane %v1620, 0
        %v1688 = vunpack.c.l.b16 %v1556
        %v1689 = vunpack.c.l.b16 %v1557
        %v1690 = vunpack.c.l.b16 %v1558
        %v1691 = vunpack.c.l.b16 %v1559
        %v1692 = vunpack.c.l.b16 %v1560
        %v1693 = vunpack.c.l.b16 %v1561
        %v1694 = vunpack.c.l.b16 %v1562
        %v1695 = vunpack.c.l.b16 %v1563
        %v1696 = vunpack.c.l.b16 %v1564
        %v1697 = vunpack.c.l.b16 %v1565
        %v1698 = vunpack.c.l.b16 %v1566
        %v1699 = vunpack.c.l.b16 %v1567
        %v1700 = vunpack.c.l.b16 %v1568
        %v1701 = vunpack.c.l.b16 %v1569
        %v1702 = vunpack.c.l.b16 %v1570
        %v1703 = vunpack.c.l.b16 %v1571
        %v1704 = vunpack.c.l.b16 %v1572
        %v1705 = vunpack.c.l.b16 %v1573
        %v1706 = vunpack.c.l.b16 %v1574
        %v1707 = vunpack.c.l.b16 %v1575
        %v1708 = vunpack.c.l.b16 %v1576
        %v1709 = vunpack.c.l.b16 %v1577
        %v1710 = vunpack.c.l.b16 %v1578
        %v1711 = vunpack.c.l.b16 %v1579
        %v1712 = vunpack.c.l.b16 %v1580
        %v1713 = vunpack.c.l.b16 %v1581
        %v1714 = vunpack.c.l.b16 %v1582
        %v1715 = vunpack.c.l.b16 %v1583
        %v1716 = vunpack.c.l.b16 %v1584
        %v1717 = vunpack.c.l.b16 %v1585
        %v1718 = vunpack.c.l.b16 %v1586
        %v1719 = vunpack.c.l.b16 %v1587
        %v1720 = vunpack.c.l.b16 %v1588
        %v1721 = vunpack.c.l.b16 %v1589
        %v1722 = vunpack.c.l.b16 %v1590
        %v1723 = vunpack.c.l.b16 %v1591
        %v1724 = vunpack.c.l.b16 %v1592
        %v1725 = vunpack.c.l.b16 %v1593
        %v1726 = vunpack.c.l.b16 %v1594
        %v1727 = vunpack.c.l.b16 %v1595
        %v1728 = vunpack.c.l.b16 %v1596
        %v1729 = vunpack.c.l.b16 %v1597
        %v1730 = vunpack.c.l.b16 %v1598
        %v1731 = vunpack.c.l.b16 %v1599
        %v1732 = vunpack.c.l.b16 %v1600
        %v1733 = vunpack.c.l.b16 %v1601
        %v1734 = vunpack.c.l.b16 %v1602
        %v1735 = vunpack.c.l.b16 %v1603
        %v1736 = vunpack.c.l.b16 %v1604
        %v1737 = vunpack.c.l.b16 %v1605
        %v1738 = vunpack.c.l.b16 %v1606
        %v1739 = vunpack.c.l.b16 %v1607
        %v1740 = vunpack.c.l.b16 %v1608
        %v1741 = vunpack.c.l.b16 %v1609
        %v1742 = vunpack.c.l.b16 %v1610
        %v1743 = vunpack.c.l.b16 %v1611
        %v1744 = vunpack.c.l.b16 %v1612
        %v1745 = vunpack.c.l.b16 %v1613
        %v1746 = vunpack.c.l.b16 %v1614
        %v1747 = vunpack.c.l.b16 %v1615
        %v1748 = vunpack.c.l.b16 %v1616
        %v1749 = vunpack.c.l.b16 %v1617
        %v1750 = vunpack.c.l.b16 %v1618
        %v1751 = vunpack.c.l.b16 %v1619
        %v1752 = vpack.c.b16 %v1689, %v1688
        %v1753 = vpack.c.b16 %v1691, %v1690
        %v1754 = vpack.c.b16 %v1693, %v1692
        %v1755 = vpack.c.b16 %v1695, %v1694
        %v1756 = vpack.c.b16 %v1697, %v1696
        %v1757 = vpack.c.b16 %v1699, %v1698
        %v1758 = vpack.c.b16 %v1701, %v1700
        %v1759 = vpack.c.b16 %v1703, %v1702
        %v1760 = vpack.c.b16 %v1705, %v1704
        %v1761 = vpack.c.b16 %v1707, %v1706
        %v1762 = vpack.c.b16 %v1709, %v1708
        %v1763 = vpack.c.b16 %v1711, %v1710
        %v1764 = vpack.c.b16 %v1713, %v1712
        %v1765 = vpack.c.b16 %v1715, %v1714
        %v1766 = vpack.c.b16 %v1717, %v1716
        %v1767 = vpack.c.b16 %v1719, %v1718
        %v1768 = vpack.c.b16 %v1721, %v1720
        %v1769 = vpack.c.b16 %v1723, %v1722
        %v1770 = vpack.c.b16 %v1725, %v1724
        %v1771 = vpack.c.b16 %v1727, %v1726
        %v1772 = vpack.c.b16 %v1729, %v1728
        %v1773 = vpack.c.b16 %v1731, %v1730
        %v1774 = vpack.c.b16 %v1733, %v1732
        %v1775 = vpack.c.b16 %v1735, %v1734
        %v1776 = vpack.c.b16 %v1737, %v1736
        %v1777 = vpack.c.b16 %v1739, %v1738
        %v1778 = vpack.c.b16 %v1741, %v1740
        %v1779 = vpack.c.b16 %v1743, %v1742
        %v1780 = vpack.c.b16 %v1745, %v1744
        %v1781 = vpack.c.b16 %v1747, %v1746
        %v1782 = vpack.c.b16 %v1749, %v1748
        %v1783 = vpack.c.b16 %v1751, %v1750
        %1816 = vmatpush.bf16.msra.mxu0 %v1759
        %1817 = vmatpush.bf16.msra.mxu0 %v1758
        %1818 = vmatpush.bf16.msra.mxu0 %v1757
        %1819 = vmatpush.bf16.msra.mxu0 %v1756
        %1820 = vmatpush.bf16.msra.mxu0 %v1755
        %1821 = vmatpush.bf16.msra.mxu0 %v1754
        %1822 = vmatpush.bf16.msra.mxu0 %v1753
        %1823 = vmatpush.bf16.msra.mxu0 %v1752
        %1824 = vmatmul.bf16.gmra.mxu0 %v1552
        %v1825 = vpop.f32.mrf.mxu0
        %v1826 = vadd.f32 %v1622, %v1825
        %v1827 = vpop.f32.mrf.mxu0
        %1828 = vdwg.mxu0
        %1829 = vmatpush.bf16.msra.mxu0 %v1767
        %1830 = vmatpush.bf16.msra.mxu0 %v1766
        %1831 = vmatpush.bf16.msra.mxu0 %v1765
        %1832 = vmatpush.bf16.msra.mxu0 %v1764
        %1833 = vmatpush.bf16.msra.mxu0 %v1763
        %1834 = vmatpush.bf16.msra.mxu0 %v1762
        %1835 = vmatpush.bf16.msra.mxu0 %v1761
        %1836 = vmatpush.bf16.msra.mxu0 %v1760
        %1837 = vmatmul.bf16.gmra.mxu0 %v1553
        %v1838 = vpop.f32.mrf.mxu0
        %v1839 = vadd.f32 %v1826, %v1838
        %v1840 = vpop.f32.mrf.mxu0
        %1841 = vdwg.mxu0
        %1842 = vmatpush.bf16.msra.mxu0 %v1775
        %1843 = vmatpush.bf16.msra.mxu0 %v1774
        %1844 = vmatpush.bf16.msra.mxu0 %v1773
        %1845 = vmatpush.bf16.msra.mxu0 %v1772
        %1846 = vmatpush.bf16.msra.mxu0 %v1771
        %1847 = vmatpush.bf16.msra.mxu0 %v1770
        %1848 = vmatpush.bf16.msra.mxu0 %v1769
        %1849 = vmatpush.bf16.msra.mxu0 %v1768
        %1850 = vmatmul.bf16.gmra.mxu0 %v1554
        %v1851 = vpop.f32.mrf.mxu0
        %v1852 = vadd.f32 %v1839, %v1851
        %v1853 = vpop.f32.mrf.mxu0
        %1854 = vdwg.mxu0
        %1855 = vmatpush.bf16.msra.mxu0 %v1783
        %1856 = vmatpush.bf16.msra.mxu0 %v1782
        %1857 = vmatpush.bf16.msra.mxu0 %v1781
        %1858 = vmatpush.bf16.msra.mxu0 %v1780
        %1859 = vmatpush.bf16.msra.mxu0 %v1779
        %1860 = vmatpush.bf16.msra.mxu0 %v1778
        %1861 = vmatpush.bf16.msra.mxu0 %v1777
        %1862 = vmatpush.bf16.msra.mxu0 %v1776
        %1863 = vmatmul.bf16.gmra.mxu0 %v1555
        %v1864 = vpop.f32.mrf.mxu0
        %v1865 = vadd.f32 %v1852, %v1864
        %v1866 = vpop.f32.mrf.mxu0
        %1867 = vdwg.mxu0
        %v1868 = vadd.f32 %v1182, %v1865
        %1869 = vst [vmem:[%s596] sm:$0xff] %v1868
        %s1870 = sand.u32 %s321, 1
        %s1871 = scalar_lea.sflag [#allocation5], %s1870
        %s1872 = sand.u32 %s321, 1
        %s1873 = smul.addr %s1872, 8
        %s1874 = scalar_lea.vmem [#allocation20], %s1873
        // Predicated region
        $region113: #{tpu_custom_call.1} parent=71 // pred_check
          %p1875 = pneg %p331
        $region114: #{tpu_custom_call.1} parent=71 // pred_check_branch
          %1877 = sbr.rel (%p1875) target = $region116
        $region115: #{tpu_custom_call.1} parent=71 // pred_region
          %1879 = vsyncadd %s1871, 0
          %s1880 = smul.addr %s35, 8
          %s1881 = scalar_lea.hbm %s13, %s1880
          %s1883 = sshll.u32 %s1874, 4
          %s1884 = int_to_ptr.vmem [resolvable:$true] %s1883
          %s1885 = sshll.u32 %s1881, 4
          %s1886 = int_to_ptr.hbm [resolvable:$true] %s1885
          %1888 = dma.vmem_to_hbm [thread:$0]  %s1884, 128, %s1886, %s1871
        $region116: #{tpu_custom_call.1} parent=71 // pred_fallthru
          _
      $region72: #{tpu_custom_call.1} parent=5 // pred_fallthru
        _
      %p1889 = scmp.le.s32.totalorder 2, %s30
      // Predicated region
      $region117: #{tpu_custom_call.1} parent=5 // pred_check
        %p1890 = pneg %p1889
      $region118: #{tpu_custom_call.1} parent=5 // pred_check_branch
        %1892 = sbr.rel (%p1890) target = $region120
      $region119: #{tpu_custom_call.1} parent=5 // pred_region
        %s1893 = ssub.s32 %s30, 2
        // Predicated region
        $region121: #{tpu_custom_call.1} parent=119 // pred_check
          %p1894 = pneg %p337
        $region122: #{tpu_custom_call.1} parent=119 // pred_check_branch
          %1896 = sbr.rel (%p1894) target = $region124
        $region123: #{tpu_custom_call.1} parent=119 // pred_region
          %s1897 = sand.u32 %s322, 1
          %s1898 = scalar_lea.sflag [#allocation5], %s1897
          %s1899 = sand.u32 %s322, 1
          %s1900 = smul.addr %s1899, 8
          %s1901 = scalar_lea.vmem [#allocation20], %s1900
          %1903 = dma.done %s1898, 128
        $region124: #{tpu_custom_call.1} parent=119 // pred_fallthru
          _
      $region120: #{tpu_custom_call.1} parent=5 // pred_fallthru
        _
    $region6: #{tpu_custom_call.1} parent=1 // loop_footer
      %s34 = sadd.s32 1, %s30
    $region7: #{tpu_custom_call.1} parent=1 // loop_footer_branch
      %29 = sbr.rel target = $region3
    $region8: #{tpu_custom_call.1} parent=1 // loop_exit
      _
    %1904 = vsyncpa [#allocation4], 1
    %s1905 = scalar_lea.sflag [#allocation4], 1
    %1906 = vsyncpa %s1905, 1
    %1907 = vsyncpa [#allocation7], 1
    %1908 = vsyncpa [#allocation10], 1
    %1909 = vsyncpa [#allocation13], 1
    %1910 = vsyncpa [#allocation16], 1
    %1911 = vsyncpa [#allocation19], 1
    %1912 = vsyncpa [#allocation5], 1
    %s1913 = scalar_lea.sflag [#allocation5], 1
    %1914 = vsyncpa %s1913, 1

// kernel: tpu_custom_call.1
$region0: #{tpu_custom_call.1}
  #allocation0 [shape = 'u32[]', space=smem, size = 0x4, offset = 0x4, fixed_abs, tag = 'smem constant byte address 0x4 - core index']
  #allocation1 [shape = 'u32[72,128]{1,0:T(1,128)}', space=vmem, size = 0x9000, scoped, tag = 'internal scratch']
  #allocation2 [shape = 'bf16[8,128]{1,0:T(8,128)(2,1)}', space=vmem, size = 0x800, scoped, tag = 'scratch operand']
  %s0 = inlined_call_operand.hbm [shape: f32[2,8,128], index: 0, kind: input, shape index: {}]
  %s1 = inlined_call_operand.hbm [shape: f32[1,128], index: 1, kind: input, shape index: {}]
  %s2 = inlined_call_operand.hbm [shape: f32[1,128], index: 2, kind: input, shape index: {}]
  %s3 = inlined_call_operand.hbm [shape: bf16[128,384], index: 3, kind: input, shape index: {}]
  %s4 = inlined_call_operand.vmem [shape: f32[1,384], index: 4, kind: input, shape index: {}]
  %s5 = inlined_call_operand.hbm [shape: bf16[128,128], index: 5, kind: input, shape index: {}]
  %s6 = inlined_call_operand.hbm [shape: f32[1,128], index: 6, kind: input, shape index: {}]
  %s7 = inlined_call_operand.hbm [shape: f32[1,128], index: 7, kind: input, shape index: {}]
  %s8 = inlined_call_operand.hbm [shape: f32[1,128], index: 8, kind: input, shape index: {}]
  %s9 = inlined_call_operand.hbm [shape: bf16[128,512], index: 9, kind: input, shape index: {}]
  %s10 = inlined_call_operand.vmem [shape: f32[1,512], index: 10, kind: input, shape index: {}]
  %s11 = inlined_call_operand.hbm [shape: bf16[512,128], index: 11, kind: input, shape index: {}]
  %s12 = inlined_call_operand.vmem [shape: f32[1,128], index: 12, kind: input, shape index: {}]
  %s13 = inlined_call_operand.hbm [shape: f32[2,8,128], index: 13, kind: output, shape index: {}]
  %s14 = sld [smem:[#allocation0]]
  $region125: #{tpu_custom_call.1} parent=0
    _
  %s16 = ssub.s32 1, %s14
  %s17 = scalar_select 0, %s16, %s14
  $region1: #{tpu_custom_call.1} parent=0
    #allocation3 [shape = 'u8[8192]{0}', space=vmem, size = 0x2000, scoped, tag = 'input window, operand 0']
    #allocation4 [shape = 's32[2]{0}', space=sflag, size = 0x8, scoped, tag = 'scoped memory for tpu_custom_call.1']
    #allocation5 [shape = 's32[2]{0}', space=sflag, size = 0x8, scoped, tag = 'scoped memory for tpu_custom_call.1']
    #allocation6 [shape = 'u8[512]{0}', space=vmem, size = 0x400, scoped, tag = 'input window, operand 1, single buffered']
    #allocation7 [shape = 's32[1]{0}', space=sflag, size = 0x4, scoped, tag = 'scoped memory for tpu_custom_call.1']
    #allocation8 [shape = 'u8[512]{0}', space=vmem, size = 0x400, scoped, tag = 'input window, operand 2, single buffered']
    #allocation9 [shape = 'u8[98304]{0}', space=vmem, size = 0x18000, scoped, tag = 'input window, operand 3, single buffered']
    #allocation10 [shape = 's32[1]{0}', space=sflag, size = 0x4, scoped, tag = 'scoped memory for tpu_custom_call.1']
    #allocation11 [shape = 'u8[32768]{0}', space=vmem, size = 0x8000, scoped, tag = 'input window, operand 5, single buffered']
    #allocation12 [shape = 'u8[512]{0}', space=vmem, size = 0x400, scoped, tag = 'input window, operand 6, single buffered']
    #allocation13 [shape = 's32[1]{0}', space=sflag, size = 0x4, scoped, tag = 'scoped memory for tpu_custom_call.1']
    #allocation14 [shape = 'u8[512]{0}', space=vmem, size = 0x400, scoped, tag = 'input window, operand 7, single buffered']
    #allocation15 [shape = 'u8[512]{0}', space=vmem, size = 0x400, scoped, tag = 'input window, operand 8, single buffered']
    #allocation16 [shape = 's32[1]{0}', space=sflag, size = 0x4, scoped, tag = 'scoped memory for tpu_custom_call.1']
    #allocation17 [shape = 'u8[131072]{0}', space=vmem, size = 0x20000, scoped, tag = 'input window, operand 9, single buffered']
    #allocation18 [shape = 'u8[131072]{0}', space=vmem, size = 0x20000, scoped, tag = 'input window, operand 11, single buffered']
    #allocation19 [shape = 's32[1]{0}', space=sflag, size = 0x4, scoped, tag = 'scoped memory for tpu_custom_call.1']
    #allocation20 [shape = 'u8[8192]{0}', space=vmem, size = 0x2000, scoped, tag = 'output window, operand 0']
    %18 = vsyncpa [#allocation4], 0
    %s19 = scalar_lea.sflag [#allocation4], 1
    %20 = vsyncpa %s19, 0
    %21 = vsyncpa [#allocation7], 0
    %22 = vsyncpa [#allocation10], 0
    %23 = vsyncpa [#allocation13], 0
    %24 = vsyncpa [#allocation16], 0
    %25 = vsyncpa [#allocation19], 0
    %26 = vsyncpa [#allocation5], 0
    %s27 = scalar_lea.sflag [#allocation5], 1
    %28 = vsyncpa %s27, 0
    loop: start=0, step=1, limit=4
    $region2: #{tpu_custom_call.1} parent=1 // loop_pre_header
      _
    $region3: #{tpu_custom_call.1} parent=1 // loop_header
      %s30 = sphi 0, %s34
      %p31 = scmp.ge.s32.totalorder %s30, 4
      %s40 = sphi 0, %s42
      %s43 = sphi 0, %s40
      %s44 = sphi 0, %s43
      %s60 = sphi 0, %s44
      %s64 = sphi 0, %s64
      %s66 = sphi 0, %s64
      %s67 = sphi 0, %s66
      %s81 = sphi 0, %s67
      %s85 = sphi 0, %s85
      %s87 = sphi 0, %s85
      %s88 = sphi 0, %s87
      %s102 = sphi 0, %s88
      %s106 = sphi 0, %s106
      %s108 = sphi 0, %s106
      %s109 = sphi 0, %s108
      %s123 = sphi 0, %s109
      %s127 = sphi 0, %s127
      %s129 = sphi 0, %s127
      %s130 = sphi 0, %s129
      %s144 = sphi 0, %s130
      %s148 = sphi 0, %s148
      %s150 = sphi 0, %s148
      %s151 = sphi 0, %s150
      %s165 = sphi 0, %s151
      %s169 = sphi 0, %s169
      %s171 = sphi 0, %s169
      %s172 = sphi 0, %s171
      %s186 = sphi 0, %s172
      %s190 = sphi 0, %s190
      %s192 = sphi 0, %s190
      %s193 = sphi 0, %s192
      %s207 = sphi 0, %s193
      %s211 = sphi 0, %s211
      %s213 = sphi 0, %s211
      %s214 = sphi 0, %s213
      %s228 = sphi 0, %s214
      %s232 = sphi 0, %s232
      %s234 = sphi 0, %s232
      %s235 = sphi 0, %s234
      %s249 = sphi 0, %s235
      %s253 = sphi 0, %s253
      %s255 = sphi 0, %s253
      %s256 = sphi 0, %s255
      %s270 = sphi 0, %s256
      %s274 = sphi 0, %s274
      %s276 = sphi 0, %s274
      %s277 = sphi 0, %s276
      %s291 = sphi 0, %s277
      %s295 = sphi 0, %s295
      %s297 = sphi 0, %s295
      %s298 = sphi 0, %s297
      %s312 = sphi 0, %s298
      %s318 = sphi 0, %s320
      %s321 = sphi 0, %s318
      %s322 = sphi 0, %s321
      %s338 = sphi 0, %s322
    $region4: #{tpu_custom_call.1} parent=1 // loop_header_branch
      %33 = sbr.rel (%p31) target = $region8
    $region5: #{tpu_custom_call.1} parent=1 // loop_body
      %s35 = ssub.s32 %s30, 1
      %s36 = ssub.s32 %s30, 2
      %s37 = sadd.s32 %s30, 1
      %s38 = ssub.s32 %s30, %s37
      %p39 = scmp.eq.s32.totalorder %s38, 0
      %s41 = sadd.s32 %s40, 1
      %s42 = scalar_select %p39, %s40, %s41
      %p45 = pneg %p39
      %p46 = scmp.eq.s32.totalorder %s30, 1
      %p47 = por %p45, %p46
      %p48 = scmp.ne.s32.totalorder %s40, %s43
      %p49 = scmp.eq.s32.totalorder %s30, 0
      %p50 = por %p48, %p49
      %p51 = scmp.ne.s32.totalorder %s40, %s43
      %p52 = scmp.eq.s32.totalorder %s35, 1
      %p53 = por %p51, %p52
      %p54 = scmp.ne.s32.totalorder %s43, %s44
      %p55 = scmp.eq.s32.totalorder %s35, 0
      %p56 = por %p54, %p55
      %p57 = scmp.ne.s32.totalorder %s43, %s44
      %p58 = scmp.eq.s32.totalorder %s36, 1
      %p59 = por %p57, %p58
      %p61 = scmp.ne.s32.totalorder %s44, %s60
      %p62 = scmp.eq.s32.totalorder %s36, 0
      %p63 = por %p61, %p62
      %s65 = sadd.s32 %s64, 1
      %p68 = scmp.eq.s32.totalorder %s30, 1
      %p69 = scmp.ne.s32.totalorder %s64, %s66
      %p70 = scmp.eq.s32.totalorder %s30, 0
      %p71 = por %p69, %p70
      %p72 = scmp.ne.s32.totalorder %s64, %s66
      %p73 = scmp.eq.s32.totalorder %s35, 1
      %p74 = por %p72, %p73
      %p75 = scmp.ne.s32.totalorder %s66, %s67
      %p76 = scmp.eq.s32.totalorder %s35, 0
      %p77 = por %p75, %p76
      %p78 = scmp.ne.s32.totalorder %s66, %s67
      %p79 = scmp.eq.s32.totalorder %s36, 1
      %p80 = por %p78, %p79
      %p82 = scmp.ne.s32.totalorder %s67, %s81
      %p83 = scmp.eq.s32.totalorder %s36, 0
      %p84 = por %p82, %p83
      %s86 = sadd.s32 %s85, 1
      %p89 = scmp.eq.s32.totalorder %s30, 1
      %p90 = scmp.ne.s32.totalorder %s85, %s87
      %p91 = scmp.eq.s32.totalorder %s30, 0
      %p92 = por %p90, %p91
      %p93 = scmp.ne.s32.totalorder %s85, %s87
      %p94 = scmp.eq.s32.totalorder %s35, 1
      %p95 = por %p93, %p94
      %p96 = scmp.ne.s32.totalorder %s87, %s88
      %p97 = scmp.eq.s32.totalorder %s35, 0
      %p98 = por %p96, %p97
      %p99 = scmp.ne.s32.totalorder %s87, %s88
      %p100 = scmp.eq.s32.totalorder %s36, 1
      %p101 = por %p99, %p100
      %p103 = scmp.ne.s32.totalorder %s88, %s102
      %p104 = scmp.eq.s32.totalorder %s36, 0
      %p105 = por %p103, %p104
      %s107 = sadd.s32 %s106, 1
      %p110 = scmp.eq.s32.totalorder %s30, 1
      %p111 = scmp.ne.s32.totalorder %s106, %s108
      %p112 = scmp.eq.s32.totalorder %s30, 0
      %p113 = por %p111, %p112
      %p114 = scmp.ne.s32.totalorder %s106, %s108
      %p115 = scmp.eq.s32.totalorder %s35, 1
      %p116 = por %p114, %p115
      %p117 = scmp.ne.s32.totalorder %s108, %s109
      %p118 = scmp.eq.s32.totalorder %s35, 0
      %p119 = por %p117, %p118
      %p120 = scmp.ne.s32.totalorder %s108, %s109
      %p121 = scmp.eq.s32.totalorder %s36, 1
      %p122 = por %p120, %p121
      %p124 = scmp.ne.s32.totalorder %s109, %s123
      %p125 = scmp.eq.s32.totalorder %s36, 0
      %p126 = por %p124, %p125
      %s128 = sadd.s32 %s127, 1
      %p131 = scmp.eq.s32.totalorder %s30, 1
      %p132 = scmp.ne.s32.totalorder %s127, %s129
      %p133 = scmp.eq.s32.totalorder %s30, 0
      %p134 = por %p132, %p133
      %p135 = scmp.ne.s32.totalorder %s127, %s129
      %p136 = scmp.eq.s32.totalorder %s35, 1
      %p137 = por %p135, %p136
      %p138 = scmp.ne.s32.totalorder %s129, %s130
      %p139 = scmp.eq.s32.totalorder %s35, 0
      %p140 = por %p138, %p139
      %p141 = scmp.ne.s32.totalorder %s129, %s130
      %p142 = scmp.eq.s32.totalorder %s36, 1
      %p143 = por %p141, %p142
      %p145 = scmp.ne.s32.totalorder %s130, %s144
      %p146 = scmp.eq.s32.totalorder %s36, 0
      %p147 = por %p145, %p146
      %s149 = sadd.s32 %s148, 1
      %p152 = scmp.eq.s32.totalorder %s30, 1
      %p153 = scmp.ne.s32.totalorder %s148, %s150
      %p154 = scmp.eq.s32.totalorder %s30, 0
      %p155 = por %p153, %p154
      %p156 = scmp.ne.s32.totalorder %s148, %s150
      %p157 = scmp.eq.s32.totalorder %s35, 1
      %p158 = por %p156, %p157
      %p159 = scmp.ne.s32.totalorder %s150, %s151
      %p160 = scmp.eq.s32.totalorder %s35, 0
      %p161 = por %p159, %p160
      %p162 = scmp.ne.s32.totalorder %s150, %s151
      %p163 = scmp.eq.s32.totalorder %s36, 1
      %p164 = por %p162, %p163
      %p166 = scmp.ne.s32.totalorder %s151, %s165
      %p167 = scmp.eq.s32.totalorder %s36, 0
      %p168 = por %p166, %p167
      %s170 = sadd.s32 %s169, 1
      %p173 = scmp.eq.s32.totalorder %s30, 1
      %p174 = scmp.ne.s32.totalorder %s169, %s171
      %p175 = scmp.eq.s32.totalorder %s30, 0
      %p176 = por %p174, %p175
      %p177 = scmp.ne.s32.totalorder %s169, %s171
      %p178 = scmp.eq.s32.totalorder %s35, 1
      %p179 = por %p177, %p178
      %p180 = scmp.ne.s32.totalorder %s171, %s172
      %p181 = scmp.eq.s32.totalorder %s35, 0
      %p182 = por %p180, %p181
      %p183 = scmp.ne.s32.totalorder %s171, %s172
      %p184 = scmp.eq.s32.totalorder %s36, 1
      %p185 = por %p183, %p184
      %p187 = scmp.ne.s32.totalorder %s172, %s186
      %p188 = scmp.eq.s32.totalorder %s36, 0
      %p189 = por %p187, %p188
      %s191 = sadd.s32 %s190, 1
      %p194 = scmp.eq.s32.totalorder %s30, 1
      %p195 = scmp.ne.s32.totalorder %s190, %s192
      %p196 = scmp.eq.s32.totalorder %s30, 0
      %p197 = por %p195, %p196
      %p198 = scmp.ne.s32.totalorder %s190, %s192
      %p199 = scmp.eq.s32.totalorder %s35, 1
      %p200 = por %p198, %p199
      %p201 = scmp.ne.s32.totalorder %s192, %s193
      %p202 = scmp.eq.s32.totalorder %s35, 0
      %p203 = por %p201, %p202
      %p204 = scmp.ne.s32.totalorder %s192, %s193
      %p205 = scmp.eq.s32.totalorder %s36, 1
      %p206 = por %p204, %p205
      %p208 = scmp.ne.s32.totalorder %s193, %s207
      %p209 = scmp.eq.s32.totalorder %s36, 0
      %p210 = por %p208, %p209
      %s212 = sadd.s32 %s211, 1
      %p215 = scmp.eq.s32.totalorder %s30, 1
      %p216 = scmp.ne.s32.totalorder %s211, %s213
      %p217 = scmp.eq.s32.totalorder %s30, 0
      %p218 = por %p216, %p217
      %p219 = scmp.ne.s32.totalorder %s211, %s213
      %p220 = scmp.eq.s32.totalorder %s35, 1
      %p221 = por %p219, %p220
      %p222 = scmp.ne.s32.totalorder %s213, %s214
      %p223 = scmp.eq.s32.totalorder %s35, 0
      %p224 = por %p222, %p223
      %p225 = scmp.ne.s32.totalorder %s213, %s214
      %p226 = scmp.eq.s32.totalorder %s36, 1
      %p227 = por %p225, %p226
      %p229 = scmp.ne.s32.totalorder %s214, %s228
      %p230 = scmp.eq.s32.totalorder %s36, 0
      %p231 = por %p229, %p230
      %s233 = sadd.s32 %s232, 1
      %p236 = scmp.eq.s32.totalorder %s30, 1
      %p237 = scmp.ne.s32.totalorder %s232, %s234
      %p238 = scmp.eq.s32.totalorder %s30, 0
      %p239 = por %p237, %p238
      %p240 = scmp.ne.s32.totalorder %s232, %s234
      %p241 = scmp.eq.s32.totalorder %s35, 1
      %p242 = por %p240, %p241
      %p243 = scmp.ne.s32.totalorder %s234, %s235
      %p244 = scmp.eq.s32.totalorder %s35, 0
      %p245 = por %p243, %p244
      %p246 = scmp.ne.s32.totalorder %s234, %s235
      %p247 = scmp.eq.s32.totalorder %s36, 1
      %p248 = por %p246, %p247
      %p250 = scmp.ne.s32.totalorder %s235, %s249
      %p251 = scmp.eq.s32.totalorder %s36, 0
      %p252 = por %p250, %p251
      %s254 = sadd.s32 %s253, 1
      %p257 = scmp.eq.s32.totalorder %s30, 1
      %p258 = scmp.ne.s32.totalorder %s253, %s255
      %p259 = scmp.eq.s32.totalorder %s30, 0
      %p260 = por %p258, %p259
      %p261 = scmp.ne.s32.totalorder %s253, %s255
      %p262 = scmp.eq.s32.totalorder %s35, 1
      %p263 = por %p261, %p262
      %p264 = scmp.ne.s32.totalorder %s255, %s256
      %p265 = scmp.eq.s32.totalorder %s35, 0
      %p266 = por %p264, %p265
      %p267 = scmp.ne.s32.totalorder %s255, %s256
      %p268 = scmp.eq.s32.totalorder %s36, 1
      %p269 = por %p267, %p268
      %p271 = scmp.ne.s32.totalorder %s256, %s270
      %p272 = scmp.eq.s32.totalorder %s36, 0
      %p273 = por %p271, %p272
      %s275 = sadd.s32 %s274, 1
      %p278 = scmp.eq.s32.totalorder %s30, 1
      %p279 = scmp.ne.s32.totalorder %s274, %s276
      %p280 = scmp.eq.s32.totalorder %s30, 0
      %p281 = por %p279, %p280
      %p282 = scmp.ne.s32.totalorder %s274, %s276
      %p283 = scmp.eq.s32.totalorder %s35, 1
      %p284 = por %p282, %p283
      %p285 = scmp.ne.s32.totalorder %s276, %s277
      %p286 = scmp.eq.s32.totalorder %s35, 0
      %p287 = por %p285, %p286
      %p288 = scmp.ne.s32.totalorder %s276, %s277
      %p289 = scmp.eq.s32.totalorder %s36, 1
      %p290 = por %p288, %p289
      %p292 = scmp.ne.s32.totalorder %s277, %s291
      %p293 = scmp.eq.s32.totalorder %s36, 0
      %p294 = por %p292, %p293
      %s296 = sadd.s32 %s295, 1
      %p299 = scmp.eq.s32.totalorder %s30, 1
      %p300 = scmp.ne.s32.totalorder %s295, %s297
      %p301 = scmp.eq.s32.totalorder %s30, 0
      %p302 = por %p300, %p301
      %p303 = scmp.ne.s32.totalorder %s295, %s297
      %p304 = scmp.eq.s32.totalorder %s35, 1
      %p305 = por %p303, %p304
      %p306 = scmp.ne.s32.totalorder %s297, %s298
      %p307 = scmp.eq.s32.totalorder %s35, 0
      %p308 = por %p306, %p307
      %p309 = scmp.ne.s32.totalorder %s297, %s298
      %p310 = scmp.eq.s32.totalorder %s36, 1
      %p311 = por %p309, %p310
      %p313 = scmp.ne.s32.totalorder %s298, %s312
      %p314 = scmp.eq.s32.totalorder %s36, 0
      %p315 = por %p313, %p314
      %s316 = ssub.s32 %s30, %s37
      %p317 = scmp.eq.s32.totalorder %s316, 0
      %s319 = sadd.s32 %s318, 1
      %s320 = scalar_select %p317, %s318, %s319
      %p323 = pneg %p317
      %p324 = scmp.eq.s32.totalorder %s30, 1
      %p325 = por %p323, %p324
      %p326 = scmp.ne.s32.totalorder %s318, %s321
      %p327 = scmp.eq.s32.totalorder %s30, 0
      %p328 = por %p326, %p327
      %p329 = scmp.ne.s32.totalorder %s318, %s321
      %p330 = scmp.eq.s32.totalorder %s35, 1
      %p331 = por %p329, %p330
      %p332 = scmp.ne.s32.totalorder %s321, %s322
      %p333 = scmp.eq.s32.totalorder %s35, 0
      %p334 = por %p332, %p333
      %p335 = scmp.ne.s32.totalorder %s321, %s322
      %p336 = scmp.eq.s32.totalorder %s36, 1
      %p337 = por %p335, %p336
      %p339 = scmp.ne.s32.totalorder %s322, %s338
      %p340 = scmp.eq.s32.totalorder %s36, 0
      %p341 = por %p339, %p340
      %p342 = scmp.le.s32.totalorder 1, %s30
      %p343 = scmp.lt.s32.totalorder %s30, 3
      %p344 = pnand %p342, %p343
      %p345 = pneg %p344
      // Predicated region
      $region9: #{tpu_custom_call.1} parent=5 // pred_check
        _
      $region10: #{tpu_custom_call.1} parent=5 // pred_check_branch
        %347 = sbr.rel (%p344) target = $region12
      $region11: #{tpu_custom_call.1} parent=5 // pred_region
        %s348 = ssub.s32 %s30, 1
        // Predicated region
        $region13: #{tpu_custom_call.1} parent=11 // pred_check
          %p349 = pneg %p77
        $region14: #{tpu_custom_call.1} parent=11 // pred_check_branch
          %351 = sbr.rel (%p349) target = $region16
        $region15: #{tpu_custom_call.1} parent=11 // pred_region
          %353 = vsyncadd [#allocation7], 0
          %s355 = sshll.u32 %s1, 4
          %s356 = int_to_ptr.hbm [resolvable:$true] %s355
          %s357 = sshll.u32 [#allocation6], 4
          %s358 = int_to_ptr.vmem [resolvable:$true] %s357
          %360 = dma.hbm_to_vmem [thread:$0]  %s356, 16, %s358, [#allocation7]
        $region16: #{tpu_custom_call.1} parent=11 // pred_fallthru
          _
        // Predicated region
        $region17: #{tpu_custom_call.1} parent=11 // pred_check
          %p361 = pneg %p98
        $region18: #{tpu_custom_call.1} parent=11 // pred_check_branch
          %363 = sbr.rel (%p361) target = $region20
        $region19: #{tpu_custom_call.1} parent=11 // pred_region
          %365 = vsyncadd [#allocation7], 0
          %s367 = sshll.u32 %s2, 4
          %s368 = int_to_ptr.hbm [resolvable:$true] %s367
          %s369 = sshll.u32 [#allocation8], 4
          %s370 = int_to_ptr.vmem [resolvable:$true] %s369
          %372 = dma.hbm_to_vmem [thread:$0]  %s368, 16, %s370, [#allocation7]
        $region20: #{tpu_custom_call.1} parent=11 // pred_fallthru
          _
        // Predicated region
        $region21: #{tpu_custom_call.1} parent=11 // pred_check
          %p373 = pneg %p119
        $region22: #{tpu_custom_call.1} parent=11 // pred_check_branch
          %375 = sbr.rel (%p373) target = $region24
        $region23: #{tpu_custom_call.1} parent=11 // pred_region
          %377 = vsyncadd [#allocation10], 0
          %s378 = sshll.u32 %s3, 4
          %s379 = int_to_ptr.hbm [resolvable:$true] %s378
          %s380 = sshll.u32 [#allocation9], 4
          %s381 = int_to_ptr.vmem [resolvable:$true] %s380
          %386 = dma.hbm_to_vmem [thread:$0]  %s379, 3072, %s381, [#allocation10], 192, 192, 12
        $region24: #{tpu_custom_call.1} parent=11 // pred_fallthru
          _
        // Predicated region
        $region25: #{tpu_custom_call.1} parent=11 // pred_check
          %p387 = pneg %p140
        $region26: #{tpu_custom_call.1} parent=11 // pred_check_branch
          %389 = sbr.rel (%p387) target = $region28
        $region27: #{tpu_custom_call.1} parent=11 // pred_region
          _
        $region28: #{tpu_custom_call.1} parent=11 // pred_fallthru
          _
        // Predicated region
        $region29: #{tpu_custom_call.1} parent=11 // pred_check
          %p390 = pneg %p161
        $region30: #{tpu_custom_call.1} parent=11 // pred_check_branch
          %392 = sbr.rel (%p390) target = $region32
        $region31: #{tpu_custom_call.1} parent=11 // pred_region
          %394 = vsyncadd [#allocation10], 0
          %s395 = sshll.u32 %s5, 4
          %s396 = int_to_ptr.hbm [resolvable:$true] %s395
          %s397 = sshll.u32 [#allocation11], 4
          %s398 = int_to_ptr.vmem [resolvable:$true] %s397
          %403 = dma.hbm_to_vmem [thread:$0]  %s396, 1024, %s398, [#allocation10], 64, 64, 4
        $region32: #{tpu_custom_call.1} parent=11 // pred_fallthru
          _
        // Predicated region
        $region33: #{tpu_custom_call.1} parent=11 // pred_check
          %p404 = pneg %p182
        $region34: #{tpu_custom_call.1} parent=11 // pred_check_branch
          %406 = sbr.rel (%p404) target = $region36
        $region35: #{tpu_custom_call.1} parent=11 // pred_region
          %408 = vsyncadd [#allocation13], 0
          %s410 = sshll.u32 %s6, 4
          %s411 = int_to_ptr.hbm [resolvable:$true] %s410
          %s412 = sshll.u32 [#allocation12], 4
          %s413 = int_to_ptr.vmem [resolvable:$true] %s412
          %415 = dma.hbm_to_vmem [thread:$0]  %s411, 16, %s413, [#allocation13]
        $region36: #{tpu_custom_call.1} parent=11 // pred_fallthru
          _
        // Predicated region
        $region37: #{tpu_custom_call.1} parent=11 // pred_check
          %p416 = pneg %p203
        $region38: #{tpu_custom_call.1} parent=11 // pred_check_branch
          %418 = sbr.rel (%p416) target = $region40
        $region39: #{tpu_custom_call.1} parent=11 // pred_region
          %420 = vsyncadd [#allocation13], 0
          %s422 = sshll.u32 %s7, 4
          %s423 = int_to_ptr.hbm [resolvable:$true] %s422
          %s424 = sshll.u32 [#allocation14], 4
          %s425 = int_to_ptr.vmem [resolvable:$true] %s424
          %427 = dma.hbm_to_vmem [thread:$0]  %s423, 16, %s425, [#allocation13]
        $region40: #{tpu_custom_call.1} parent=11 // pred_fallthru
          _
        // Predicated region
        $region41: #{tpu_custom_call.1} parent=11 // pred_check
          %p428 = pneg %p224
        $region42: #{tpu_custom_call.1} parent=11 // pred_check_branch
          %430 = sbr.rel (%p428) target = $region44
        $region43: #{tpu_custom_call.1} parent=11 // pred_region
          %432 = vsyncadd [#allocation16], 0
          %s434 = sshll.u32 %s8, 4
          %s435 = int_to_ptr.hbm [resolvable:$true] %s434
          %s436 = sshll.u32 [#allocation15], 4
          %s437 = int_to_ptr.vmem [resolvable:$true] %s436
          %439 = dma.hbm_to_vmem [thread:$0]  %s435, 16, %s437, [#allocation16]
        $region44: #{tpu_custom_call.1} parent=11 // pred_fallthru
          _
        // Predicated region
        $region45: #{tpu_custom_call.1} parent=11 // pred_check
          %p440 = pneg %p245
        $region46: #{tpu_custom_call.1} parent=11 // pred_check_branch
          %442 = sbr.rel (%p440) target = $region48
        $region47: #{tpu_custom_call.1} parent=11 // pred_region
          %444 = vsyncadd [#allocation16], 0
          %s445 = sshll.u32 %s9, 4
          %s446 = int_to_ptr.hbm [resolvable:$true] %s445
          %s447 = sshll.u32 [#allocation17], 4
          %s448 = int_to_ptr.vmem [resolvable:$true] %s447
          %453 = dma.hbm_to_vmem [thread:$0]  %s446, 4096, %s448, [#allocation16], 256, 256, 16
        $region48: #{tpu_custom_call.1} parent=11 // pred_fallthru
          _
        // Predicated region
        $region49: #{tpu_custom_call.1} parent=11 // pred_check
          %p454 = pneg %p266
        $region50: #{tpu_custom_call.1} parent=11 // pred_check_branch
          %456 = sbr.rel (%p454) target = $region52
        $region51: #{tpu_custom_call.1} parent=11 // pred_region
          _
        $region52: #{tpu_custom_call.1} parent=11 // pred_fallthru
          _
        // Predicated region
        $region53: #{tpu_custom_call.1} parent=11 // pred_check
          %p457 = pneg %p287
        $region54: #{tpu_custom_call.1} parent=11 // pred_check_branch
          %459 = sbr.rel (%p457) target = $region56
        $region55: #{tpu_custom_call.1} parent=11 // pred_region
          %461 = vsyncadd [#allocation19], 0
          %s462 = sshll.u32 %s11, 4
          %s463 = int_to_ptr.hbm [resolvable:$true] %s462
          %s464 = sshll.u32 [#allocation18], 4
          %s465 = int_to_ptr.vmem [resolvable:$true] %s464
          %470 = dma.hbm_to_vmem [thread:$0]  %s463, 4096, %s465, [#allocation19], 64, 64, 4
        $region56: #{tpu_custom_call.1} parent=11 // pred_fallthru
          _
        // Predicated region
        $region57: #{tpu_custom_call.1} parent=11 // pred_check
          %p471 = pneg %p308
        $region58: #{tpu_custom_call.1} parent=11 // pred_check_branch
          %473 = sbr.rel (%p471) target = $region60
        $region59: #{tpu_custom_call.1} parent=11 // pred_region
          _
        $region60: #{tpu_custom_call.1} parent=11 // pred_fallthru
          _
      $region12: #{tpu_custom_call.1} parent=5 // pred_fallthru
        _
      %p474 = scmp.lt.s32.totalorder %s30, 2
      // Predicated region
      $region61: #{tpu_custom_call.1} parent=5 // pred_check
        %p475 = pneg %p474
      $region62: #{tpu_custom_call.1} parent=5 // pred_check_branch
        %477 = sbr.rel (%p475) target = $region64
      $region63: #{tpu_custom_call.1} parent=5 // pred_region
        // Predicated region
        $region65: #{tpu_custom_call.1} parent=63 // pred_check
          %p478 = pneg %p50
        $region66: #{tpu_custom_call.1} parent=63 // pred_check_branch
          %480 = sbr.rel (%p478) target = $region68
        $region67: #{tpu_custom_call.1} parent=63 // pred_region
          %s481 = sand.u32 %s40, 1
          %s482 = scalar_lea.sflag [#allocation4], %s481
          %s483 = sand.u32 %s40, 1
          %s484 = smul.addr %s483, 8
          %s485 = scalar_lea.vmem [#allocation3], %s484
          %487 = vsyncadd %s482, 0
          %s488 = smul.addr %s30, 8
          %s489 = scalar_lea.hbm %s0, %s488
          %s491 = sshll.u32 %s489, 4
          %s492 = int_to_ptr.hbm [resolvable:$true] %s491
          %s493 = sshll.u32 %s485, 4
          %s494 = int_to_ptr.vmem [resolvable:$true] %s493
          %496 = dma.hbm_to_vmem [thread:$0]  %s492, 128, %s494, %s482
        $region68: #{tpu_custom_call.1} parent=63 // pred_fallthru
          _
      $region64: #{tpu_custom_call.1} parent=5 // pred_fallthru
        _
      %p497 = scmp.le.s32.totalorder 1, %s30
      %p498 = scmp.lt.s32.totalorder %s30, 3
      %p499 = pnand %p497, %p498
      %p500 = pneg %p499
      // Predicated region
      $region69: #{tpu_custom_call.1} parent=5 // pred_check
        _
      $region70: #{tpu_custom_call.1} parent=5 // pred_check_branch
        %502 = sbr.rel (%p499) target = $region72
      $region71: #{tpu_custom_call.1} parent=5 // pred_region
        %s503 = ssub.s32 %s30, 1
        %s504 = sand.u32 %s43, 1
        %s505 = scalar_lea.sflag [#allocation4], %s504
        %s506 = sand.u32 %s43, 1
        %s507 = smul.addr %s506, 8
        %s508 = scalar_lea.vmem [#allocation3], %s507
        // Predicated region
        $region73: #{tpu_custom_call.1} parent=71 // pred_check
          %p509 = pneg %p56
        $region74: #{tpu_custom_call.1} parent=71 // pred_check_branch
          %511 = sbr.rel (%p509) target = $region76
        $region75: #{tpu_custom_call.1} parent=71 // pred_region
          %513 = dma.done %s505, 128
        $region76: #{tpu_custom_call.1} parent=71 // pred_fallthru
          _
        // Predicated region
        $region77: #{tpu_custom_call.1} parent=71 // pred_check
          %p514 = pneg %p77
        $region78: #{tpu_custom_call.1} parent=71 // pred_check_branch
          %516 = sbr.rel (%p514) target = $region80
        $region79: #{tpu_custom_call.1} parent=71 // pred_region
          %518 = dma.done [#allocation7], 16
        $region80: #{tpu_custom_call.1} parent=71 // pred_fallthru
          _
        // Predicated region
        $region81: #{tpu_custom_call.1} parent=71 // pred_check
          %p519 = pneg %p98
        $region82: #{tpu_custom_call.1} parent=71 // pred_check_branch
          %521 = sbr.rel (%p519) target = $region84
        $region83: #{tpu_custom_call.1} parent=71 // pred_region
          %523 = dma.done [#allocation7], 16
        $region84: #{tpu_custom_call.1} parent=71 // pred_fallthru
          _
        // Predicated region
        $region85: #{tpu_custom_call.1} parent=71 // pred_check
          %p524 = pneg %p119
        $region86: #{tpu_custom_call.1} parent=71 // pred_check_branch
          %526 = sbr.rel (%p524) target = $region88
        $region87: #{tpu_custom_call.1} parent=71 // pred_region
          %528 = dma.done [#allocation10], 3072
        $region88: #{tpu_custom_call.1} parent=71 // pred_fallthru
          _
        // Predicated region
        $region89: #{tpu_custom_call.1} parent=71 // pred_check
          %p529 = pneg %p161
        $region90: #{tpu_custom_call.1} parent=71 // pred_check_branch
          %531 = sbr.rel (%p529) target = $region92
        $region91: #{tpu_custom_call.1} parent=71 // pred_region
          %533 = dma.done [#allocation10], 1024
        $region92: #{tpu_custom_call.1} parent=71 // pred_fallthru
          _
        // Predicated region
        $region93: #{tpu_custom_call.1} parent=71 // pred_check
          %p534 = pneg %p182
        $region94: #{tpu_custom_call.1} parent=71 // pred_check_branch
          %536 = sbr.rel (%p534) target = $region96
        $region95: #{tpu_custom_call.1} parent=71 // pred_region
          %538 = dma.done [#allocation13], 16
        $region96: #{tpu_custom_call.1} parent=71 // pred_fallthru
          _
        // Predicated region
        $region97: #{tpu_custom_call.1} parent=71 // pred_check
          %p539 = pneg %p203
        $region98: #{tpu_custom_call.1} parent=71 // pred_check_branch
          %541 = sbr.rel (%p539) target = $region100
        $region99: #{tpu_custom_call.1} parent=71 // pred_region
          %543 = dma.done [#allocation13], 16
        $region100: #{tpu_custom_call.1} parent=71 // pred_fallthru
          _
        // Predicated region
        $region101: #{tpu_custom_call.1} parent=71 // pred_check
          %p544 = pneg %p224
        $region102: #{tpu_custom_call.1} parent=71 // pred_check_branch
          %546 = sbr.rel (%p544) target = $region104
        $region103: #{tpu_custom_call.1} parent=71 // pred_region
          %548 = dma.done [#allocation16], 16
        $region104: #{tpu_custom_call.1} parent=71 // pred_fallthru
          _
        // Predicated region
        $region105: #{tpu_custom_call.1} parent=71 // pred_check
          %p549 = pneg %p245
        $region106: #{tpu_custom_call.1} parent=71 // pred_check_branch
          %551 = sbr.rel (%p549) target = $region108
        $region107: #{tpu_custom_call.1} parent=71 // pred_region
          %553 = dma.done [#allocation16], 4096
        $region108: #{tpu_custom_call.1} parent=71 // pred_fallthru
          _
        // Predicated region
        $region109: #{tpu_custom_call.1} parent=71 // pred_check
          %p554 = pneg %p287
        $region110: #{tpu_custom_call.1} parent=71 // pred_check_branch
          %556 = sbr.rel (%p554) target = $region112
        $region111: #{tpu_custom_call.1} parent=71 // pred_region
          %558 = dma.done [#allocation19], 4096
        $region112: #{tpu_custom_call.1} parent=71 // pred_fallthru
          _
        %s559 = sand.u32 %s43, 1
        %s560 = scalar_lea.sflag [#allocation4], %s559
        %s561 = sand.u32 %s43, 1
        %s562 = smul.addr %s561, 8
        %s563 = scalar_lea.vmem [#allocation3], %s562
        %p564 = pneg %p56
        %p565 = pneg %p53
        %p566 = pneg %p77
        %p567 = pneg %p74
        %p568 = pneg %p98
        %p569 = pneg %p95
        %p570 = pneg %p119
        %p571 = pneg %p116
        %p572 = pneg %p140
        %p573 = pneg %p137
        %p574 = pneg %p161
        %p575 = pneg %p158
        %p576 = pneg %p182
        %p577 = pneg %p179
        %p578 = pneg %p203
        %p579 = pneg %p200
        %p580 = pneg %p224
        %p581 = pneg %p221
        %p582 = pneg %p245
        %p583 = pneg %p242
        %p584 = pneg %p266
        %p585 = pneg %p263
        %p586 = pneg %p287
        %p587 = pneg %p284
        %p588 = pneg %p308
        %p589 = pneg %p305
        %p590 = pneg %p334
        %p591 = pneg %p331
        %s592 = sand.u32 %s321, 1
        %s593 = scalar_lea.sflag [#allocation5], %s592
        %s594 = sand.u32 %s321, 1
        %s595 = smul.addr %s594, 8
        %s596 = scalar_lea.vmem [#allocation20], %s595
        %v598 = vld [vmem:[%s508] sm:$0xff]
        %v599 = vld [vmem:[#allocation6] sm:$0x1]
        %v600 = vld [vmem:[#allocation8] sm:$0x1]
        %601 = vadd.xlane.f32.xlu0 %v598
        %v602 = vpop.xlane.xlu0 %601
        %v603 = vrcp.pop 128.0
        %v604 = vmul.f32 128.0, %v603
        %v605 = vsub.f32 1.0, %v604
        %v606 = vmul.f32 %v603, %v605
        %v607 = vadd.f32 %v603, %v606
        %vm608 = vweird.f32 %v603
        %v609 = vsel %vm608, %v603, %v607
        %v610 = vmul.f32 %v602, %v609
        %v611 = vsub.f32 %v598, %v610
        %v612 = vmul.f32 %v611, %v611
        %613 = vadd.xlane.f32.xlu0 %v612
        %v614 = vpop.xlane.xlu0 %613
        %v615 = vmul.f32 %v614, %v609
        %v616 = vadd.f32 %v615, 1e-05
        %v617 = vrsqrt.pop %v616
        %v618 = vmul.f32 %v617, %v616
        %v619 = vmul.f32 %v618, %v617
        %v620 = vmul.f32 0.5, %v619
        %v621 = vsub.f32 1.5, %v620
        %v622 = vmul.f32 %v617, %v621
        %vm623 = vweird.f32 %v616
        %vm624 = vweird.f32 %v617
        %vm625 = vmor %vm623, %vm624
        %v626 = vsel %vm625, %v617, %v622
        %v627 = vmul.f32 %v611, %v626
        %v629 = vperm.slane %v599, 0
        %v631 = vmul.f32 %v627, %v629
        %v633 = vperm.slane %v600, 0
        %v635 = vadd.f32 %v631, %v633
        %v636 = vpack.c.bf16 %v635, %v635
        %v637 = vld [vmem:[#allocation9] sm:$0xff]
        %v638 = vld [vmem:[#allocation9 + $0x8] sm:$0xf]
        %v639 = vld [vmem:[#allocation9 + $0xc] sm:$0xff]
        %v640 = vld [vmem:[#allocation9 + $0x14] sm:$0xf]
        %v641 = vld [vmem:[#allocation9 + $0x18] sm:$0xff]
        %v642 = vld [vmem:[#allocation9 + $0x20] sm:$0xf]
        %v643 = vld [vmem:[#allocation9 + $0x24] sm:$0xff]
        %v644 = vld [vmem:[#allocation9 + $0x2c] sm:$0xf]
        %v645 = vld [vmem:[#allocation9 + $0x30] sm:$0xff]
        %v646 = vld [vmem:[#allocation9 + $0x38] sm:$0xf]
        %v647 = vld [vmem:[#allocation9 + $0x3c] sm:$0xff]
        %v648 = vld [vmem:[#allocation9 + $0x44] sm:$0xf]
        %v649 = vld [vmem:[#allocation9 + $0x48] sm:$0xff]
        %v650 = vld [vmem:[#allocation9 + $0x50] sm:$0xf]
        %v651 = vld [vmem:[#allocation9 + $0x54] sm:$0xff]
        %v652 = vld [vmem:[#allocation9 + $0x5c] sm:$0xf]
        %v653 = vld [vmem:[#allocation9 + $0x60] sm:$0xff]
        %v654 = vld [vmem:[#allocation9 + $0x68] sm:$0xf]
        %v655 = vld [vmem:[#allocation9 + $0x6c] sm:$0xff]
        %v656 = vld [vmem:[#allocation9 + $0x74] sm:$0xf]
        %v657 = vld [vmem:[#allocation9 + $0x78] sm:$0xff]
        %v658 = vld [vmem:[#allocation9 + $0x80] sm:$0xf]
        %v659 = vld [vmem:[#allocation9 + $0x84] sm:$0xff]
        %v660 = vld [vmem:[#allocation9 + $0x8c] sm:$0xf]
        %v661 = vld [vmem:[#allocation9 + $0x90] sm:$0xff]
        %v662 = vld [vmem:[#allocation9 + $0x98] sm:$0xf]
        %v663 = vld [vmem:[#allocation9 + $0x9c] sm:$0xff]
        %v664 = vld [vmem:[#allocation9 + $0xa4] sm:$0xf]
        %v665 = vld [vmem:[#allocation9 + $0xa8] sm:$0xff]
        %v666 = vld [vmem:[#allocation9 + $0xb0] sm:$0xf]
        %v667 = vld [vmem:[#allocation9 + $0xb4] sm:$0xff]
        %v668 = vld [vmem:[#allocation9 + $0xbc] sm:$0xf]
        %v669 = vld [vmem:[%s4] sm:$0x7]
        %v671 = vperm.slane %v669, 0
        %v672 = vperm.slane %v669, 1
        %v673 = vperm.slane %v669, 2
        %v709 = vunpack.c.l.b16 %v637
        %v710 = vunpack.c.h.b16 %v637
        %v711 = vunpack.c.l.b16 %v638
        %v712 = vunpack.c.l.b16 %v639
        %v713 = vunpack.c.h.b16 %v639
        %v714 = vunpack.c.l.b16 %v640
        %v715 = vunpack.c.l.b16 %v641
        %v716 = vunpack.c.h.b16 %v641
        %v717 = vunpack.c.l.b16 %v642
        %v718 = vunpack.c.l.b16 %v643
        %v719 = vunpack.c.h.b16 %v643
        %v720 = vunpack.c.l.b16 %v644
        %v721 = vunpack.c.l.b16 %v645
        %v722 = vunpack.c.h.b16 %v645
        %v723 = vunpack.c.l.b16 %v646
        %v724 = vunpack.c.l.b16 %v647
        %v725 = vunpack.c.h.b16 %v647
        %v726 = vunpack.c.l.b16 %v648
        %v727 = vunpack.c.l.b16 %v649
        %v728 = vunpack.c.h.b16 %v649
        %v729 = vunpack.c.l.b16 %v650
        %v730 = vunpack.c.l.b16 %v651
        %v731 = vunpack.c.h.b16 %v651
        %v732 = vunpack.c.l.b16 %v652
        %v733 = vunpack.c.l.b16 %v653
        %v734 = vunpack.c.h.b16 %v653
        %v735 = vunpack.c.l.b16 %v654
        %v736 = vunpack.c.l.b16 %v655
        %v737 = vunpack.c.h.b16 %v655
        %v738 = vunpack.c.l.b16 %v656
        %v739 = vunpack.c.l.b16 %v657
        %v740 = vunpack.c.h.b16 %v657
        %v741 = vunpack.c.l.b16 %v658
        %v742 = vunpack.c.l.b16 %v659
        %v743 = vunpack.c.h.b16 %v659
        %v744 = vunpack.c.l.b16 %v660
        %v745 = vunpack.c.l.b16 %v661
        %v746 = vunpack.c.h.b16 %v661
        %v747 = vunpack.c.l.b16 %v662
        %v748 = vunpack.c.l.b16 %v663
        %v749 = vunpack.c.h.b16 %v663
        %v750 = vunpack.c.l.b16 %v664
        %v751 = vunpack.c.l.b16 %v665
        %v752 = vunpack.c.h.b16 %v665
        %v753 = vunpack.c.l.b16 %v666
        %v754 = vunpack.c.l.b16 %v667
        %v755 = vunpack.c.h.b16 %v667
        %v756 = vunpack.c.l.b16 %v668
        %v757 = vpack.c.b16 %v712, %v709
        %v758 = vpack.c.b16 %v713, %v710
        %v759 = vpack.c.b16 %v714, %v711
        %v760 = vpack.c.b16 %v718, %v715
        %v761 = vpack.c.b16 %v719, %v716
        %v762 = vpack.c.b16 %v720, %v717
        %v763 = vpack.c.b16 %v724, %v721
        %v764 = vpack.c.b16 %v725, %v722
        %v765 = vpack.c.b16 %v726, %v723
        %v766 = vpack.c.b16 %v730, %v727
        %v767 = vpack.c.b16 %v731, %v728
        %v768 = vpack.c.b16 %v732, %v729
        %v769 = vpack.c.b16 %v736, %v733
        %v770 = vpack.c.b16 %v737, %v734
        %v771 = vpack.c.b16 %v738, %v735
        %v772 = vpack.c.b16 %v742, %v739
        %v773 = vpack.c.b16 %v743, %v740
        %v774 = vpack.c.b16 %v744, %v741
        %v775 = vpack.c.b16 %v748, %v745
        %v776 = vpack.c.b16 %v749, %v746
        %v777 = vpack.c.b16 %v750, %v747
        %v778 = vpack.c.b16 %v754, %v751
        %v779 = vpack.c.b16 %v755, %v752
        %v780 = vpack.c.b16 %v756, %v753
        %805 = vmatpush.bf16.msra.mxu0 %v778
        %806 = vmatpush.bf16.msra.mxu0 %v775
        %807 = vmatpush.bf16.msra.mxu0 %v772
        %808 = vmatpush.bf16.msra.mxu0 %v769
        %809 = vmatpush.bf16.msra.mxu0 %v766
        %810 = vmatpush.bf16.msra.mxu0 %v763
        %811 = vmatpush.bf16.msra.mxu0 %v760
        %812 = vmatpush.bf16.msra.mxu0 %v757
        %813 = vmatmul.bf16.gmra.mxu0 %v636
        %v814 = vpop.f32.mrf.mxu0
        %v815 = vadd.f32 %v671, %v814
        %v816 = vpop.f32.mrf.mxu0
        %817 = vdwg.mxu0
        %818 = vmatpush.bf16.msra.mxu0 %v779
        %819 = vmatpush.bf16.msra.mxu0 %v776
        %820 = vmatpush.bf16.msra.mxu0 %v773
        %821 = vmatpush.bf16.msra.mxu0 %v770
        %822 = vmatpush.bf16.msra.mxu0 %v767
        %823 = vmatpush.bf16.msra.mxu0 %v764
        %824 = vmatpush.bf16.msra.mxu0 %v761
        %825 = vmatpush.bf16.msra.mxu0 %v758
        %826 = vmatmul.bf16.gmra.mxu0 %v636
        %v827 = vpop.f32.mrf.mxu0
        %v828 = vadd.f32 %v672, %v827
        %v829 = vpop.f32.mrf.mxu0
        %830 = vdwg.mxu0
        %831 = vmatpush.bf16.msra.mxu0 %v780
        %832 = vmatpush.bf16.msra.mxu0 %v777
        %833 = vmatpush.bf16.msra.mxu0 %v774
        %834 = vmatpush.bf16.msra.mxu0 %v771
        %835 = vmatpush.bf16.msra.mxu0 %v768
        %836 = vmatpush.bf16.msra.mxu0 %v765
        %837 = vmatpush.bf16.msra.mxu0 %v762
        %838 = vmatpush.bf16.msra.mxu0 %v759
        %839 = vmatmul.bf16.gmra.mxu0 %v636
        %v840 = vpop.f32.mrf.mxu0
        %v841 = vadd.f32 %v673, %v840
        %v842 = vpop.f32.mrf.mxu0
        %843 = vdwg.mxu0
        %v844 = vmul.f32 %v815, 0.17677669
        %v845 = vpack.c.bf16 %v828, %v828
        %v846 = vpack.c.bf16 %v841, %v841
        %v847 = vpack.c.bf16 %v844, %v844
        %vm848 = vcmask 261120
        %v850 = vsel %vm848, %v847, 0
        %v853 = vsel %vm848, %v845, 0
        %855 = vmatpush.bf16.xpose.msra.mxu0 0
        %856 = vmatpush.bf16.xpose.msra.mxu0 0
        %857 = vmatpush.bf16.xpose.msra.mxu0 0
        %858 = vmatpush.bf16.xpose.msra.mxu0 0
        %859 = vmatpush.bf16.xpose.msra.mxu0 0
        %860 = vmatpush.bf16.xpose.msra.mxu0 0
        %861 = vmatpush.bf16.xpose.msra.mxu0 0
        %862 = vmatpush.bf16.xpose.msra.mxu0 %v853
        %863 = vmatmul.bf16.gmra.mxu0 %v850
        %v864 = vpop.f32.mrf.mxu0
        %v865 = vadd.f32 0.0, %v864
        %v866 = vpop.f32.mrf.mxu0
        %867 = vdwg.mxu0
        %vm868 = vcmask 64512
        %v869 = vsel %vm868, %v865, -inf
        %870 = vmax.xlane.f32.xlu0 %v869
        %v871 = vpop.xlane.xlu0 %870
        %v872 = vsub.f32 %v865, %v871
        %v873 = vmul.f32 %v872, 1.442695
        %v874 = vpow.pop %v873
        %v875 = vsel %vm868, %v874, 0.0
        %876 = vadd.xlane.f32.xlu0 %v875
        %v877 = vpop.xlane.xlu0 %876
        %v878 = vrcp.pop %v877
        %v879 = vmul.f32 %v874, %v878
        %v880 = vpack.c.bf16 %v879, %v879
        %v882 = vsel %vm868, %v880, 0
        %vm884 = vcmask 1043456
        %v886 = vsel %vm884, %v846, 0
        %888 = vmatpush.bf16.msra.mxu0 0
        %889 = vmatpush.bf16.msra.mxu0 0
        %890 = vmatpush.bf16.msra.mxu0 0
        %891 = vmatpush.bf16.msra.mxu0 0
        %892 = vmatpush.bf16.msra.mxu0 0
        %893 = vmatpush.bf16.msra.mxu0 0
        %894 = vmatpush.bf16.msra.mxu0 0
        %895 = vmatpush.bf16.msra.mxu0 %v886
        %896 = vmatmul.bf16.gmra.mxu0 %v882
        %v897 = vpop.f32.mrf.mxu0
        %v898 = vadd.f32 0.0, %v897
        %v899 = vpop.f32.mrf.mxu0
        %900 = vdwg.mxu0
        %v901 = vpack.c.bf16 %v898, %v898
        %vm902 = vcmask 257024
        %903 = vst.msk [vmem:[#allocation2] sm:$0xf] %vm902, %v901
        %905 = vrot.lane.b32.xlu0 %v847, 96
        %v906 = vpop.permute.xlu0 %905
        %v908 = vunpack.c.l.b16 %v845
        %v909 = vpack.c.b16 %v908, %v908
        %910 = vrot.lane.b32.xlu0 %v909, 96
        %v911 = vpop.permute.xlu0 %910
        %v913 = vsel %vm848, %v906, 0
        %v916 = vsel %vm848, %v911, 0
        %918 = vmatpush.bf16.xpose.msra.mxu0 0
        %919 = vmatpush.bf16.xpose.msra.mxu0 0
        %920 = vmatpush.bf16.xpose.msra.mxu0 0
        %921 = vmatpush.bf16.xpose.msra.mxu0 0
        %922 = vmatpush.bf16.xpose.msra.mxu0 0
        %923 = vmatpush.bf16.xpose.msra.mxu0 0
        %924 = vmatpush.bf16.xpose.msra.mxu0 0
        %925 = vmatpush.bf16.xpose.msra.mxu0 %v916
        %926 = vmatmul.bf16.gmra.mxu0 %v913
        %v927 = vpop.f32.mrf.mxu0
        %v928 = vadd.f32 0.0, %v927
        %v929 = vpop.f32.mrf.mxu0
        %930 = vdwg.mxu0
        %v931 = vsel %vm868, %v928, -inf
        %932 = vmax.xlane.f32.xlu0 %v931
        %v933 = vpop.xlane.xlu0 %932
        %v934 = vsub.f32 %v928, %v933
        %v935 = vmul.f32 %v934, 1.442695
        %v936 = vpow.pop %v935
        %v937 = vsel %vm868, %v936, 0.0
        %938 = vadd.xlane.f32.xlu0 %v937
        %v939 = vpop.xlane.xlu0 %938
        %v940 = vrcp.pop %v939
        %v941 = vmul.f32 %v936, %v940
        %v942 = vpack.c.bf16 %v941, %v941
        %v944 = vunpack.c.l.b16 %v846
        %v945 = vpack.c.b16 %v944, %v944
        %946 = vrot.lane.b32.xlu0 %v945, 96
        %v947 = vpop.permute.xlu0 %946
        %v949 = vsel %vm868, %v942, 0
        %v952 = vsel %vm884, %v947, 0
        %954 = vmatpush.bf16.msra.mxu0 0
        %955 = vmatpush.bf16.msra.mxu0 0
        %956 = vmatpush.bf16.msra.mxu0 0
        %957 = vmatpush.bf16.msra.mxu0 0
        %958 = vmatpush.bf16.msra.mxu0 0
        %959 = vmatpush.bf16.msra.mxu0 0
        %960 = vmatpush.bf16.msra.mxu0 0
        %961 = vmatpush.bf16.msra.mxu0 %v952
        %962 = vmatmul.bf16.gmra.mxu0 %v949
        %v963 = vpop.f32.mrf.mxu0
        %v964 = vadd.f32 0.0, %v963
        %v965 = vpop.f32.mrf.mxu0
        %966 = vdwg.mxu0
        %v967 = vpack.c.bf16 %v964, %v964
        %969 = vrot.lane.b32.xlu0 %v967, 32
        %v970 = vpop.permute.xlu0 %969
        %vm972 = vcmask 519424
        %973 = vst.msk [vmem:[#allocation2] sm:$0xf] %vm972, %v970
        %974 = vrot.lane.b32.xlu0 %v847, 64
        %v975 = vpop.permute.xlu0 %974
        %976 = vrot.lane.b32.xlu0 %v909, 64
        %v977 = vpop.permute.xlu0 %976
        %v979 = vsel %vm848, %v975, 0
        %v982 = vsel %vm848, %v977, 0
        %984 = vmatpush.bf16.xpose.msra.mxu0 0
        %985 = vmatpush.bf16.xpose.msra.mxu0 0
        %986 = vmatpush.bf16.xpose.msra.mxu0 0
        %987 = vmatpush.bf16.xpose.msra.mxu0 0
        %988 = vmatpush.bf16.xpose.msra.mxu0 0
        %989 = vmatpush.bf16.xpose.msra.mxu0 0
        %990 = vmatpush.bf16.xpose.msra.mxu0 0
        %991 = vmatpush.bf16.xpose.msra.mxu0 %v982
        %992 = vmatmul.bf16.gmra.mxu0 %v979
        %v993 = vpop.f32.mrf.mxu0
        %v994 = vadd.f32 0.0, %v993
        %v995 = vpop.f32.mrf.mxu0
        %996 = vdwg.mxu0
        %v997 = vsel %vm868, %v994, -inf
        %998 = vmax.xlane.f32.xlu0 %v997
        %v999 = vpop.xlane.xlu0 %998
        %v1000 = vsub.f32 %v994, %v999
        %v1001 = vmul.f32 %v1000, 1.442695
        %v1002 = vpow.pop %v1001
        %v1003 = vsel %vm868, %v1002, 0.0
        %1004 = vadd.xlane.f32.xlu0 %v1003
        %v1005 = vpop.xlane.xlu0 %1004
        %v1006 = vrcp.pop %v1005
        %v1007 = vmul.f32 %v1002, %v1006
        %v1008 = vpack.c.bf16 %v1007, %v1007
        %1009 = vrot.lane.b32.xlu0 %v945, 64
        %v1010 = vpop.permute.xlu0 %1009
        %v1012 = vsel %vm868, %v1008, 0
        %v1015 = vsel %vm884, %v1010, 0
        %1017 = vmatpush.bf16.msra.mxu0 0
        %1018 = vmatpush.bf16.msra.mxu0 0
        %1019 = vmatpush.bf16.msra.mxu0 0
        %1020 = vmatpush.bf16.msra.mxu0 0
        %1021 = vmatpush.bf16.msra.mxu0 0
        %1022 = vmatpush.bf16.msra.mxu0 0
        %1023 = vmatpush.bf16.msra.mxu0 0
        %1024 = vmatpush.bf16.msra.mxu0 %v1015
        %1025 = vmatmul.bf16.gmra.mxu0 %v1012
        %v1026 = vpop.f32.mrf.mxu0
        %v1027 = vadd.f32 0.0, %v1026
        %v1028 = vpop.f32.mrf.mxu0
        %1029 = vdwg.mxu0
        %v1030 = vpack.c.bf16 %v1027, %v1027
        %1032 = vrot.lane.b32.xlu0 %v1030, 64
        %v1033 = vpop.permute.xlu0 %1032
        %vm1035 = vcmask 781824
        %1036 = vst.msk [vmem:[#allocation2] sm:$0xf] %vm1035, %v1033
        %1037 = vrot.lane.b32.xlu0 %v847, 32
        %v1038 = vpop.permute.xlu0 %1037
        %1039 = vrot.lane.b32.xlu0 %v909, 32
        %v1040 = vpop.permute.xlu0 %1039
        %v1042 = vsel %vm848, %v1038, 0
        %v1045 = vsel %vm848, %v1040, 0
        %1047 = vmatpush.bf16.xpose.msra.mxu0 0
        %1048 = vmatpush.bf16.xpose.msra.mxu0 0
        %1049 = vmatpush.bf16.xpose.msra.mxu0 0
        %1050 = vmatpush.bf16.xpose.msra.mxu0 0
        %1051 = vmatpush.bf16.xpose.msra.mxu0 0
        %1052 = vmatpush.bf16.xpose.msra.mxu0 0
        %1053 = vmatpush.bf16.xpose.msra.mxu0 0
        %1054 = vmatpush.bf16.xpose.msra.mxu0 %v1045
        %1055 = vmatmul.bf16.gmra.mxu0 %v1042
        %v1056 = vpop.f32.mrf.mxu0
        %v1057 = vadd.f32 0.0, %v1056
        %v1058 = vpop.f32.mrf.mxu0
        %1059 = vdwg.mxu0
        %v1060 = vsel %vm868, %v1057, -inf
        %1061 = vmax.xlane.f32.xlu0 %v1060
        %v1062 = vpop.xlane.xlu0 %1061
        %v1063 = vsub.f32 %v1057, %v1062
        %v1064 = vmul.f32 %v1063, 1.442695
        %v1065 = vpow.pop %v1064
        %v1066 = vsel %vm868, %v1065, 0.0
        %1067 = vadd.xlane.f32.xlu0 %v1066
        %v1068 = vpop.xlane.xlu0 %1067
        %v1069 = vrcp.pop %v1068
        %v1070 = vmul.f32 %v1065, %v1069
        %v1071 = vpack.c.bf16 %v1070, %v1070
        %1072 = vrot.lane.b32.xlu0 %v945, 32
        %v1073 = vpop.permute.xlu0 %1072
        %v1075 = vsel %vm868, %v1071, 0
        %v1078 = vsel %vm884, %v1073, 0
        %1080 = vmatpush.bf16.msra.mxu0 0
        %1081 = vmatpush.bf16.msra.mxu0 0
        %1082 = vmatpush.bf16.msra.mxu0 0
        %1083 = vmatpush.bf16.msra.mxu0 0
        %1084 = vmatpush.bf16.msra.mxu0 0
        %1085 = vmatpush.bf16.msra.mxu0 0
        %1086 = vmatpush.bf16.msra.mxu0 0
        %1087 = vmatpush.bf16.msra.mxu0 %v1078
        %1088 = vmatmul.bf16.gmra.mxu0 %v1075
        %v1089 = vpop.f32.mrf.mxu0
        %v1090 = vadd.f32 0.0, %v1089
        %v1091 = vpop.f32.mrf.mxu0
        %1092 = vdwg.mxu0
        %v1093 = vpack.c.bf16 %v1090, %v1090
        %1095 = vrot.lane.b32.xlu0 %v1093, 96
        %v1096 = vpop.permute.xlu0 %1095
        %vm1098 = vcmask 1044224
        %1099 = vst.msk [vmem:[#allocation2] sm:$0xf] %vm1098, %v1096
        %v1100 = vld [vmem:[#allocation2] sm:$0xf]
        %v1101 = vld [vmem:[#allocation11] sm:$0xf]
        %v1102 = vld [vmem:[#allocation11 + $0x4] sm:$0xf]
        %v1103 = vld [vmem:[#allocation11 + $0x8] sm:$0xf]
        %v1104 = vld [vmem:[#allocation11 + $0xc] sm:$0xf]
        %v1105 = vld [vmem:[#allocation11 + $0x10] sm:$0xf]
        %v1106 = vld [vmem:[#allocation11 + $0x14] sm:$0xf]
        %v1107 = vld [vmem:[#allocation11 + $0x18] sm:$0xf]
        %v1108 = vld [vmem:[#allocation11 + $0x1c] sm:$0xf]
        %v1109 = vld [vmem:[#allocation11 + $0x20] sm:$0xf]
        %v1110 = vld [vmem:[#allocation11 + $0x24] sm:$0xf]
        %v1111 = vld [vmem:[#allocation11 + $0x28] sm:$0xf]
        %v1112 = vld [vmem:[#allocation11 + $0x2c] sm:$0xf]
        %v1113 = vld [vmem:[#allocation11 + $0x30] sm:$0xf]
        %v1114 = vld [vmem:[#allocation11 + $0x34] sm:$0xf]
        %v1115 = vld [vmem:[#allocation11 + $0x38] sm:$0xf]
        %v1116 = vld [vmem:[#allocation11 + $0x3c] sm:$0xf]
        %v1117 = vld [vmem:[#allocation12] sm:$0x1]
        %v1119 = vperm.slane %v1117, 0
        %v1137 = vunpack.c.l.b16 %v1101
        %v1138 = vunpack.c.l.b16 %v1102
        %v1139 = vunpack.c.l.b16 %v1103
        %v1140 = vunpack.c.l.b16 %v1104
        %v1141 = vunpack.c.l.b16 %v1105
        %v1142 = vunpack.c.l.b16 %v1106
        %v1143 = vunpack.c.l.b16 %v1107
        %v1144 = vunpack.c.l.b16 %v1108
        %v1145 = vunpack.c.l.b16 %v1109
        %v1146 = vunpack.c.l.b16 %v1110
        %v1147 = vunpack.c.l.b16 %v1111
        %v1148 = vunpack.c.l.b16 %v1112
        %v1149 = vunpack.c.l.b16 %v1113
        %v1150 = vunpack.c.l.b16 %v1114
        %v1151 = vunpack.c.l.b16 %v1115
        %v1152 = vunpack.c.l.b16 %v1116
        %v1153 = vpack.c.b16 %v1138, %v1137
        %v1154 = vpack.c.b16 %v1140, %v1139
        %v1155 = vpack.c.b16 %v1142, %v1141
        %v1156 = vpack.c.b16 %v1144, %v1143
        %v1157 = vpack.c.b16 %v1146, %v1145
        %v1158 = vpack.c.b16 %v1148, %v1147
        %v1159 = vpack.c.b16 %v1150, %v1149
        %v1160 = vpack.c.b16 %v1152, %v1151
        %1169 = vmatpush.bf16.msra.mxu0 %v1160
        %1170 = vmatpush.bf16.msra.mxu0 %v1159
        %1171 = vmatpush.bf16.msra.mxu0 %v1158
        %1172 = vmatpush.bf16.msra.mxu0 %v1157
        %1173 = vmatpush.bf16.msra.mxu0 %v1156
        %1174 = vmatpush.bf16.msra.mxu0 %v1155
        %1175 = vmatpush.bf16.msra.mxu0 %v1154
        %1176 = vmatpush.bf16.msra.mxu0 %v1153
        %1177 = vmatmul.bf16.gmra.mxu0 %v1100
        %v1178 = vpop.f32.mrf.mxu0
        %v1179 = vadd.f32 %v1119, %v1178
        %v1180 = vpop.f32.mrf.mxu0
        %1181 = vdwg.mxu0
        %v1182 = vadd.f32 %v598, %v1179
        %v1183 = vld [vmem:[#allocation14] sm:$0x1]
        %v1184 = vld [vmem:[#allocation15] sm:$0x1]
        %1185 = vadd.xlane.f32.xlu0 %v1182
        %v1186 = vpop.xlane.xlu0 %1185
        %v1187 = vmul.f32 %v1186, %v609
        %v1188 = vsub.f32 %v1182, %v1187
        %v1189 = vmul.f32 %v1188, %v1188
        %1190 = vadd.xlane.f32.xlu0 %v1189
        %v1191 = vpop.xlane.xlu0 %1190
        %v1192 = vmul.f32 %v1191, %v609
        %v1193 = vadd.f32 %v1192, 1e-05
        %v1194 = vrsqrt.pop %v1193
        %v1195 = vmul.f32 %v1194, %v1193
        %v1196 = vmul.f32 %v1195, %v1194
        %v1197 = vmul.f32 0.5, %v1196
        %v1198 = vsub.f32 1.5, %v1197
        %v1199 = vmul.f32 %v1194, %v1198
        %vm1200 = vweird.f32 %v1193
        %vm1201 = vweird.f32 %v1194
        %vm1202 = vmor %vm1200, %vm1201
        %v1203 = vsel %vm1202, %v1194, %v1199
        %v1204 = vmul.f32 %v1188, %v1203
        %v1206 = vperm.slane %v1183, 0
        %v1208 = vmul.f32 %v1204, %v1206
        %v1210 = vperm.slane %v1184, 0
        %v1212 = vadd.f32 %v1208, %v1210
        %v1213 = vpack.c.bf16 %v1212, %v1212
        %v1214 = vld [vmem:[#allocation17] sm:$0xff]
        %v1215 = vld [vmem:[#allocation17 + $0x8] sm:$0xff]
        %v1216 = vld [vmem:[#allocation17 + $0x10] sm:$0xff]
        %v1217 = vld [vmem:[#allocation17 + $0x18] sm:$0xff]
        %v1218 = vld [vmem:[#allocation17 + $0x20] sm:$0xff]
        %v1219 = vld [vmem:[#allocation17 + $0x28] sm:$0xff]
        %v1220 = vld [vmem:[#allocation17 + $0x30] sm:$0xff]
        %v1221 = vld [vmem:[#allocation17 + $0x38] sm:$0xff]
        %v1222 = vld [vmem:[#allocation17 + $0x40] sm:$0xff]
        %v1223 = vld [vmem:[#allocation17 + $0x48] sm:$0xff]
        %v1224 = vld [vmem:[#allocation17 + $0x50] sm:$0xff]
        %v1225 = vld [vmem:[#allocation17 + $0x58] sm:$0xff]
        %v1226 = vld [vmem:[#allocation17 + $0x60] sm:$0xff]
        %v1227 = vld [vmem:[#allocation17 + $0x68] sm:$0xff]
        %v1228 = vld [vmem:[#allocation17 + $0x70] sm:$0xff]
        %v1229 = vld [vmem:[#allocation17 + $0x78] sm:$0xff]
        %v1230 = vld [vmem:[#allocation17 + $0x80] sm:$0xff]
        %v1231 = vld [vmem:[#allocation17 + $0x88] sm:$0xff]
        %v1232 = vld [vmem:[#allocation17 + $0x90] sm:$0xff]
        %v1233 = vld [vmem:[#allocation17 + $0x98] sm:$0xff]
        %v1234 = vld [vmem:[#allocation17 + $0xa0] sm:$0xff]
        %v1235 = vld [vmem:[#allocation17 + $0xa8] sm:$0xff]
        %v1236 = vld [vmem:[#allocation17 + $0xb0] sm:$0xff]
        %v1237 = vld [vmem:[#allocation17 + $0xb8] sm:$0xff]
        %v1238 = vld [vmem:[#allocation17 + $0xc0] sm:$0xff]
        %v1239 = vld [vmem:[#allocation17 + $0xc8] sm:$0xff]
        %v1240 = vld [vmem:[#allocation17 + $0xd0] sm:$0xff]
        %v1241 = vld [vmem:[#allocation17 + $0xd8] sm:$0xff]
        %v1242 = vld [vmem:[#allocation17 + $0xe0] sm:$0xff]
        %v1243 = vld [vmem:[#allocation17 + $0xe8] sm:$0xff]
        %v1244 = vld [vmem:[#allocation17 + $0xf0] sm:$0xff]
        %v1245 = vld [vmem:[#allocation17 + $0xf8] sm:$0xff]
        %v1246 = vld [vmem:[%s10] sm:$0xf]
        %v1248 = vperm.slane %v1246, 0
        %v1249 = vperm.slane %v1246, 1
        %v1250 = vperm.slane %v1246, 2
        %v1251 = vperm.slane %v1246, 3
        %v1288 = vunpack.c.l.b16 %v1214
        %v1289 = vunpack.c.h.b16 %v1214
        %v1290 = vunpack.c.l.b16 %v1215
        %v1291 = vunpack.c.h.b16 %v1215
        %v1292 = vunpack.c.l.b16 %v1216
        %v1293 = vunpack.c.h.b16 %v1216
        %v1294 = vunpack.c.l.b16 %v1217
        %v1295 = vunpack.c.h.b16 %v1217
        %v1296 = vunpack.c.l.b16 %v1218
        %v1297 = vunpack.c.h.b16 %v1218
        %v1298 = vunpack.c.l.b16 %v1219
        %v1299 = vunpack.c.h.b16 %v1219
        %v1300 = vunpack.c.l.b16 %v1220
        %v1301 = vunpack.c.h.b16 %v1220
        %v1302 = vunpack.c.l.b16 %v1221
        %v1303 = vunpack.c.h.b16 %v1221
        %v1304 = vunpack.c.l.b16 %v1222
        %v1305 = vunpack.c.h.b16 %v1222
        %v1306 = vunpack.c.l.b16 %v1223
        %v1307 = vunpack.c.h.b16 %v1223
        %v1308 = vunpack.c.l.b16 %v1224
        %v1309 = vunpack.c.h.b16 %v1224
        %v1310 = vunpack.c.l.b16 %v1225
        %v1311 = vunpack.c.h.b16 %v1225
        %v1312 = vunpack.c.l.b16 %v1226
        %v1313 = vunpack.c.h.b16 %v1226
        %v1314 = vunpack.c.l.b16 %v1227
        %v1315 = vunpack.c.h.b16 %v1227
        %v1316 = vunpack.c.l.b16 %v1228
        %v1317 = vunpack.c.h.b16 %v1228
        %v1318 = vunpack.c.l.b16 %v1229
        %v1319 = vunpack.c.h.b16 %v1229
        %v1320 = vunpack.c.l.b16 %v1230
        %v1321 = vunpack.c.h.b16 %v1230
        %v1322 = vunpack.c.l.b16 %v1231
        %v1323 = vunpack.c.h.b16 %v1231
        %v1324 = vunpack.c.l.b16 %v1232
        %v1325 = vunpack.c.h.b16 %v1232
        %v1326 = vunpack.c.l.b16 %v1233
        %v1327 = vunpack.c.h.b16 %v1233
        %v1328 = vunpack.c.l.b16 %v1234
        %v1329 = vunpack.c.h.b16 %v1234
        %v1330 = vunpack.c.l.b16 %v1235
        %v1331 = vunpack.c.h.b16 %v1235
        %v1332 = vunpack.c.l.b16 %v1236
        %v1333 = vunpack.c.h.b16 %v1236
        %v1334 = vunpack.c.l.b16 %v1237
        %v1335 = vunpack.c.h.b16 %v1237
        %v1336 = vunpack.c.l.b16 %v1238
        %v1337 = vunpack.c.h.b16 %v1238
        %v1338 = vunpack.c.l.b16 %v1239
        %v1339 = vunpack.c.h.b16 %v1239
        %v1340 = vunpack.c.l.b16 %v1240
        %v1341 = vunpack.c.h.b16 %v1240
        %v1342 = vunpack.c.l.b16 %v1241
        %v1343 = vunpack.c.h.b16 %v1241
        %v1344 = vunpack.c.l.b16 %v1242
        %v1345 = vunpack.c.h.b16 %v1242
        %v1346 = vunpack.c.l.b16 %v1243
        %v1347 = vunpack.c.h.b16 %v1243
        %v1348 = vunpack.c.l.b16 %v1244
        %v1349 = vunpack.c.h.b16 %v1244
        %v1350 = vunpack.c.l.b16 %v1245
        %v1351 = vunpack.c.h.b16 %v1245
        %v1352 = vpack.c.b16 %v1292, %v1288
        %v1353 = vpack.c.b16 %v1293, %v1289
        %v1354 = vpack.c.b16 %v1294, %v1290
        %v1355 = vpack.c.b16 %v1295, %v1291
        %v1356 = vpack.c.b16 %v1300, %v1296
        %v1357 = vpack.c.b16 %v1301, %v1297
        %v1358 = vpack.c.b16 %v1302, %v1298
        %v1359 = vpack.c.b16 %v1303, %v1299
        %v1360 = vpack.c.b16 %v1308, %v1304
        %v1361 = vpack.c.b16 %v1309, %v1305
        %v1362 = vpack.c.b16 %v1310, %v1306
        %v1363 = vpack.c.b16 %v1311, %v1307
        %v1364 = vpack.c.b16 %v1316, %v1312
        %v1365 = vpack.c.b16 %v1317, %v1313
        %v1366 = vpack.c.b16 %v1318, %v1314
        %v1367 = vpack.c.b16 %v1319, %v1315
        %v1368 = vpack.c.b16 %v1324, %v1320
        %v1369 = vpack.c.b16 %v1325, %v1321
        %v1370 = vpack.c.b16 %v1326, %v1322
        %v1371 = vpack.c.b16 %v1327, %v1323
        %v1372 = vpack.c.b16 %v1332, %v1328
        %v1373 = vpack.c.b16 %v1333, %v1329
        %v1374 = vpack.c.b16 %v1334, %v1330
        %v1375 = vpack.c.b16 %v1335, %v1331
        %v1376 = vpack.c.b16 %v1340, %v1336
        %v1377 = vpack.c.b16 %v1341, %v1337
        %v1378 = vpack.c.b16 %v1342, %v1338
        %v1379 = vpack.c.b16 %v1343, %v1339
        %v1380 = vpack.c.b16 %v1348, %v1344
        %v1381 = vpack.c.b16 %v1349, %v1345
        %v1382 = vpack.c.b16 %v1350, %v1346
        %v1383 = vpack.c.b16 %v1351, %v1347
        %1416 = vmatpush.bf16.msra.mxu0 %v1380
        %1417 = vmatpush.bf16.msra.mxu0 %v1376
        %1418 = vmatpush.bf16.msra.mxu0 %v1372
        %1419 = vmatpush.bf16.msra.mxu0 %v1368
        %1420 = vmatpush.bf16.msra.mxu0 %v1364
        %1421 = vmatpush.bf16.msra.mxu0 %v1360
        %1422 = vmatpush.bf16.msra.mxu0 %v1356
        %1423 = vmatpush.bf16.msra.mxu0 %v1352
        %1424 = vmatmul.bf16.gmra.mxu0 %v1213
        %v1425 = vpop.f32.mrf.mxu0
        %v1426 = vadd.f32 %v1248, %v1425
        %v1427 = vpop.f32.mrf.mxu0
        %1428 = vdwg.mxu0
        %1429 = vmatpush.bf16.msra.mxu0 %v1381
        %1430 = vmatpush.bf16.msra.mxu0 %v1377
        %1431 = vmatpush.bf16.msra.mxu0 %v1373
        %1432 = vmatpush.bf16.msra.mxu0 %v1369
        %1433 = vmatpush.bf16.msra.mxu0 %v1365
        %1434 = vmatpush.bf16.msra.mxu0 %v1361
        %1435 = vmatpush.bf16.msra.mxu0 %v1357
        %1436 = vmatpush.bf16.msra.mxu0 %v1353
        %1437 = vmatmul.bf16.gmra.mxu0 %v1213
        %v1438 = vpop.f32.mrf.mxu0
        %v1439 = vadd.f32 %v1249, %v1438
        %v1440 = vpop.f32.mrf.mxu0
        %1441 = vdwg.mxu0
        %1442 = vmatpush.bf16.msra.mxu0 %v1382
        %1443 = vmatpush.bf16.msra.mxu0 %v1378
        %1444 = vmatpush.bf16.msra.mxu0 %v1374
        %1445 = vmatpush.bf16.msra.mxu0 %v1370
        %1446 = vmatpush.bf16.msra.mxu0 %v1366
        %1447 = vmatpush.bf16.msra.mxu0 %v1362
        %1448 = vmatpush.bf16.msra.mxu0 %v1358
        %1449 = vmatpush.bf16.msra.mxu0 %v1354
        %1450 = vmatmul.bf16.gmra.mxu0 %v1213
        %v1451 = vpop.f32.mrf.mxu0
        %v1452 = vadd.f32 %v1250, %v1451
        %v1453 = vpop.f32.mrf.mxu0
        %1454 = vdwg.mxu0
        %1455 = vmatpush.bf16.msra.mxu0 %v1383
        %1456 = vmatpush.bf16.msra.mxu0 %v1379
        %1457 = vmatpush.bf16.msra.mxu0 %v1375
        %1458 = vmatpush.bf16.msra.mxu0 %v1371
        %1459 = vmatpush.bf16.msra.mxu0 %v1367
        %1460 = vmatpush.bf16.msra.mxu0 %v1363
        %1461 = vmatpush.bf16.msra.mxu0 %v1359
        %1462 = vmatpush.bf16.msra.mxu0 %v1355
        %1463 = vmatmul.bf16.gmra.mxu0 %v1213
        %v1464 = vpop.f32.mrf.mxu0
        %v1465 = vadd.f32 %v1251, %v1464
        %v1466 = vpop.f32.mrf.mxu0
        %1467 = vdwg.mxu0
        %v1468 = vmul.f32 %v1426, 1.702
        %v1469 = vmul.f32 %v1439, 1.702
        %v1470 = vmul.f32 %v1452, 1.702
        %v1471 = vmul.f32 %v1465, 1.702
        %v1472 = vxor.u32 %v1468, 2147483648
        %v1473 = vxor.u32 %v1469, 2147483648
        %v1474 = vxor.u32 %v1470, 2147483648
        %v1475 = vxor.u32 %v1471, 2147483648
        %v1476 = vmul.f32 %v1472, 1.442695
        %v1477 = vpow.pop %v1476
        %v1478 = vmul.f32 %v1473, 1.442695
        %v1479 = vpow.pop %v1478
        %v1480 = vmul.f32 %v1474, 1.442695
        %v1481 = vpow.pop %v1480
        %v1482 = vmul.f32 %v1475, 1.442695
        %v1483 = vpow.pop %v1482
        %v1484 = vadd.f32 %v1477, 1.0
        %v1485 = vadd.f32 %v1479, 1.0
        %v1486 = vadd.f32 %v1481, 1.0
        %v1487 = vadd.f32 %v1483, 1.0
        %v1488 = vrcp.pop %v1484
        %v1489 = vmul.f32 %v1484, %v1488
        %v1490 = vsub.f32 1.0, %v1489
        %v1491 = vmul.f32 %v1488, %v1490
        %v1492 = vadd.f32 %v1488, %v1491
        %vm1493 = vweird.f32 %v1484
        %vm1494 = vweird.f32 %v1488
        %vm1495 = vmor %vm1493, %vm1494
        %v1496 = vsel %vm1495, %v1488, %v1492
        %v1497 = vand.u32 2147483647, %v1484
        %vm1498 = vcmp.eq.f32.partialorder %v1497, 8.507059e+37
        %v1499 = vand.u32 %v1484, 2147483648
        %v1500 = vor.u32 1.1754944e-38, %v1499
        %v1501 = vsel %vm1498, %v1500, %v1496
        %v1502 = vmul.f32 1.0, %v1501
        %v1503 = vrcp.pop %v1485
        %v1504 = vmul.f32 %v1485, %v1503
        %v1505 = vsub.f32 1.0, %v1504
        %v1506 = vmul.f32 %v1503, %v1505
        %v1507 = vadd.f32 %v1503, %v1506
        %vm1508 = vweird.f32 %v1485
        %vm1509 = vweird.f32 %v1503
        %vm1510 = vmor %vm1508, %vm1509
        %v1511 = vsel %vm1510, %v1503, %v1507
        %v1512 = vand.u32 2147483647, %v1485
        %vm1513 = vcmp.eq.f32.partialorder %v1512, 8.507059e+37
        %v1514 = vand.u32 %v1485, 2147483648
        %v1515 = vor.u32 1.1754944e-38, %v1514
        %v1516 = vsel %vm1513, %v1515, %v1511
        %v1517 = vmul.f32 1.0, %v1516
        %v1518 = vrcp.pop %v1486
        %v1519 = vmul.f32 %v1486, %v1518
        %v1520 = vsub.f32 1.0, %v1519
        %v1521 = vmul.f32 %v1518, %v1520
        %v1522 = vadd.f32 %v1518, %v1521
        %vm1523 = vweird.f32 %v1486
        %vm1524 = vweird.f32 %v1518
        %vm1525 = vmor %vm1523, %vm1524
        %v1526 = vsel %vm1525, %v1518, %v1522
        %v1527 = vand.u32 2147483647, %v1486
        %vm1528 = vcmp.eq.f32.partialorder %v1527, 8.507059e+37
        %v1529 = vand.u32 %v1486, 2147483648
        %v1530 = vor.u32 1.1754944e-38, %v1529
        %v1531 = vsel %vm1528, %v1530, %v1526
        %v1532 = vmul.f32 1.0, %v1531
        %v1533 = vrcp.pop %v1487
        %v1534 = vmul.f32 %v1487, %v1533
        %v1535 = vsub.f32 1.0, %v1534
        %v1536 = vmul.f32 %v1533, %v1535
        %v1537 = vadd.f32 %v1533, %v1536
        %vm1538 = vweird.f32 %v1487
        %vm1539 = vweird.f32 %v1533
        %vm1540 = vmor %vm1538, %vm1539
        %v1541 = vsel %vm1540, %v1533, %v1537
        %v1542 = vand.u32 2147483647, %v1487
        %vm1543 = vcmp.eq.f32.partialorder %v1542, 8.507059e+37
        %v1544 = vand.u32 %v1487, 2147483648
        %v1545 = vor.u32 1.1754944e-38, %v1544
        %v1546 = vsel %vm1543, %v1545, %v1541
        %v1547 = vmul.f32 1.0, %v1546
        %v1548 = vmul.f32 %v1426, %v1502
        %v1549 = vmul.f32 %v1439, %v1517
        %v1550 = vmul.f32 %v1452, %v1532
        %v1551 = vmul.f32 %v1465, %v1547
        %v1552 = vpack.c.bf16 %v1548, %v1548
        %v1553 = vpack.c.bf16 %v1549, %v1549
        %v1554 = vpack.c.bf16 %v1550, %v1550
        %v1555 = vpack.c.bf16 %v1551, %v1551
        %v1556 = vld [vmem:[#allocation18] sm:$0xf]
        %v1557 = vld [vmem:[#allocation18 + $0x4] sm:$0xf]
        %v1558 = vld [vmem:[#allocation18 + $0x8] sm:$0xf]
        %v1559 = vld [vmem:[#allocation18 + $0xc] sm:$0xf]
        %v1560 = vld [vmem:[#allocation18 + $0x10] sm:$0xf]
        %v1561 = vld [vmem:[#allocation18 + $0x14] sm:$0xf]
        %v1562 = vld [vmem:[#allocation18 + $0x18] sm:$0xf]
        %v1563 = vld [vmem:[#allocation18 + $0x1c] sm:$0xf]
        %v1564 = vld [vmem:[#allocation18 + $0x20] sm:$0xf]
        %v1565 = vld [vmem:[#allocation18 + $0x24] sm:$0xf]
        %v1566 = vld [vmem:[#allocation18 + $0x28] sm:$0xf]
        %v1567 = vld [vmem:[#allocation18 + $0x2c] sm:$0xf]
        %v1568 = vld [vmem:[#allocation18 + $0x30] sm:$0xf]
        %v1569 = vld [vmem:[#allocation18 + $0x34] sm:$0xf]
        %v1570 = vld [vmem:[#allocation18 + $0x38] sm:$0xf]
        %v1571 = vld [vmem:[#allocation18 + $0x3c] sm:$0xf]
        %v1572 = vld [vmem:[#allocation18 + $0x40] sm:$0xf]
        %v1573 = vld [vmem:[#allocation18 + $0x44] sm:$0xf]
        %v1574 = vld [vmem:[#allocation18 + $0x48] sm:$0xf]
        %v1575 = vld [vmem:[#allocation18 + $0x4c] sm:$0xf]
        %v1576 = vld [vmem:[#allocation18 + $0x50] sm:$0xf]
        %v1577 = vld [vmem:[#allocation18 + $0x54] sm:$0xf]
        %v1578 = vld [vmem:[#allocation18 + $0x58] sm:$0xf]
        %v1579 = vld [vmem:[#allocation18 + $0x5c] sm:$0xf]
        %v1580 = vld [vmem:[#allocation18 + $0x60] sm:$0xf]
        %v1581 = vld [vmem:[#allocation18 + $0x64] sm:$0xf]
        %v1582 = vld [vmem:[#allocation18 + $0x68] sm:$0xf]
        %v1583 = vld [vmem:[#allocation18 + $0x6c] sm:$0xf]
        %v1584 = vld [vmem:[#allocation18 + $0x70] sm:$0xf]
        %v1585 = vld [vmem:[#allocation18 + $0x74] sm:$0xf]
        %v1586 = vld [vmem:[#allocation18 + $0x78] sm:$0xf]
        %v1587 = vld [vmem:[#allocation18 + $0x7c] sm:$0xf]
        %v1588 = vld [vmem:[#allocation18 + $0x80] sm:$0xf]
        %v1589 = vld [vmem:[#allocation18 + $0x84] sm:$0xf]
        %v1590 = vld [vmem:[#allocation18 + $0x88] sm:$0xf]
        %v1591 = vld [vmem:[#allocation18 + $0x8c] sm:$0xf]
        %v1592 = vld [vmem:[#allocation18 + $0x90] sm:$0xf]
        %v1593 = vld [vmem:[#allocation18 + $0x94] sm:$0xf]
        %v1594 = vld [vmem:[#allocation18 + $0x98] sm:$0xf]
        %v1595 = vld [vmem:[#allocation18 + $0x9c] sm:$0xf]
        %v1596 = vld [vmem:[#allocation18 + $0xa0] sm:$0xf]
        %v1597 = vld [vmem:[#allocation18 + $0xa4] sm:$0xf]
        %v1598 = vld [vmem:[#allocation18 + $0xa8] sm:$0xf]
        %v1599 = vld [vmem:[#allocation18 + $0xac] sm:$0xf]
        %v1600 = vld [vmem:[#allocation18 + $0xb0] sm:$0xf]
        %v1601 = vld [vmem:[#allocation18 + $0xb4] sm:$0xf]
        %v1602 = vld [vmem:[#allocation18 + $0xb8] sm:$0xf]
        %v1603 = vld [vmem:[#allocation18 + $0xbc] sm:$0xf]
        %v1604 = vld [vmem:[#allocation18 + $0xc0] sm:$0xf]
        %v1605 = vld [vmem:[#allocation18 + $0xc4] sm:$0xf]
        %v1606 = vld [vmem:[#allocation18 + $0xc8] sm:$0xf]
        %v1607 = vld [vmem:[#allocation18 + $0xcc] sm:$0xf]
        %v1608 = vld [vmem:[#allocation18 + $0xd0] sm:$0xf]
        %v1609 = vld [vmem:[#allocation18 + $0xd4] sm:$0xf]
        %v1610 = vld [vmem:[#allocation18 + $0xd8] sm:$0xf]
        %v1611 = vld [vmem:[#allocation18 + $0xdc] sm:$0xf]
        %v1612 = vld [vmem:[#allocation18 + $0xe0] sm:$0xf]
        %v1613 = vld [vmem:[#allocation18 + $0xe4] sm:$0xf]
        %v1614 = vld [vmem:[#allocation18 + $0xe8] sm:$0xf]
        %v1615 = vld [vmem:[#allocation18 + $0xec] sm:$0xf]
        %v1616 = vld [vmem:[#allocation18 + $0xf0] sm:$0xf]
        %v1617 = vld [vmem:[#allocation18 + $0xf4] sm:$0xf]
        %v1618 = vld [vmem:[#allocation18 + $0xf8] sm:$0xf]
        %v1619 = vld [vmem:[#allocation18 + $0xfc] sm:$0xf]
        %v1620 = vld [vmem:[%s12] sm:$0x1]
        %v1622 = vperm.slane %v1620, 0
        %v1688 = vunpack.c.l.b16 %v1556
        %v1689 = vunpack.c.l.b16 %v1557
        %v1690 = vunpack.c.l.b16 %v1558
        %v1691 = vunpack.c.l.b16 %v1559
        %v1692 = vunpack.c.l.b16 %v1560
        %v1693 = vunpack.c.l.b16 %v1561
        %v1694 = vunpack.c.l.b16 %v1562
        %v1695 = vunpack.c.l.b16 %v1563
        %v1696 = vunpack.c.l.b16 %v1564
        %v1697 = vunpack.c.l.b16 %v1565
        %v1698 = vunpack.c.l.b16 %v1566
        %v1699 = vunpack.c.l.b16 %v1567
        %v1700 = vunpack.c.l.b16 %v1568
        %v1701 = vunpack.c.l.b16 %v1569
        %v1702 = vunpack.c.l.b16 %v1570
        %v1703 = vunpack.c.l.b16 %v1571
        %v1704 = vunpack.c.l.b16 %v1572
        %v1705 = vunpack.c.l.b16 %v1573
        %v1706 = vunpack.c.l.b16 %v1574
        %v1707 = vunpack.c.l.b16 %v1575
        %v1708 = vunpack.c.l.b16 %v1576
        %v1709 = vunpack.c.l.b16 %v1577
        %v1710 = vunpack.c.l.b16 %v1578
        %v1711 = vunpack.c.l.b16 %v1579
        %v1712 = vunpack.c.l.b16 %v1580
        %v1713 = vunpack.c.l.b16 %v1581
        %v1714 = vunpack.c.l.b16 %v1582
        %v1715 = vunpack.c.l.b16 %v1583
        %v1716 = vunpack.c.l.b16 %v1584
        %v1717 = vunpack.c.l.b16 %v1585
        %v1718 = vunpack.c.l.b16 %v1586
        %v1719 = vunpack.c.l.b16 %v1587
        %v1720 = vunpack.c.l.b16 %v1588
        %v1721 = vunpack.c.l.b16 %v1589
        %v1722 = vunpack.c.l.b16 %v1590
        %v1723 = vunpack.c.l.b16 %v1591
        %v1724 = vunpack.c.l.b16 %v1592
        %v1725 = vunpack.c.l.b16 %v1593
        %v1726 = vunpack.c.l.b16 %v1594
        %v1727 = vunpack.c.l.b16 %v1595
        %v1728 = vunpack.c.l.b16 %v1596
        %v1729 = vunpack.c.l.b16 %v1597
        %v1730 = vunpack.c.l.b16 %v1598
        %v1731 = vunpack.c.l.b16 %v1599
        %v1732 = vunpack.c.l.b16 %v1600
        %v1733 = vunpack.c.l.b16 %v1601
        %v1734 = vunpack.c.l.b16 %v1602
        %v1735 = vunpack.c.l.b16 %v1603
        %v1736 = vunpack.c.l.b16 %v1604
        %v1737 = vunpack.c.l.b16 %v1605
        %v1738 = vunpack.c.l.b16 %v1606
        %v1739 = vunpack.c.l.b16 %v1607
        %v1740 = vunpack.c.l.b16 %v1608
        %v1741 = vunpack.c.l.b16 %v1609
        %v1742 = vunpack.c.l.b16 %v1610
        %v1743 = vunpack.c.l.b16 %v1611
        %v1744 = vunpack.c.l.b16 %v1612
        %v1745 = vunpack.c.l.b16 %v1613
        %v1746 = vunpack.c.l.b16 %v1614
        %v1747 = vunpack.c.l.b16 %v1615
        %v1748 = vunpack.c.l.b16 %v1616
        %v1749 = vunpack.c.l.b16 %v1617
        %v1750 = vunpack.c.l.b16 %v1618
        %v1751 = vunpack.c.l.b16 %v1619
        %v1752 = vpack.c.b16 %v1689, %v1688
        %v1753 = vpack.c.b16 %v1691, %v1690
        %v1754 = vpack.c.b16 %v1693, %v1692
        %v1755 = vpack.c.b16 %v1695, %v1694
        %v1756 = vpack.c.b16 %v1697, %v1696
        %v1757 = vpack.c.b16 %v1699, %v1698
        %v1758 = vpack.c.b16 %v1701, %v1700
        %v1759 = vpack.c.b16 %v1703, %v1702
        %v1760 = vpack.c.b16 %v1705, %v1704
        %v1761 = vpack.c.b16 %v1707, %v1706
        %v1762 = vpack.c.b16 %v1709, %v1708
        %v1763 = vpack.c.b16 %v1711, %v1710
        %v1764 = vpack.c.b16 %v1713, %v1712
        %v1765 = vpack.c.b16 %v1715, %v1714
        %v1766 = vpack.c.b16 %v1717, %v1716
        %v1767 = vpack.c.b16 %v1719, %v1718
        %v1768 = vpack.c.b16 %v1721, %v1720
        %v1769 = vpack.c.b16 %v1723, %v1722
        %v1770 = vpack.c.b16 %v1725, %v1724
        %v1771 = vpack.c.b16 %v1727, %v1726
        %v1772 = vpack.c.b16 %v1729, %v1728
        %v1773 = vpack.c.b16 %v1731, %v1730
        %v1774 = vpack.c.b16 %v1733, %v1732
        %v1775 = vpack.c.b16 %v1735, %v1734
        %v1776 = vpack.c.b16 %v1737, %v1736
        %v1777 = vpack.c.b16 %v1739, %v1738
        %v1778 = vpack.c.b16 %v1741, %v1740
        %v1779 = vpack.c.b16 %v1743, %v1742
        %v1780 = vpack.c.b16 %v1745, %v1744
        %v1781 = vpack.c.b16 %v1747, %v1746
        %v1782 = vpack.c.b16 %v1749, %v1748
        %v1783 = vpack.c.b16 %v1751, %v1750
        %1816 = vmatpush.bf16.msra.mxu0 %v1759
        %1817 = vmatpush.bf16.msra.mxu0 %v1758
        %1818 = vmatpush.bf16.msra.mxu0 %v1757
        %1819 = vmatpush.bf16.msra.mxu0 %v1756
        %1820 = vmatpush.bf16.msra.mxu0 %v1755
        %1821 = vmatpush.bf16.msra.mxu0 %v1754
        %1822 = vmatpush.bf16.msra.mxu0 %v1753
        %1823 = vmatpush.bf16.msra.mxu0 %v1752
        %1824 = vmatmul.bf16.gmra.mxu0 %v1552
        %v1825 = vpop.f32.mrf.mxu0
        %v1826 = vadd.f32 %v1622, %v1825
        %v1827 = vpop.f32.mrf.mxu0
        %1828 = vdwg.mxu0
        %1829 = vmatpush.bf16.msra.mxu0 %v1767
        %1830 = vmatpush.bf16.msra.mxu0 %v1766
        %1831 = vmatpush.bf16.msra.mxu0 %v1765
        %1832 = vmatpush.bf16.msra.mxu0 %v1764
        %1833 = vmatpush.bf16.msra.mxu0 %v1763
        %1834 = vmatpush.bf16.msra.mxu0 %v1762
        %1835 = vmatpush.bf16.msra.mxu0 %v1761
        %1836 = vmatpush.bf16.msra.mxu0 %v1760
        %1837 = vmatmul.bf16.gmra.mxu0 %v1553
        %v1838 = vpop.f32.mrf.mxu0
        %v1839 = vadd.f32 %v1826, %v1838
        %v1840 = vpop.f32.mrf.mxu0
        %1841 = vdwg.mxu0
        %1842 = vmatpush.bf16.msra.mxu0 %v1775
        %1843 = vmatpush.bf16.msra.mxu0 %v1774
        %1844 = vmatpush.bf16.msra.mxu0 %v1773
        %1845 = vmatpush.bf16.msra.mxu0 %v1772
        %1846 = vmatpush.bf16.msra.mxu0 %v1771
        %1847 = vmatpush.bf16.msra.mxu0 %v1770
        %1848 = vmatpush.bf16.msra.mxu0 %v1769
        %1849 = vmatpush.bf16.msra.mxu0 %v1768
        %1850 = vmatmul.bf16.gmra.mxu0 %v1554
        %v1851 = vpop.f32.mrf.mxu0
        %v1852 = vadd.f32 %v1839, %v1851
        %v1853 = vpop.f32.mrf.mxu0
        %1854 = vdwg.mxu0
        %1855 = vmatpush.bf16.msra.mxu0 %v1783
        %1856 = vmatpush.bf16.msra.mxu0 %v1782
        %1857 = vmatpush.bf16.msra.mxu0 %v1781
        %1858 = vmatpush.bf16.msra.mxu0 %v1780
        %1859 = vmatpush.bf16.msra.mxu0 %v1779
        %1860 = vmatpush.bf16.msra.mxu0 %v1778
        %1861 = vmatpush.bf16.msra.mxu0 %v1777
        %1862 = vmatpush.bf16.msra.mxu0 %v1776
        %1863 = vmatmul.bf16.gmra.mxu0 %v1555
        %v1864 = vpop.f32.mrf.mxu0
        %v1865 = vadd.f32 %v1852, %v1864
        %v1866 = vpop.f32.mrf.mxu0
        %1867 = vdwg.mxu0
        %v1868 = vadd.f32 %v1182, %v1865
        %1869 = vst [vmem:[%s596] sm:$0xff] %v1868
        %s1870 = sand.u32 %s321, 1
        %s1871 = scalar_lea.sflag [#allocation5], %s1870
        %s1872 = sand.u32 %s321, 1
        %s1873 = smul.addr %s1872, 8
        %s1874 = scalar_lea.vmem [#allocation20], %s1873
        // Predicated region
        $region113: #{tpu_custom_call.1} parent=71 // pred_check
          %p1875 = pneg %p331
        $region114: #{tpu_custom_call.1} parent=71 // pred_check_branch
          %1877 = sbr.rel (%p1875) target = $region116
        $region115: #{tpu_custom_call.1} parent=71 // pred_region
          %1879 = vsyncadd %s1871, 0
          %s1880 = smul.addr %s35, 8
          %s1881 = scalar_lea.hbm %s13, %s1880
          %s1883 = sshll.u32 %s1874, 4
          %s1884 = int_to_ptr.vmem [resolvable:$true] %s1883
          %s1885 = sshll.u32 %s1881, 4
          %s1886 = int_to_ptr.hbm [resolvable:$true] %s1885
          %1888 = dma.vmem_to_hbm [thread:$0]  %s1884, 128, %s1886, %s1871
        $region116: #{tpu_custom_call.1} parent=71 // pred_fallthru
          _
      $region72: #{tpu_custom_call.1} parent=5 // pred_fallthru
        _
      %p1889 = scmp.le.s32.totalorder 2, %s30
      // Predicated region
      $region117: #{tpu_custom_call.1} parent=5 // pred_check
        %p1890 = pneg %p1889
      $region118: #{tpu_custom_call.1} parent=5 // pred_check_branch
        %1892 = sbr.rel (%p1890) target = $region120
      $region119: #{tpu_custom_call.1} parent=5 // pred_region
        %s1893 = ssub.s32 %s30, 2
        // Predicated region
        $region121: #{tpu_custom_call.1} parent=119 // pred_check
          %p1894 = pneg %p337
        $region122: #{tpu_custom_call.1} parent=119 // pred_check_branch
          %1896 = sbr.rel (%p1894) target = $region124
        $region123: #{tpu_custom_call.1} parent=119 // pred_region
          %s1897 = sand.u32 %s322, 1
          %s1898 = scalar_lea.sflag [#allocation5], %s1897
          %s1899 = sand.u32 %s322, 1
          %s1900 = smul.addr %s1899, 8
          %s1901 = scalar_lea.vmem [#allocation20], %s1900
          %1903 = dma.done %s1898, 128
        $region124: #{tpu_custom_call.1} parent=119 // pred_fallthru
          _
      $region120: #{tpu_custom_call.1} parent=5 // pred_fallthru
        _
    $region6: #{tpu_custom_call.1} parent=1 // loop_footer
      %s34 = sadd.s32 1, %s30
    $region7: #{tpu_custom_call.1} parent=1 // loop_footer_branch
      %29 = sbr.rel target = $region3
    $region8: #{tpu_custom_call.1} parent=1 // loop_exit
      _
    %1904 = vsyncpa [#allocation4], 1
    %s1905 = scalar_lea.sflag [#allocation4], 1
    %1906 = vsyncpa %s1905, 1
    %1907 = vsyncpa [#allocation7], 1
    %1908 = vsyncpa [#allocation10], 1
    %1909 = vsyncpa [#allocation13], 1
    %1910 = vsyncpa [#allocation16], 1
    %1911 = vsyncpa [#allocation19], 1
    %1912 = vsyncpa [#allocation5], 1
    %s1913 = scalar_lea.sflag [#allocation5], 1
    %1914 = vsyncpa %s1913, 1

</llo_original>
